<compile_context>
chip_gen: v6e
topology: v6e:2x2x1
jax: 0.10.0
libtpu: 0.0.40
codegen_flags: <defaults>
</compile_context>

<pallas_src>
import math

import jax
import jax.numpy as jnp
from jax import lax
from jax.experimental import pallas as pl
from jax.experimental.pallas import tpu as pltpu  # noqa: F401  (defaults suffice for this tiny gridless kernel)

# ---------------- model hyper-parameters (small, consistent with the module) ---
HID_DIM = 32
N_HEADS = 4
HEAD_DIM = HID_DIM // N_HEADS
PF_DIM = 64
N_LAYERS = 2
MAX_LENGTH = 8          # trg length == max_length so AvgPool1d(max_length) == mean over trg axis
OUT_DIM = 2

QUE_NUM = 13524
PART_NUM = 9
ELA_NUM = 302

# ---------------- packed-weight slab layout constants --------------------------
VEC_WIDTH = 128                       # lane width of the vector slab
VEC_ROWS_PER_LAYER = 8                # b_qk, b_o', ln1_g, ln1_b, b_fc1, b_fc2, ln2_g, ln2_b
VEC_CROSS = N_LAYERS * VEC_ROWS_PER_LAYER   # row 16: cross b_qk; 17: cross b_o'; 18: b_out
VEC_WOUT = 24                         # rows 24..24+H-1: W_out padded to [H, 128]
VEC_ROWS = VEC_WOUT + HID_DIM         # 56 total rows


# ---------------- in-kernel helpers (pure jnp, traced inside the kernel) -------
def _softmax_rows(x):
    x = x - jnp.max(x, axis=-1, keepdims=True)
    p = jnp.exp(x)
    return p * pl.reciprocal(jnp.sum(p, axis=-1, keepdims=True), approx=True)


def _layer_norm(x, g, b, eps=1e-5):
    mean = jnp.mean(x, axis=-1, keepdims=True)
    var = jnp.mean((x - mean) ** 2, axis=-1, keepdims=True)
    return (x - mean) * lax.rsqrt(var + eps) * g + b


def _mha_rows(q, k, v, bias):
    """Multi-head attention on row-major activations with W_o pre-folded into V.

    q, k: [rows_q, H] / [rows_k, H] (1/sqrt(head_dim) already folded into q's
    projection).  v: [rows_k, N_HEADS*H], column block h is x @ (Wv_h @ Wo_h).
    bias: additive mask [rows_q, rows_k] (0 = attend, -1e10 = masked) that also
    encodes the batch block-diagonal structure so the batch stays folded into
    rows.  Note: a fully-masked query row softmaxes uniformly over ALL rows_k
    keys (cross-batch) — a known divergence from the torch reference, never
    triggered by non-degenerate masks.
    """
    out = jnp.zeros((q.shape[0], HID_DIM), jnp.float32)
    for h in range(N_HEADS):
        hs = slice(h * HEAD_DIM, (h + 1) * HEAD_DIM)
        energy = lax.dot_general(q[:, hs], k[:, hs], (((1,), (1,)), ((), ())),
                                 preferred_element_type=jnp.float32)
        attn = _softmax_rows(energy + bias)
        out = out + jnp.dot(attn, v[:, h * HID_DIM:(h + 1) * HID_DIM],
                            preferred_element_type=jnp.float32)
    return out


# ---------------- parameter init (deterministic, synthetic) --------------------
def init_params(key, que_num, part_num, ela_num, hid_dim, n_layers, pf_dim, max_length):
    keys = iter(jax.random.split(key, 64))

    def nrm(shape, s=0.02):
        return jax.random.normal(next(keys), shape, jnp.float32) * s

    def linear(din, dout):
        # weights stored [in, out] (torch nn.Linear weight transposed): y = x @ W + b
        return {'w': nrm((din, dout)), 'b': nrm((1, dout))}

    params = {
        'que_emb': nrm((que_num, hid_dim)),
        'pos_emb': nrm((max_length, hid_dim)),
        'part_emb': nrm((part_num, hid_dim)),
        'ela_emb': nrm((ela_num, hid_dim)),
        'ans_emb': nrm((3, hid_dim)),
        'layers': [],
        'trg_linear': linear(hid_dim, hid_dim),
        'out_attn': {k: linear(hid_dim, hid_dim) for k in ('q', 'k', 'v', 'o')},
        'output_layer': linear(hid_dim, OUT_DIM),
    }
    for _ in range(n_layers):
        params['layers'].append({
            'attn': {k: linear(hid_dim, hid_dim) for k in ('q', 'k', 'v', 'o')},
            'ln1_g': jnp.ones((1, hid_dim), jnp.float32),
            'ln1_b': jnp.zeros((1, hid_dim), jnp.float32),
            'fc1': linear(hid_dim, pf_dim),
            'fc2': linear(pf_dim, hid_dim),
            'ln2_g': jnp.ones((1, hid_dim), jnp.float32),
            'ln2_b': jnp.zeros((1, hid_dim), jnp.float32),
        })
    return params


# ---------------- one-time host-side weight packing (OUTSIDE jit) --------------
def pack_params(params):
    """Merge QK, fold 1/sqrt(hd) into Q, fold W_o into V per head, fold trg_linear
    into the cross-attn Q, and collapse everything into 4 weight slabs."""
    inv_scale = 1.0 / math.sqrt(HEAD_DIM)

    def fold_vo(wv, wo):
        # per-head: Wv'_h = Wv[:, h] @ Wo[h, :]  -> concat over heads -> [H, N_HEADS*H]
        return jnp.concatenate(
            [wv[:, h * HEAD_DIM:(h + 1) * HEAD_DIM] @ wo[h * HEAD_DIM:(h + 1) * HEAD_DIM, :]
             for h in range(N_HEADS)], axis=1)

    def row(v):
        v = jnp.asarray(v, jnp.float32).reshape(1, -1)
        return jnp.pad(v, ((0, 0), (0, VEC_WIDTH - v.shape[1])))

    wa, wvs, w2s, vec_rows = [], [], [], []
    for lyr in params['layers']:
        a = lyr['attn']
        wa.append(jnp.concatenate([a['q']['w'] * inv_scale, a['k']['w']], axis=1))   # [H, 2H]
        wvs.append(fold_vo(a['v']['w'], a['o']['w']))                                 # [H, 4H]
        w2s.append(lyr['fc2']['w'])                                                   # [PF, H]
        vec_rows += [
            row(jnp.concatenate([a['q']['b'] * inv_scale, a['k']['b']], axis=1)),     # b_qk
            row(a['o']['b'] + a['v']['b'] @ a['o']['w']),                             # b_o' (bv folded)
            row(lyr['ln1_g']), row(lyr['ln1_b']),
            row(lyr['fc1']['b']), row(lyr['fc2']['b']),
            row(lyr['ln2_g']), row(lyr['ln2_b']),
        ]
    wa += [lyr['fc1']['w'] for lyr in params['layers']]                               # [H, PF] each

    oa, tl = params['out_attn'], params['trg_linear']
    # q = (trg @ Wtl + btl) @ Wq + bq == trg @ (Wtl Wq) + (btl Wq + bq); fold 1/sqrt(hd).
    xwq = (tl['w'] @ oa['q']['w']) * inv_scale
    xbq = (tl['b'] @ oa['q']['w'] + oa['q']['b']) * inv_scale
    wa.append(jnp.concatenate([xwq, oa['k']['w']], axis=1))                           # [H, 2H]
    wvs.append(fold_vo(oa['v']['w'], oa['o']['w']))                                   # [H, 4H]
    vec_rows += [
        row(jnp.concatenate([xbq, oa['k']['b']], axis=1)),                            # row 16
        row(oa['o']['b'] + oa['v']['b'] @ oa['o']['w']),                              # row 17
        row(params['output_layer']['b']),                                             # row 18
    ]

    vec = jnp.concatenate(vec_rows, axis=0)                                           # [19, 128]
    vec = jnp.pad(vec, ((0, VEC_WOUT - vec.shape[0]), (0, 0)))                        # [24, 128]
    wout = jnp.pad(params['output_layer']['w'], ((0, 0), (0, VEC_WIDTH - OUT_DIM)))   # [H, 128]
    vec = jnp.concatenate([vec, wout], axis=0)                                        # [56, 128]

    return {'wa': jnp.stack(wa),      # [2L+1, H, 2H]  = [5, 32, 64]
            'wv': jnp.stack(wvs),     # [L+1, H, 4H]   = [3, 32, 128]
            'w2': jnp.stack(w2s),     # [L, PF, H]     = [2, 64, 32]
            'vec': vec}               # [56, 128]


# ---------------- forward pass: thin JAX wrapper + one fused pallas_call --------
@jax.jit
def encoder_forward(emb, packed, src_que, src_ans, src_part, src_ela, src_mask,
                    trg_que, trg_part, trg_ela, trg_src_mask):
    B, S = src_que.shape
    T = trg_que.shape[1]
    H = HID_DIM
    rows_s, rows_t = B * S, B * T
    # AvgPool1d(max_length) with a single pooling window requires T == max_length.
    assert T == MAX_LENGTH  # TODO(synk): general strided AvgPool1d windows when T > max_length

    # ---- embedding gathers + combine stay in XLA (fuse with the gathers); -----
    # ---- dropout layers are eval-mode identities. ------------------------------
    src = ((emb['que'][src_que] + emb['part'][src_part] + emb['ela'][src_ela]
            + emb['ans'][src_ans]) * math.sqrt(H) + emb['pos'][:S][None, :, :])
    trg = emb['que'][trg_que] + emb['part'][trg_part] + emb['ela'][trg_ela]

    # ---- additive attention bias (0 attend / -1e10 masked) with the batch -----
    # ---- block-diagonal structure folded in, plus the AvgPool pooling matrix. --
    rb_s = jnp.repeat(jnp.arange(B), S)
    rb_t = jnp.repeat(jnp.arange(B), T)
    keep_s = (rb_s[:, None] == rb_s[None, :]) & (src_mask.reshape(-1) != 0)[None, :]
    keep_x = (rb_t[:, None] == rb_s[None, :]) & (trg_src_mask.reshape(-1) != 0)[None, :]
    sbias = jnp.where(keep_s, 0.0, -1e10).astype(jnp.float32)       # [B*S, B*S]
    xbias = jnp.where(keep_x, 0.0, -1e10).astype(jnp.float32)       # [B*T, B*S]
    pool = (jnp.arange(B)[:, None] == rb_t[None, :]).astype(jnp.float32) / T   # [B, B*T]

    # ---- single packed data slab = one HBM->VMEM DMA ---------------------------
    # rows 0:BS lanes 0:H            src activations
    # rows BS:BS+BT lanes 0:H        trg activations
    # rows 0:BS lanes H:H+BS         self-attn additive bias
    # rows BS:BS+BT lanes H:H+BS     cross-attn additive bias
    # rows 0:B lanes H+BS:H+BS+BT    AvgPool pooling matrix
    data = jnp.concatenate([
        jnp.concatenate([src.reshape(rows_s, H), trg.reshape(rows_t, H)], axis=0),
        jnp.concatenate([sbias, xbias], axis=0),
        jnp.concatenate([pool, jnp.zeros((rows_s + rows_t - B, rows_t), jnp.float32)],
                        axis=0),
    ], axis=1)                                                       # [32, 64]

    def kernel(data_ref, wa_ref, wv_ref, w2_ref, vec_ref, out_ref):
        x = data_ref[0:rows_s, 0:H]                                  # [B*S, H]
        trg_a = data_ref[rows_s:rows_s + rows_t, 0:H]                # [B*T, H]
        sb = data_ref[0:rows_s, H:H + rows_s]                        # [B*S, B*S]
        xb = data_ref[rows_s:rows_s + rows_t, H:H + rows_s]          # [B*T, B*S]
        pm = data_ref[0:B, H + rows_s:H + rows_s + rows_t]           # [B, B*T]

        # ---- encoder layers (statically unrolled) -------------------------------
        for l in range(N_LAYERS):
            r0 = l * VEC_ROWS_PER_LAYER
            qk = (jnp.dot(x, wa_ref[l], preferred_element_type=jnp.float32)
                  + vec_ref[r0:r0 + 1, 0:2 * H])                     # [rows, 2H]
            v = jnp.dot(x, wv_ref[l], preferred_element_type=jnp.float32)   # [rows, 4H]
            attn = (_mha_rows(qk[:, 0:H], qk[:, H:2 * H], v, sb)
                    + vec_ref[r0 + 1:r0 + 2, 0:H])
            x = _layer_norm(x + attn, vec_ref[r0 + 2:r0 + 3, 0:H],
                            vec_ref[r0 + 3:r0 + 4, 0:H])
            h1 = jnp.maximum(
                jnp.dot(x, wa_ref[N_LAYERS + l], preferred_element_type=jnp.float32)
                + vec_ref[r0 + 4:r0 + 5, 0:PF_DIM], 0.0)
            ff = (jnp.dot(h1, w2_ref[l], preferred_element_type=jnp.float32)
                  + vec_ref[r0 + 5:r0 + 6, 0:H])
            x = _layer_norm(x + ff, vec_ref[r0 + 6:r0 + 7, 0:H],
                            vec_ref[r0 + 7:r0 + 8, 0:H])

        # ---- cross-attention head: trg queries attend over the encoder output ---
        rc = VEC_CROSS
        qx = (jnp.dot(trg_a, wa_ref[2 * N_LAYERS], preferred_element_type=jnp.float32)
              + vec_ref[rc:rc + 1, 0:2 * H])                         # lanes 0:H are Q
        kx = (jnp.dot(x, wa_ref[2 * N_LAYERS], preferred_element_type=jnp.float32)
              + vec_ref[rc:rc + 1, 0:2 * H])                         # lanes H:2H are K
        vx = jnp.dot(x, wv_ref[N_LAYERS], preferred_element_type=jnp.float32)
        ax = (_mha_rows(qx[:, 0:H], kx[:, H:2 * H], vx, xb)
              + vec_ref[rc + 1:rc + 2, 0:H])                         # [B*T, H]

        # ---- AvgPool1d(max_length) as a pooling matmul, then the output layer ---
        pooled = jnp.dot(pm, ax, preferred_element_type=jnp.float32)             # [B, H]
        res = (jnp.dot(pooled, vec_ref[VEC_WOUT:VEC_WOUT + H, :],
                       preferred_element_type=jnp.float32)
               + vec_ref[rc + 2:rc + 3, :])                                      # [B, 128]
        out_ref[...] = res[:, 0:OUT_DIM]

    out = pl.pallas_call(
        kernel,
        out_shape=jax.ShapeDtypeStruct((B, OUT_DIM), jnp.float32),
        # no grid / no BlockSpecs: whole (tiny) arrays are placed in VMEM once.
    )(data, packed['wa'], packed['wv'], packed['w2'], packed['vec'])
    return out[:, None, :]          # [B, 1, 2], matching the torch module output


# ---------------- main ----------------------------------------------------------
if __name__ == "__main__":
    B, S, T = 2, 8, MAX_LENGTH

    key = jax.random.PRNGKey(0)
    pkey, *dkeys = jax.random.split(key, 9)
    params = init_params(pkey, QUE_NUM, PART_NUM, ELA_NUM,
                         HID_DIM, N_LAYERS, PF_DIM, MAX_LENGTH)

    # One-time packing OUTSIDE the jitted forward (review item 1).
    emb = {'que': params['que_emb'], 'pos': params['pos_emb'],
           'part': params['part_emb'], 'ela': params['ela_emb'],
           'ans': params['ans_emb']}
    packed = pack_params(params)
    packed = jax.tree_util.tree_map(jax.block_until_ready, packed)

    src_que = jax.random.randint(dkeys[0], (B, S), 0, QUE_NUM)
    src_ans = jax.random.randint(dkeys[1], (B, S), 0, 3)
    src_part = jax.random.randint(dkeys[2], (B, S), 0, PART_NUM)
    src_ela = jax.random.randint(dkeys[3], (B, S), 0, ELA_NUM)
    src_mask = jnp.ones((B, S), jnp.int32).at[:, -2:].set(0)   # last 2 key positions padded

    trg_que = jax.random.randint(dkeys[4], (B, T), 0, QUE_NUM)
    trg_part = jax.random.randint(dkeys[5], (B, T), 0, PART_NUM)
    trg_ela = jax.random.randint(dkeys[6], (B, T), 0, ELA_NUM)
    trg_src_mask = src_mask

    out = encoder_forward(emb, packed, src_que, src_ans, src_part, src_ela, src_mask,
                          trg_que, trg_part, trg_ela, trg_src_mask)
    jax.block_until_ready(out)
    assert out.shape == (B, 1, 2) and out.dtype == jnp.float32
    print("KERNEL_OK")
</pallas_src>

<mosaic_0001>
module attributes {stable_mosaic.version = 11 : i64} {
  func.func @kernel(%arg0: memref<32x64xf32, #tpu.memory_space<vmem>>, %arg1: memref<5x32x64xf32, #tpu.memory_space<vmem>>, %arg2: memref<3x32x128xf32, #tpu.memory_space<vmem>>, %arg3: memref<2x64x32xf32, #tpu.memory_space<vmem>>, %arg4: memref<56x128xf32, #tpu.memory_space<vmem>>, %arg5: memref<2x2xf32, #tpu.memory_space<vmem>>) attributes {dimension_semantics = [], scalar_prefetch = 0 : i64, scratch_operands = 0 : i64, tpu.core_type = #tpu.core_type<tc>} {
    %c0 = arith.constant 0 : index
    %c0_0 = arith.constant 0 : index
    %0 = vector.load %arg0[%c0, %c0_0] : memref<32x64xf32, #tpu.memory_space<vmem>>, vector<16x32xf32>
    %c16 = arith.constant 16 : index
    %c0_1 = arith.constant 0 : index
    %1 = vector.load %arg0[%c16, %c0_1] : memref<32x64xf32, #tpu.memory_space<vmem>>, vector<16x32xf32>
    %c0_2 = arith.constant 0 : index
    %c32 = arith.constant 32 : index
    %2 = vector.load %arg0[%c0_2, %c32] : memref<32x64xf32, #tpu.memory_space<vmem>>, vector<16x16xf32>
    %c16_3 = arith.constant 16 : index
    %c32_4 = arith.constant 32 : index
    %3 = vector.load %arg0[%c16_3, %c32_4] : memref<32x64xf32, #tpu.memory_space<vmem>>, vector<16x16xf32>
    %c0_5 = arith.constant 0 : index
    %c48 = arith.constant 48 : index
    %4 = vector.load %arg0[%c0_5, %c48] : memref<32x64xf32, #tpu.memory_space<vmem>>, vector<2x16xf32>
    %c0_6 = arith.constant 0 : index
    %c0_7 = arith.constant 0 : index
    %c0_8 = arith.constant 0 : index
    %5 = vector.load %arg1[%c0_6, %c0_7, %c0_8] : memref<5x32x64xf32, #tpu.memory_space<vmem>>, vector<1x32x64xf32>
    %6 = vector.shape_cast %5 : vector<1x32x64xf32> to vector<32x64xf32>
    %cst = arith.constant dense<0.000000e+00> : vector<16x64xf32>
    %7 = tpu.matmul %0, %6, %cst {dimension_numbers = #tpu.dot_dimension_numbers<[1], [0], [0], [1], [0, 0, 1, 1], [], []>} : vector<16x32xf32>, vector<32x64xf32>, vector<16x64xf32> -> vector<16x64xf32>
    %c0_9 = arith.constant 0 : index
    %c0_10 = arith.constant 0 : index
    %8 = vector.load %arg4[%c0_9, %c0_10] : memref<56x128xf32, #tpu.memory_space<vmem>>, vector<1x64xf32>
    %9 = vector.broadcast %8 : vector<1x64xf32> to vector<16x64xf32>
    %10 = arith.addf %7, %9 : vector<16x64xf32>
    %c0_11 = arith.constant 0 : index
    %c0_12 = arith.constant 0 : index
    %c0_13 = arith.constant 0 : index
    %11 = vector.load %arg2[%c0_11, %c0_12, %c0_13] : memref<3x32x128xf32, #tpu.memory_space<vmem>>, vector<1x32x128xf32>
    %12 = vector.shape_cast %11 : vector<1x32x128xf32> to vector<32x128xf32>
    %cst_14 = arith.constant dense<0.000000e+00> : vector<16x128xf32>
    %13 = tpu.matmul %0, %12, %cst_14 {dimension_numbers = #tpu.dot_dimension_numbers<[1], [0], [0], [1], [0, 0, 1, 1], [], []>} : vector<16x32xf32>, vector<32x128xf32>, vector<16x128xf32> -> vector<16x128xf32>
    %14 = vector.extract_strided_slice %10 {offsets = [0, 0], sizes = [16, 32], strides = [1, 1]} : vector<16x64xf32> to vector<16x32xf32>
    %15 = vector.extract_strided_slice %10 {offsets = [0, 32], sizes = [16, 32], strides = [1, 1]} : vector<16x64xf32> to vector<16x32xf32>
    %cst_15 = arith.constant 0.000000e+00 : f32
    %16 = vector.broadcast %cst_15 : f32 to vector<16x32xf32>
    %17 = vector.extract_strided_slice %14 {offsets = [0, 0], sizes = [16, 8], strides = [1, 1]} : vector<16x32xf32> to vector<16x8xf32>
    %18 = vector.extract_strided_slice %15 {offsets = [0, 0], sizes = [16, 8], strides = [1, 1]} : vector<16x32xf32> to vector<16x8xf32>
    %cst_16 = arith.constant dense<0.000000e+00> : vector<16x16xf32>
    %19 = tpu.matmul %17, %18, %cst_16 {dimension_numbers = #tpu.dot_dimension_numbers<[1], [1], [0], [0], [0, 0, 1, 0], [], []>} : vector<16x8xf32>, vector<16x8xf32>, vector<16x16xf32> -> vector<16x16xf32>
    %20 = arith.addf %19, %2 : vector<16x16xf32>
    %cst_17 = arith.constant dense<0xFF800000> : vector<16xf32>
    %21 = vector.multi_reduction <maximumf>, %20, %cst_17 [1] : vector<16x16xf32> to vector<16xf32>
    %22 = vector.shape_cast %21 : vector<16xf32> to vector<16x1xf32>
    %23 = vector.broadcast %22 : vector<16x1xf32> to vector<16x16xf32>
    %24 = arith.subf %20, %23 : vector<16x16xf32>
    %25 = math.exp %24 : vector<16x16xf32>
    %cst_18 = arith.constant dense<0.000000e+00> : vector<16xf32>
    %26 = vector.multi_reduction <add>, %25, %cst_18 [1] : vector<16x16xf32> to vector<16xf32>
    %27 = vector.shape_cast %26 : vector<16xf32> to vector<16x1xf32>
    %28 = tpu.reciprocal %27 {approx = true} : vector<16x1xf32> -> vector<16x1xf32>
    %29 = vector.broadcast %28 : vector<16x1xf32> to vector<16x16xf32>
    %30 = arith.mulf %25, %29 : vector<16x16xf32>
    %31 = vector.extract_strided_slice %13 {offsets = [0, 0], sizes = [16, 32], strides = [1, 1]} : vector<16x128xf32> to vector<16x32xf32>
    %cst_19 = arith.constant dense<0.000000e+00> : vector<16x32xf32>
    %32 = tpu.matmul %30, %31, %cst_19 {dimension_numbers = #tpu.dot_dimension_numbers<[1], [0], [0], [1], [0, 0, 1, 1], [], []>} : vector<16x16xf32>, vector<16x32xf32>, vector<16x32xf32> -> vector<16x32xf32>
    %33 = arith.addf %16, %32 : vector<16x32xf32>
    %34 = vector.extract_strided_slice %14 {offsets = [0, 8], sizes = [16, 8], strides = [1, 1]} : vector<16x32xf32> to vector<16x8xf32>
    %35 = vector.extract_strided_slice %15 {offsets = [0, 8], sizes = [16, 8], strides = [1, 1]} : vector<16x32xf32> to vector<16x8xf32>
    %cst_20 = arith.constant dense<0.000000e+00> : vector<16x16xf32>
    %36 = tpu.matmul %34, %35, %cst_20 {dimension_numbers = #tpu.dot_dimension_numbers<[1], [1], [0], [0], [0, 0, 1, 0], [], []>} : vector<16x8xf32>, vector<16x8xf32>, vector<16x16xf32> -> vector<16x16xf32>
    %37 = arith.addf %36, %2 : vector<16x16xf32>
    %cst_21 = arith.constant dense<0xFF800000> : vector<16xf32>
    %38 = vector.multi_reduction <maximumf>, %37, %cst_21 [1] : vector<16x16xf32> to vector<16xf32>
    %39 = vector.shape_cast %38 : vector<16xf32> to vector<16x1xf32>
    %40 = vector.broadcast %39 : vector<16x1xf32> to vector<16x16xf32>
    %41 = arith.subf %37, %40 : vector<16x16xf32>
    %42 = math.exp %41 : vector<16x16xf32>
    %cst_22 = arith.constant dense<0.000000e+00> : vector<16xf32>
    %43 = vector.multi_reduction <add>, %42, %cst_22 [1] : vector<16x16xf32> to vector<16xf32>
    %44 = vector.shape_cast %43 : vector<16xf32> to vector<16x1xf32>
    %45 = tpu.reciprocal %44 {approx = true} : vector<16x1xf32> -> vector<16x1xf32>
    %46 = vector.broadcast %45 : vector<16x1xf32> to vector<16x16xf32>
    %47 = arith.mulf %42, %46 : vector<16x16xf32>
    %48 = vector.extract_strided_slice %13 {offsets = [0, 32], sizes = [16, 32], strides = [1, 1]} : vector<16x128xf32> to vector<16x32xf32>
    %cst_23 = arith.constant dense<0.000000e+00> : vector<16x32xf32>
    %49 = tpu.matmul %47, %48, %cst_23 {dimension_numbers = #tpu.dot_dimension_numbers<[1], [0], [0], [1], [0, 0, 1, 1], [], []>} : vector<16x16xf32>, vector<16x32xf32>, vector<16x32xf32> -> vector<16x32xf32>
    %50 = arith.addf %33, %49 : vector<16x32xf32>
    %51 = vector.extract_strided_slice %14 {offsets = [0, 16], sizes = [16, 8], strides = [1, 1]} : vector<16x32xf32> to vector<16x8xf32>
    %52 = vector.extract_strided_slice %15 {offsets = [0, 16], sizes = [16, 8], strides = [1, 1]} : vector<16x32xf32> to vector<16x8xf32>
    %cst_24 = arith.constant dense<0.000000e+00> : vector<16x16xf32>
    %53 = tpu.matmul %51, %52, %cst_24 {dimension_numbers = #tpu.dot_dimension_numbers<[1], [1], [0], [0], [0, 0, 1, 0], [], []>} : vector<16x8xf32>, vector<16x8xf32>, vector<16x16xf32> -> vector<16x16xf32>
    %54 = arith.addf %53, %2 : vector<16x16xf32>
    %cst_25 = arith.constant dense<0xFF800000> : vector<16xf32>
    %55 = vector.multi_reduction <maximumf>, %54, %cst_25 [1] : vector<16x16xf32> to vector<16xf32>
    %56 = vector.shape_cast %55 : vector<16xf32> to vector<16x1xf32>
    %57 = vector.broadcast %56 : vector<16x1xf32> to vector<16x16xf32>
    %58 = arith.subf %54, %57 : vector<16x16xf32>
    %59 = math.exp %58 : vector<16x16xf32>
    %cst_26 = arith.constant dense<0.000000e+00> : vector<16xf32>
    %60 = vector.multi_reduction <add>, %59, %cst_26 [1] : vector<16x16xf32> to vector<16xf32>
    %61 = vector.shape_cast %60 : vector<16xf32> to vector<16x1xf32>
    %62 = tpu.reciprocal %61 {approx = true} : vector<16x1xf32> -> vector<16x1xf32>
    %63 = vector.broadcast %62 : vector<16x1xf32> to vector<16x16xf32>
    %64 = arith.mulf %59, %63 : vector<16x16xf32>
    %65 = vector.extract_strided_slice %13 {offsets = [0, 64], sizes = [16, 32], strides = [1, 1]} : vector<16x128xf32> to vector<16x32xf32>
    %cst_27 = arith.constant dense<0.000000e+00> : vector<16x32xf32>
    %66 = tpu.matmul %64, %65, %cst_27 {dimension_numbers = #tpu.dot_dimension_numbers<[1], [0], [0], [1], [0, 0, 1, 1], [], []>} : vector<16x16xf32>, vector<16x32xf32>, vector<16x32xf32> -> vector<16x32xf32>
    %67 = arith.addf %50, %66 : vector<16x32xf32>
    %68 = vector.extract_strided_slice %14 {offsets = [0, 24], sizes = [16, 8], strides = [1, 1]} : vector<16x32xf32> to vector<16x8xf32>
    %69 = vector.extract_strided_slice %15 {offsets = [0, 24], sizes = [16, 8], strides = [1, 1]} : vector<16x32xf32> to vector<16x8xf32>
    %cst_28 = arith.constant dense<0.000000e+00> : vector<16x16xf32>
    %70 = tpu.matmul %68, %69, %cst_28 {dimension_numbers = #tpu.dot_dimension_numbers<[1], [1], [0], [0], [0, 0, 1, 0], [], []>} : vector<16x8xf32>, vector<16x8xf32>, vector<16x16xf32> -> vector<16x16xf32>
    %71 = arith.addf %70, %2 : vector<16x16xf32>
    %cst_29 = arith.constant dense<0xFF800000> : vector<16xf32>
    %72 = vector.multi_reduction <maximumf>, %71, %cst_29 [1] : vector<16x16xf32> to vector<16xf32>
    %73 = vector.shape_cast %72 : vector<16xf32> to vector<16x1xf32>
    %74 = vector.broadcast %73 : vector<16x1xf32> to vector<16x16xf32>
    %75 = arith.subf %71, %74 : vector<16x16xf32>
    %76 = math.exp %75 : vector<16x16xf32>
    %cst_30 = arith.constant dense<0.000000e+00> : vector<16xf32>
    %77 = vector.multi_reduction <add>, %76, %cst_30 [1] : vector<16x16xf32> to vector<16xf32>
    %78 = vector.shape_cast %77 : vector<16xf32> to vector<16x1xf32>
    %79 = tpu.reciprocal %78 {approx = true} : vector<16x1xf32> -> vector<16x1xf32>
    %80 = vector.broadcast %79 : vector<16x1xf32> to vector<16x16xf32>
    %81 = arith.mulf %76, %80 : vector<16x16xf32>
    %82 = vector.extract_strided_slice %13 {offsets = [0, 96], sizes = [16, 32], strides = [1, 1]} : vector<16x128xf32> to vector<16x32xf32>
    %cst_31 = arith.constant dense<0.000000e+00> : vector<16x32xf32>
    %83 = tpu.matmul %81, %82, %cst_31 {dimension_numbers = #tpu.dot_dimension_numbers<[1], [0], [0], [1], [0, 0, 1, 1], [], []>} : vector<16x16xf32>, vector<16x32xf32>, vector<16x32xf32> -> vector<16x32xf32>
    %84 = arith.addf %67, %83 : vector<16x32xf32>
    %c1 = arith.constant 1 : index
    %c0_32 = arith.constant 0 : index
    %85 = vector.load %arg4[%c1, %c0_32] : memref<56x128xf32, #tpu.memory_space<vmem>>, vector<1x32xf32>
    %86 = vector.broadcast %85 : vector<1x32xf32> to vector<16x32xf32>
    %87 = arith.addf %84, %86 : vector<16x32xf32>
    %88 = arith.addf %0, %87 : vector<16x32xf32>
    %c2 = arith.constant 2 : index
    %c0_33 = arith.constant 0 : index
    %89 = vector.load %arg4[%c2, %c0_33] : memref<56x128xf32, #tpu.memory_space<vmem>>, vector<1x32xf32>
    %c3 = arith.constant 3 : index
    %c0_34 = arith.constant 0 : index
    %90 = vector.load %arg4[%c3, %c0_34] : memref<56x128xf32, #tpu.memory_space<vmem>>, vector<1x32xf32>
    %cst_35 = arith.constant dense<0.000000e+00> : vector<16xf32>
    %91 = vector.multi_reduction <add>, %88, %cst_35 [1] : vector<16x32xf32> to vector<16xf32>
    %92 = vector.shape_cast %91 : vector<16xf32> to vector<16x1xf32>
    %cst_36 = arith.constant 3.200000e+01 : f32
    %93 = vector.broadcast %cst_36 : f32 to vector<16x1xf32>
    %94 = arith.divf %92, %93 : vector<16x1xf32>
    %95 = vector.broadcast %94 : vector<16x1xf32> to vector<16x32xf32>
    %96 = arith.subf %88, %95 : vector<16x32xf32>
    %97 = arith.mulf %96, %96 : vector<16x32xf32>
    %cst_37 = arith.constant dense<0.000000e+00> : vector<16xf32>
    %98 = vector.multi_reduction <add>, %97, %cst_37 [1] : vector<16x32xf32> to vector<16xf32>
    %99 = vector.shape_cast %98 : vector<16xf32> to vector<16x1xf32>
    %cst_38 = arith.constant 3.200000e+01 : f32
    %100 = vector.broadcast %cst_38 : f32 to vector<16x1xf32>
    %101 = arith.divf %99, %100 : vector<16x1xf32>
    %102 = vector.broadcast %94 : vector<16x1xf32> to vector<16x32xf32>
    %103 = arith.subf %88, %102 : vector<16x32xf32>
    %cst_39 = arith.constant 9.99999974E-6 : f32
    %104 = vector.broadcast %cst_39 : f32 to vector<16x1xf32>
    %105 = arith.addf %101, %104 : vector<16x1xf32>
    %106 = math.rsqrt %105 : vector<16x1xf32>
    %107 = vector.broadcast %106 : vector<16x1xf32> to vector<16x32xf32>
    %108 = arith.mulf %103, %107 : vector<16x32xf32>
    %109 = vector.broadcast %89 : vector<1x32xf32> to vector<16x32xf32>
    %110 = arith.mulf %108, %109 : vector<16x32xf32>
    %111 = vector.broadcast %90 : vector<1x32xf32> to vector<16x32xf32>
    %112 = arith.addf %110, %111 : vector<16x32xf32>
    %c2_40 = arith.constant 2 : index
    %c0_41 = arith.constant 0 : index
    %c0_42 = arith.constant 0 : index
    %113 = vector.load %arg1[%c2_40, %c0_41, %c0_42] : memref<5x32x64xf32, #tpu.memory_space<vmem>>, vector<1x32x64xf32>
    %114 = vector.shape_cast %113 : vector<1x32x64xf32> to vector<32x64xf32>
    %cst_43 = arith.constant dense<0.000000e+00> : vector<16x64xf32>
    %115 = tpu.matmul %112, %114, %cst_43 {dimension_numbers = #tpu.dot_dimension_numbers<[1], [0], [0], [1], [0, 0, 1, 1], [], []>} : vector<16x32xf32>, vector<32x64xf32>, vector<16x64xf32> -> vector<16x64xf32>
    %c4 = arith.constant 4 : index
    %c0_44 = arith.constant 0 : index
    %116 = vector.load %arg4[%c4, %c0_44] : memref<56x128xf32, #tpu.memory_space<vmem>>, vector<1x64xf32>
    %117 = vector.broadcast %116 : vector<1x64xf32> to vector<16x64xf32>
    %118 = arith.addf %115, %117 : vector<16x64xf32>
    %cst_45 = arith.constant 0.000000e+00 : f32
    %119 = vector.broadcast %cst_45 : f32 to vector<16x64xf32>
    %120 = arith.maximumf %118, %119 : vector<16x64xf32>
    %c0_46 = arith.constant 0 : index
    %c0_47 = arith.constant 0 : index
    %c0_48 = arith.constant 0 : index
    %121 = vector.load %arg3[%c0_46, %c0_47, %c0_48] : memref<2x64x32xf32, #tpu.memory_space<vmem>>, vector<1x64x32xf32>
    %122 = vector.shape_cast %121 : vector<1x64x32xf32> to vector<64x32xf32>
    %cst_49 = arith.constant dense<0.000000e+00> : vector<16x32xf32>
    %123 = tpu.matmul %120, %122, %cst_49 {dimension_numbers = #tpu.dot_dimension_numbers<[1], [0], [0], [1], [0, 0, 1, 1], [], []>} : vector<16x64xf32>, vector<64x32xf32>, vector<16x32xf32> -> vector<16x32xf32>
    %c5 = arith.constant 5 : index
    %c0_50 = arith.constant 0 : index
    %124 = vector.load %arg4[%c5, %c0_50] : memref<56x128xf32, #tpu.memory_space<vmem>>, vector<1x32xf32>
    %125 = vector.broadcast %124 : vector<1x32xf32> to vector<16x32xf32>
    %126 = arith.addf %123, %125 : vector<16x32xf32>
    %127 = arith.addf %112, %126 : vector<16x32xf32>
    %c6 = arith.constant 6 : index
    %c0_51 = arith.constant 0 : index
    %128 = vector.load %arg4[%c6, %c0_51] : memref<56x128xf32, #tpu.memory_space<vmem>>, vector<1x32xf32>
    %c7 = arith.constant 7 : index
    %c0_52 = arith.constant 0 : index
    %129 = vector.load %arg4[%c7, %c0_52] : memref<56x128xf32, #tpu.memory_space<vmem>>, vector<1x32xf32>
    %cst_53 = arith.constant dense<0.000000e+00> : vector<16xf32>
    %130 = vector.multi_reduction <add>, %127, %cst_53 [1] : vector<16x32xf32> to vector<16xf32>
    %131 = vector.shape_cast %130 : vector<16xf32> to vector<16x1xf32>
    %cst_54 = arith.constant 3.200000e+01 : f32
    %132 = vector.broadcast %cst_54 : f32 to vector<16x1xf32>
    %133 = arith.divf %131, %132 : vector<16x1xf32>
    %134 = vector.broadcast %133 : vector<16x1xf32> to vector<16x32xf32>
    %135 = arith.subf %127, %134 : vector<16x32xf32>
    %136 = arith.mulf %135, %135 : vector<16x32xf32>
    %cst_55 = arith.constant dense<0.000000e+00> : vector<16xf32>
    %137 = vector.multi_reduction <add>, %136, %cst_55 [1] : vector<16x32xf32> to vector<16xf32>
    %138 = vector.shape_cast %137 : vector<16xf32> to vector<16x1xf32>
    %cst_56 = arith.constant 3.200000e+01 : f32
    %139 = vector.broadcast %cst_56 : f32 to vector<16x1xf32>
    %140 = arith.divf %138, %139 : vector<16x1xf32>
    %141 = vector.broadcast %133 : vector<16x1xf32> to vector<16x32xf32>
    %142 = arith.subf %127, %141 : vector<16x32xf32>
    %cst_57 = arith.constant 9.99999974E-6 : f32
    %143 = vector.broadcast %cst_57 : f32 to vector<16x1xf32>
    %144 = arith.addf %140, %143 : vector<16x1xf32>
    %145 = math.rsqrt %144 : vector<16x1xf32>
    %146 = vector.broadcast %145 : vector<16x1xf32> to vector<16x32xf32>
    %147 = arith.mulf %142, %146 : vector<16x32xf32>
    %148 = vector.broadcast %128 : vector<1x32xf32> to vector<16x32xf32>
    %149 = arith.mulf %147, %148 : vector<16x32xf32>
    %150 = vector.broadcast %129 : vector<1x32xf32> to vector<16x32xf32>
    %151 = arith.addf %149, %150 : vector<16x32xf32>
    %c1_58 = arith.constant 1 : index
    %c0_59 = arith.constant 0 : index
    %c0_60 = arith.constant 0 : index
    %152 = vector.load %arg1[%c1_58, %c0_59, %c0_60] : memref<5x32x64xf32, #tpu.memory_space<vmem>>, vector<1x32x64xf32>
    %153 = vector.shape_cast %152 : vector<1x32x64xf32> to vector<32x64xf32>
    %cst_61 = arith.constant dense<0.000000e+00> : vector<16x64xf32>
    %154 = tpu.matmul %151, %153, %cst_61 {dimension_numbers = #tpu.dot_dimension_numbers<[1], [0], [0], [1], [0, 0, 1, 1], [], []>} : vector<16x32xf32>, vector<32x64xf32>, vector<16x64xf32> -> vector<16x64xf32>
    %c8 = arith.constant 8 : index
    %c0_62 = arith.constant 0 : index
    %155 = vector.load %arg4[%c8, %c0_62] : memref<56x128xf32, #tpu.memory_space<vmem>>, vector<1x64xf32>
    %156 = vector.broadcast %155 : vector<1x64xf32> to vector<16x64xf32>
    %157 = arith.addf %154, %156 : vector<16x64xf32>
    %c1_63 = arith.constant 1 : index
    %c0_64 = arith.constant 0 : index
    %c0_65 = arith.constant 0 : index
    %158 = vector.load %arg2[%c1_63, %c0_64, %c0_65] : memref<3x32x128xf32, #tpu.memory_space<vmem>>, vector<1x32x128xf32>
    %159 = vector.shape_cast %158 : vector<1x32x128xf32> to vector<32x128xf32>
    %cst_66 = arith.constant dense<0.000000e+00> : vector<16x128xf32>
    %160 = tpu.matmul %151, %159, %cst_66 {dimension_numbers = #tpu.dot_dimension_numbers<[1], [0], [0], [1], [0, 0, 1, 1], [], []>} : vector<16x32xf32>, vector<32x128xf32>, vector<16x128xf32> -> vector<16x128xf32>
    %161 = vector.extract_strided_slice %157 {offsets = [0, 0], sizes = [16, 32], strides = [1, 1]} : vector<16x64xf32> to vector<16x32xf32>
    %162 = vector.extract_strided_slice %157 {offsets = [0, 32], sizes = [16, 32], strides = [1, 1]} : vector<16x64xf32> to vector<16x32xf32>
    %cst_67 = arith.constant 0.000000e+00 : f32
    %163 = vector.broadcast %cst_67 : f32 to vector<16x32xf32>
    %164 = vector.extract_strided_slice %161 {offsets = [0, 0], sizes = [16, 8], strides = [1, 1]} : vector<16x32xf32> to vector<16x8xf32>
    %165 = vector.extract_strided_slice %162 {offsets = [0, 0], sizes = [16, 8], strides = [1, 1]} : vector<16x32xf32> to vector<16x8xf32>
    %cst_68 = arith.constant dense<0.000000e+00> : vector<16x16xf32>
    %166 = tpu.matmul %164, %165, %cst_68 {dimension_numbers = #tpu.dot_dimension_numbers<[1], [1], [0], [0], [0, 0, 1, 0], [], []>} : vector<16x8xf32>, vector<16x8xf32>, vector<16x16xf32> -> vector<16x16xf32>
    %167 = arith.addf %166, %2 : vector<16x16xf32>
    %cst_69 = arith.constant dense<0xFF800000> : vector<16xf32>
    %168 = vector.multi_reduction <maximumf>, %167, %cst_69 [1] : vector<16x16xf32> to vector<16xf32>
    %169 = vector.shape_cast %168 : vector<16xf32> to vector<16x1xf32>
    %170 = vector.broadcast %169 : vector<16x1xf32> to vector<16x16xf32>
    %171 = arith.subf %167, %170 : vector<16x16xf32>
    %172 = math.exp %171 : vector<16x16xf32>
    %cst_70 = arith.constant dense<0.000000e+00> : vector<16xf32>
    %173 = vector.multi_reduction <add>, %172, %cst_70 [1] : vector<16x16xf32> to vector<16xf32>
    %174 = vector.shape_cast %173 : vector<16xf32> to vector<16x1xf32>
    %175 = tpu.reciprocal %174 {approx = true} : vector<16x1xf32> -> vector<16x1xf32>
    %176 = vector.broadcast %175 : vector<16x1xf32> to vector<16x16xf32>
    %177 = arith.mulf %172, %176 : vector<16x16xf32>
    %178 = vector.extract_strided_slice %160 {offsets = [0, 0], sizes = [16, 32], strides = [1, 1]} : vector<16x128xf32> to vector<16x32xf32>
    %cst_71 = arith.constant dense<0.000000e+00> : vector<16x32xf32>
    %179 = tpu.matmul %177, %178, %cst_71 {dimension_numbers = #tpu.dot_dimension_numbers<[1], [0], [0], [1], [0, 0, 1, 1], [], []>} : vector<16x16xf32>, vector<16x32xf32>, vector<16x32xf32> -> vector<16x32xf32>
    %180 = arith.addf %163, %179 : vector<16x32xf32>
    %181 = vector.extract_strided_slice %161 {offsets = [0, 8], sizes = [16, 8], strides = [1, 1]} : vector<16x32xf32> to vector<16x8xf32>
    %182 = vector.extract_strided_slice %162 {offsets = [0, 8], sizes = [16, 8], strides = [1, 1]} : vector<16x32xf32> to vector<16x8xf32>
    %cst_72 = arith.constant dense<0.000000e+00> : vector<16x16xf32>
    %183 = tpu.matmul %181, %182, %cst_72 {dimension_numbers = #tpu.dot_dimension_numbers<[1], [1], [0], [0], [0, 0, 1, 0], [], []>} : vector<16x8xf32>, vector<16x8xf32>, vector<16x16xf32> -> vector<16x16xf32>
    %184 = arith.addf %183, %2 : vector<16x16xf32>
    %cst_73 = arith.constant dense<0xFF800000> : vector<16xf32>
    %185 = vector.multi_reduction <maximumf>, %184, %cst_73 [1] : vector<16x16xf32> to vector<16xf32>
    %186 = vector.shape_cast %185 : vector<16xf32> to vector<16x1xf32>
    %187 = vector.broadcast %186 : vector<16x1xf32> to vector<16x16xf32>
    %188 = arith.subf %184, %187 : vector<16x16xf32>
    %189 = math.exp %188 : vector<16x16xf32>
    %cst_74 = arith.constant dense<0.000000e+00> : vector<16xf32>
    %190 = vector.multi_reduction <add>, %189, %cst_74 [1] : vector<16x16xf32> to vector<16xf32>
    %191 = vector.shape_cast %190 : vector<16xf32> to vector<16x1xf32>
    %192 = tpu.reciprocal %191 {approx = true} : vector<16x1xf32> -> vector<16x1xf32>
    %193 = vector.broadcast %192 : vector<16x1xf32> to vector<16x16xf32>
    %194 = arith.mulf %189, %193 : vector<16x16xf32>
    %195 = vector.extract_strided_slice %160 {offsets = [0, 32], sizes = [16, 32], strides = [1, 1]} : vector<16x128xf32> to vector<16x32xf32>
    %cst_75 = arith.constant dense<0.000000e+00> : vector<16x32xf32>
    %196 = tpu.matmul %194, %195, %cst_75 {dimension_numbers = #tpu.dot_dimension_numbers<[1], [0], [0], [1], [0, 0, 1, 1], [], []>} : vector<16x16xf32>, vector<16x32xf32>, vector<16x32xf32> -> vector<16x32xf32>
    %197 = arith.addf %180, %196 : vector<16x32xf32>
    %198 = vector.extract_strided_slice %161 {offsets = [0, 16], sizes = [16, 8], strides = [1, 1]} : vector<16x32xf32> to vector<16x8xf32>
    %199 = vector.extract_strided_slice %162 {offsets = [0, 16], sizes = [16, 8], strides = [1, 1]} : vector<16x32xf32> to vector<16x8xf32>
    %cst_76 = arith.constant dense<0.000000e+00> : vector<16x16xf32>
    %200 = tpu.matmul %198, %199, %cst_76 {dimension_numbers = #tpu.dot_dimension_numbers<[1], [1], [0], [0], [0, 0, 1, 0], [], []>} : vector<16x8xf32>, vector<16x8xf32>, vector<16x16xf32> -> vector<16x16xf32>
    %201 = arith.addf %200, %2 : vector<16x16xf32>
    %cst_77 = arith.constant dense<0xFF800000> : vector<16xf32>
    %202 = vector.multi_reduction <maximumf>, %201, %cst_77 [1] : vector<16x16xf32> to vector<16xf32>
    %203 = vector.shape_cast %202 : vector<16xf32> to vector<16x1xf32>
    %204 = vector.broadcast %203 : vector<16x1xf32> to vector<16x16xf32>
    %205 = arith.subf %201, %204 : vector<16x16xf32>
    %206 = math.exp %205 : vector<16x16xf32>
    %cst_78 = arith.constant dense<0.000000e+00> : vector<16xf32>
    %207 = vector.multi_reduction <add>, %206, %cst_78 [1] : vector<16x16xf32> to vector<16xf32>
    %208 = vector.shape_cast %207 : vector<16xf32> to vector<16x1xf32>
    %209 = tpu.reciprocal %208 {approx = true} : vector<16x1xf32> -> vector<16x1xf32>
    %210 = vector.broadcast %209 : vector<16x1xf32> to vector<16x16xf32>
    %211 = arith.mulf %206, %210 : vector<16x16xf32>
    %212 = vector.extract_strided_slice %160 {offsets = [0, 64], sizes = [16, 32], strides = [1, 1]} : vector<16x128xf32> to vector<16x32xf32>
    %cst_79 = arith.constant dense<0.000000e+00> : vector<16x32xf32>
    %213 = tpu.matmul %211, %212, %cst_79 {dimension_numbers = #tpu.dot_dimension_numbers<[1], [0], [0], [1], [0, 0, 1, 1], [], []>} : vector<16x16xf32>, vector<16x32xf32>, vector<16x32xf32> -> vector<16x32xf32>
    %214 = arith.addf %197, %213 : vector<16x32xf32>
    %215 = vector.extract_strided_slice %161 {offsets = [0, 24], sizes = [16, 8], strides = [1, 1]} : vector<16x32xf32> to vector<16x8xf32>
    %216 = vector.extract_strided_slice %162 {offsets = [0, 24], sizes = [16, 8], strides = [1, 1]} : vector<16x32xf32> to vector<16x8xf32>
    %cst_80 = arith.constant dense<0.000000e+00> : vector<16x16xf32>
    %217 = tpu.matmul %215, %216, %cst_80 {dimension_numbers = #tpu.dot_dimension_numbers<[1], [1], [0], [0], [0, 0, 1, 0], [], []>} : vector<16x8xf32>, vector<16x8xf32>, vector<16x16xf32> -> vector<16x16xf32>
    %218 = arith.addf %217, %2 : vector<16x16xf32>
    %cst_81 = arith.constant dense<0xFF800000> : vector<16xf32>
    %219 = vector.multi_reduction <maximumf>, %218, %cst_81 [1] : vector<16x16xf32> to vector<16xf32>
    %220 = vector.shape_cast %219 : vector<16xf32> to vector<16x1xf32>
    %221 = vector.broadcast %220 : vector<16x1xf32> to vector<16x16xf32>
    %222 = arith.subf %218, %221 : vector<16x16xf32>
    %223 = math.exp %222 : vector<16x16xf32>
    %cst_82 = arith.constant dense<0.000000e+00> : vector<16xf32>
    %224 = vector.multi_reduction <add>, %223, %cst_82 [1] : vector<16x16xf32> to vector<16xf32>
    %225 = vector.shape_cast %224 : vector<16xf32> to vector<16x1xf32>
    %226 = tpu.reciprocal %225 {approx = true} : vector<16x1xf32> -> vector<16x1xf32>
    %227 = vector.broadcast %226 : vector<16x1xf32> to vector<16x16xf32>
    %228 = arith.mulf %223, %227 : vector<16x16xf32>
    %229 = vector.extract_strided_slice %160 {offsets = [0, 96], sizes = [16, 32], strides = [1, 1]} : vector<16x128xf32> to vector<16x32xf32>
    %cst_83 = arith.constant dense<0.000000e+00> : vector<16x32xf32>
    %230 = tpu.matmul %228, %229, %cst_83 {dimension_numbers = #tpu.dot_dimension_numbers<[1], [0], [0], [1], [0, 0, 1, 1], [], []>} : vector<16x16xf32>, vector<16x32xf32>, vector<16x32xf32> -> vector<16x32xf32>
    %231 = arith.addf %214, %230 : vector<16x32xf32>
    %c9 = arith.constant 9 : index
    %c0_84 = arith.constant 0 : index
    %232 = vector.load %arg4[%c9, %c0_84] : memref<56x128xf32, #tpu.memory_space<vmem>>, vector<1x32xf32>
    %233 = vector.broadcast %232 : vector<1x32xf32> to vector<16x32xf32>
    %234 = arith.addf %231, %233 : vector<16x32xf32>
    %235 = arith.addf %151, %234 : vector<16x32xf32>
    %c10 = arith.constant 10 : index
    %c0_85 = arith.constant 0 : index
    %236 = vector.load %arg4[%c10, %c0_85] : memref<56x128xf32, #tpu.memory_space<vmem>>, vector<1x32xf32>
    %c11 = arith.constant 11 : index
    %c0_86 = arith.constant 0 : index
    %237 = vector.load %arg4[%c11, %c0_86] : memref<56x128xf32, #tpu.memory_space<vmem>>, vector<1x32xf32>
    %cst_87 = arith.constant dense<0.000000e+00> : vector<16xf32>
    %238 = vector.multi_reduction <add>, %235, %cst_87 [1] : vector<16x32xf32> to vector<16xf32>
    %239 = vector.shape_cast %238 : vector<16xf32> to vector<16x1xf32>
    %cst_88 = arith.constant 3.200000e+01 : f32
    %240 = vector.broadcast %cst_88 : f32 to vector<16x1xf32>
    %241 = arith.divf %239, %240 : vector<16x1xf32>
    %242 = vector.broadcast %241 : vector<16x1xf32> to vector<16x32xf32>
    %243 = arith.subf %235, %242 : vector<16x32xf32>
    %244 = arith.mulf %243, %243 : vector<16x32xf32>
    %cst_89 = arith.constant dense<0.000000e+00> : vector<16xf32>
    %245 = vector.multi_reduction <add>, %244, %cst_89 [1] : vector<16x32xf32> to vector<16xf32>
    %246 = vector.shape_cast %245 : vector<16xf32> to vector<16x1xf32>
    %cst_90 = arith.constant 3.200000e+01 : f32
    %247 = vector.broadcast %cst_90 : f32 to vector<16x1xf32>
    %248 = arith.divf %246, %247 : vector<16x1xf32>
    %249 = vector.broadcast %241 : vector<16x1xf32> to vector<16x32xf32>
    %250 = arith.subf %235, %249 : vector<16x32xf32>
    %cst_91 = arith.constant 9.99999974E-6 : f32
    %251 = vector.broadcast %cst_91 : f32 to vector<16x1xf32>
    %252 = arith.addf %248, %251 : vector<16x1xf32>
    %253 = math.rsqrt %252 : vector<16x1xf32>
    %254 = vector.broadcast %253 : vector<16x1xf32> to vector<16x32xf32>
    %255 = arith.mulf %250, %254 : vector<16x32xf32>
    %256 = vector.broadcast %236 : vector<1x32xf32> to vector<16x32xf32>
    %257 = arith.mulf %255, %256 : vector<16x32xf32>
    %258 = vector.broadcast %237 : vector<1x32xf32> to vector<16x32xf32>
    %259 = arith.addf %257, %258 : vector<16x32xf32>
    %c3_92 = arith.constant 3 : index
    %c0_93 = arith.constant 0 : index
    %c0_94 = arith.constant 0 : index
    %260 = vector.load %arg1[%c3_92, %c0_93, %c0_94] : memref<5x32x64xf32, #tpu.memory_space<vmem>>, vector<1x32x64xf32>
    %261 = vector.shape_cast %260 : vector<1x32x64xf32> to vector<32x64xf32>
    %cst_95 = arith.constant dense<0.000000e+00> : vector<16x64xf32>
    %262 = tpu.matmul %259, %261, %cst_95 {dimension_numbers = #tpu.dot_dimension_numbers<[1], [0], [0], [1], [0, 0, 1, 1], [], []>} : vector<16x32xf32>, vector<32x64xf32>, vector<16x64xf32> -> vector<16x64xf32>
    %c12 = arith.constant 12 : index
    %c0_96 = arith.constant 0 : index
    %263 = vector.load %arg4[%c12, %c0_96] : memref<56x128xf32, #tpu.memory_space<vmem>>, vector<1x64xf32>
    %264 = vector.broadcast %263 : vector<1x64xf32> to vector<16x64xf32>
    %265 = arith.addf %262, %264 : vector<16x64xf32>
    %cst_97 = arith.constant 0.000000e+00 : f32
    %266 = vector.broadcast %cst_97 : f32 to vector<16x64xf32>
    %267 = arith.maximumf %265, %266 : vector<16x64xf32>
    %c1_98 = arith.constant 1 : index
    %c0_99 = arith.constant 0 : index
    %c0_100 = arith.constant 0 : index
    %268 = vector.load %arg3[%c1_98, %c0_99, %c0_100] : memref<2x64x32xf32, #tpu.memory_space<vmem>>, vector<1x64x32xf32>
    %269 = vector.shape_cast %268 : vector<1x64x32xf32> to vector<64x32xf32>
    %cst_101 = arith.constant dense<0.000000e+00> : vector<16x32xf32>
    %270 = tpu.matmul %267, %269, %cst_101 {dimension_numbers = #tpu.dot_dimension_numbers<[1], [0], [0], [1], [0, 0, 1, 1], [], []>} : vector<16x64xf32>, vector<64x32xf32>, vector<16x32xf32> -> vector<16x32xf32>
    %c13 = arith.constant 13 : index
    %c0_102 = arith.constant 0 : index
    %271 = vector.load %arg4[%c13, %c0_102] : memref<56x128xf32, #tpu.memory_space<vmem>>, vector<1x32xf32>
    %272 = vector.broadcast %271 : vector<1x32xf32> to vector<16x32xf32>
    %273 = arith.addf %270, %272 : vector<16x32xf32>
    %274 = arith.addf %259, %273 : vector<16x32xf32>
    %c14 = arith.constant 14 : index
    %c0_103 = arith.constant 0 : index
    %275 = vector.load %arg4[%c14, %c0_103] : memref<56x128xf32, #tpu.memory_space<vmem>>, vector<1x32xf32>
    %c15 = arith.constant 15 : index
    %c0_104 = arith.constant 0 : index
    %276 = vector.load %arg4[%c15, %c0_104] : memref<56x128xf32, #tpu.memory_space<vmem>>, vector<1x32xf32>
    %cst_105 = arith.constant dense<0.000000e+00> : vector<16xf32>
    %277 = vector.multi_reduction <add>, %274, %cst_105 [1] : vector<16x32xf32> to vector<16xf32>
    %278 = vector.shape_cast %277 : vector<16xf32> to vector<16x1xf32>
    %cst_106 = arith.constant 3.200000e+01 : f32
    %279 = vector.broadcast %cst_106 : f32 to vector<16x1xf32>
    %280 = arith.divf %278, %279 : vector<16x1xf32>
    %281 = vector.broadcast %280 : vector<16x1xf32> to vector<16x32xf32>
    %282 = arith.subf %274, %281 : vector<16x32xf32>
    %283 = arith.mulf %282, %282 : vector<16x32xf32>
    %cst_107 = arith.constant dense<0.000000e+00> : vector<16xf32>
    %284 = vector.multi_reduction <add>, %283, %cst_107 [1] : vector<16x32xf32> to vector<16xf32>
    %285 = vector.shape_cast %284 : vector<16xf32> to vector<16x1xf32>
    %cst_108 = arith.constant 3.200000e+01 : f32
    %286 = vector.broadcast %cst_108 : f32 to vector<16x1xf32>
    %287 = arith.divf %285, %286 : vector<16x1xf32>
    %288 = vector.broadcast %280 : vector<16x1xf32> to vector<16x32xf32>
    %289 = arith.subf %274, %288 : vector<16x32xf32>
    %cst_109 = arith.constant 9.99999974E-6 : f32
    %290 = vector.broadcast %cst_109 : f32 to vector<16x1xf32>
    %291 = arith.addf %287, %290 : vector<16x1xf32>
    %292 = math.rsqrt %291 : vector<16x1xf32>
    %293 = vector.broadcast %292 : vector<16x1xf32> to vector<16x32xf32>
    %294 = arith.mulf %289, %293 : vector<16x32xf32>
    %295 = vector.broadcast %275 : vector<1x32xf32> to vector<16x32xf32>
    %296 = arith.mulf %294, %295 : vector<16x32xf32>
    %297 = vector.broadcast %276 : vector<1x32xf32> to vector<16x32xf32>
    %298 = arith.addf %296, %297 : vector<16x32xf32>
    %c4_110 = arith.constant 4 : index
    %c0_111 = arith.constant 0 : index
    %c0_112 = arith.constant 0 : index
    %299 = vector.load %arg1[%c4_110, %c0_111, %c0_112] : memref<5x32x64xf32, #tpu.memory_space<vmem>>, vector<1x32x64xf32>
    %300 = vector.shape_cast %299 : vector<1x32x64xf32> to vector<32x64xf32>
    %cst_113 = arith.constant dense<0.000000e+00> : vector<16x64xf32>
    %301 = tpu.matmul %1, %300, %cst_113 {dimension_numbers = #tpu.dot_dimension_numbers<[1], [0], [0], [1], [0, 0, 1, 1], [], []>} : vector<16x32xf32>, vector<32x64xf32>, vector<16x64xf32> -> vector<16x64xf32>
    %c16_114 = arith.constant 16 : index
    %c0_115 = arith.constant 0 : index
    %302 = vector.load %arg4[%c16_114, %c0_115] : memref<56x128xf32, #tpu.memory_space<vmem>>, vector<1x64xf32>
    %303 = vector.broadcast %302 : vector<1x64xf32> to vector<16x64xf32>
    %304 = arith.addf %301, %303 : vector<16x64xf32>
    %c4_116 = arith.constant 4 : index
    %c0_117 = arith.constant 0 : index
    %c0_118 = arith.constant 0 : index
    %305 = vector.load %arg1[%c4_116, %c0_117, %c0_118] : memref<5x32x64xf32, #tpu.memory_space<vmem>>, vector<1x32x64xf32>
    %306 = vector.shape_cast %305 : vector<1x32x64xf32> to vector<32x64xf32>
    %cst_119 = arith.constant dense<0.000000e+00> : vector<16x64xf32>
    %307 = tpu.matmul %298, %306, %cst_119 {dimension_numbers = #tpu.dot_dimension_numbers<[1], [0], [0], [1], [0, 0, 1, 1], [], []>} : vector<16x32xf32>, vector<32x64xf32>, vector<16x64xf32> -> vector<16x64xf32>
    %c16_120 = arith.constant 16 : index
    %c0_121 = arith.constant 0 : index
    %308 = vector.load %arg4[%c16_120, %c0_121] : memref<56x128xf32, #tpu.memory_space<vmem>>, vector<1x64xf32>
    %309 = vector.broadcast %308 : vector<1x64xf32> to vector<16x64xf32>
    %310 = arith.addf %307, %309 : vector<16x64xf32>
    %c2_122 = arith.constant 2 : index
    %c0_123 = arith.constant 0 : index
    %c0_124 = arith.constant 0 : index
    %311 = vector.load %arg2[%c2_122, %c0_123, %c0_124] : memref<3x32x128xf32, #tpu.memory_space<vmem>>, vector<1x32x128xf32>
    %312 = vector.shape_cast %311 : vector<1x32x128xf32> to vector<32x128xf32>
    %cst_125 = arith.constant dense<0.000000e+00> : vector<16x128xf32>
    %313 = tpu.matmul %298, %312, %cst_125 {dimension_numbers = #tpu.dot_dimension_numbers<[1], [0], [0], [1], [0, 0, 1, 1], [], []>} : vector<16x32xf32>, vector<32x128xf32>, vector<16x128xf32> -> vector<16x128xf32>
    %314 = vector.extract_strided_slice %304 {offsets = [0, 0], sizes = [16, 32], strides = [1, 1]} : vector<16x64xf32> to vector<16x32xf32>
    %315 = vector.extract_strided_slice %310 {offsets = [0, 32], sizes = [16, 32], strides = [1, 1]} : vector<16x64xf32> to vector<16x32xf32>
    %cst_126 = arith.constant 0.000000e+00 : f32
    %316 = vector.broadcast %cst_126 : f32 to vector<16x32xf32>
    %317 = vector.extract_strided_slice %314 {offsets = [0, 0], sizes = [16, 8], strides = [1, 1]} : vector<16x32xf32> to vector<16x8xf32>
    %318 = vector.extract_strided_slice %315 {offsets = [0, 0], sizes = [16, 8], strides = [1, 1]} : vector<16x32xf32> to vector<16x8xf32>
    %cst_127 = arith.constant dense<0.000000e+00> : vector<16x16xf32>
    %319 = tpu.matmul %317, %318, %cst_127 {dimension_numbers = #tpu.dot_dimension_numbers<[1], [1], [0], [0], [0, 0, 1, 0], [], []>} : vector<16x8xf32>, vector<16x8xf32>, vector<16x16xf32> -> vector<16x16xf32>
    %320 = arith.addf %319, %3 : vector<16x16xf32>
    %cst_128 = arith.constant dense<0xFF800000> : vector<16xf32>
    %321 = vector.multi_reduction <maximumf>, %320, %cst_128 [1] : vector<16x16xf32> to vector<16xf32>
    %322 = vector.shape_cast %321 : vector<16xf32> to vector<16x1xf32>
    %323 = vector.broadcast %322 : vector<16x1xf32> to vector<16x16xf32>
    %324 = arith.subf %320, %323 : vector<16x16xf32>
    %325 = math.exp %324 : vector<16x16xf32>
    %cst_129 = arith.constant dense<0.000000e+00> : vector<16xf32>
    %326 = vector.multi_reduction <add>, %325, %cst_129 [1] : vector<16x16xf32> to vector<16xf32>
    %327 = vector.shape_cast %326 : vector<16xf32> to vector<16x1xf32>
    %328 = tpu.reciprocal %327 {approx = true} : vector<16x1xf32> -> vector<16x1xf32>
    %329 = vector.broadcast %328 : vector<16x1xf32> to vector<16x16xf32>
    %330 = arith.mulf %325, %329 : vector<16x16xf32>
    %331 = vector.extract_strided_slice %313 {offsets = [0, 0], sizes = [16, 32], strides = [1, 1]} : vector<16x128xf32> to vector<16x32xf32>
    %cst_130 = arith.constant dense<0.000000e+00> : vector<16x32xf32>
    %332 = tpu.matmul %330, %331, %cst_130 {dimension_numbers = #tpu.dot_dimension_numbers<[1], [0], [0], [1], [0, 0, 1, 1], [], []>} : vector<16x16xf32>, vector<16x32xf32>, vector<16x32xf32> -> vector<16x32xf32>
    %333 = arith.addf %316, %332 : vector<16x32xf32>
    %334 = vector.extract_strided_slice %314 {offsets = [0, 8], sizes = [16, 8], strides = [1, 1]} : vector<16x32xf32> to vector<16x8xf32>
    %335 = vector.extract_strided_slice %315 {offsets = [0, 8], sizes = [16, 8], strides = [1, 1]} : vector<16x32xf32> to vector<16x8xf32>
    %cst_131 = arith.constant dense<0.000000e+00> : vector<16x16xf32>
    %336 = tpu.matmul %334, %335, %cst_131 {dimension_numbers = #tpu.dot_dimension_numbers<[1], [1], [0], [0], [0, 0, 1, 0], [], []>} : vector<16x8xf32>, vector<16x8xf32>, vector<16x16xf32> -> vector<16x16xf32>
    %337 = arith.addf %336, %3 : vector<16x16xf32>
    %cst_132 = arith.constant dense<0xFF800000> : vector<16xf32>
    %338 = vector.multi_reduction <maximumf>, %337, %cst_132 [1] : vector<16x16xf32> to vector<16xf32>
    %339 = vector.shape_cast %338 : vector<16xf32> to vector<16x1xf32>
    %340 = vector.broadcast %339 : vector<16x1xf32> to vector<16x16xf32>
    %341 = arith.subf %337, %340 : vector<16x16xf32>
    %342 = math.exp %341 : vector<16x16xf32>
    %cst_133 = arith.constant dense<0.000000e+00> : vector<16xf32>
    %343 = vector.multi_reduction <add>, %342, %cst_133 [1] : vector<16x16xf32> to vector<16xf32>
    %344 = vector.shape_cast %343 : vector<16xf32> to vector<16x1xf32>
    %345 = tpu.reciprocal %344 {approx = true} : vector<16x1xf32> -> vector<16x1xf32>
    %346 = vector.broadcast %345 : vector<16x1xf32> to vector<16x16xf32>
    %347 = arith.mulf %342, %346 : vector<16x16xf32>
    %348 = vector.extract_strided_slice %313 {offsets = [0, 32], sizes = [16, 32], strides = [1, 1]} : vector<16x128xf32> to vector<16x32xf32>
    %cst_134 = arith.constant dense<0.000000e+00> : vector<16x32xf32>
    %349 = tpu.matmul %347, %348, %cst_134 {dimension_numbers = #tpu.dot_dimension_numbers<[1], [0], [0], [1], [0, 0, 1, 1], [], []>} : vector<16x16xf32>, vector<16x32xf32>, vector<16x32xf32> -> vector<16x32xf32>
    %350 = arith.addf %333, %349 : vector<16x32xf32>
    %351 = vector.extract_strided_slice %314 {offsets = [0, 16], sizes = [16, 8], strides = [1, 1]} : vector<16x32xf32> to vector<16x8xf32>
    %352 = vector.extract_strided_slice %315 {offsets = [0, 16], sizes = [16, 8], strides = [1, 1]} : vector<16x32xf32> to vector<16x8xf32>
    %cst_135 = arith.constant dense<0.000000e+00> : vector<16x16xf32>
    %353 = tpu.matmul %351, %352, %cst_135 {dimension_numbers = #tpu.dot_dimension_numbers<[1], [1], [0], [0], [0, 0, 1, 0], [], []>} : vector<16x8xf32>, vector<16x8xf32>, vector<16x16xf32> -> vector<16x16xf32>
    %354 = arith.addf %353, %3 : vector<16x16xf32>
    %cst_136 = arith.constant dense<0xFF800000> : vector<16xf32>
    %355 = vector.multi_reduction <maximumf>, %354, %cst_136 [1] : vector<16x16xf32> to vector<16xf32>
    %356 = vector.shape_cast %355 : vector<16xf32> to vector<16x1xf32>
    %357 = vector.broadcast %356 : vector<16x1xf32> to vector<16x16xf32>
    %358 = arith.subf %354, %357 : vector<16x16xf32>
    %359 = math.exp %358 : vector<16x16xf32>
    %cst_137 = arith.constant dense<0.000000e+00> : vector<16xf32>
    %360 = vector.multi_reduction <add>, %359, %cst_137 [1] : vector<16x16xf32> to vector<16xf32>
    %361 = vector.shape_cast %360 : vector<16xf32> to vector<16x1xf32>
    %362 = tpu.reciprocal %361 {approx = true} : vector<16x1xf32> -> vector<16x1xf32>
    %363 = vector.broadcast %362 : vector<16x1xf32> to vector<16x16xf32>
    %364 = arith.mulf %359, %363 : vector<16x16xf32>
    %365 = vector.extract_strided_slice %313 {offsets = [0, 64], sizes = [16, 32], strides = [1, 1]} : vector<16x128xf32> to vector<16x32xf32>
    %cst_138 = arith.constant dense<0.000000e+00> : vector<16x32xf32>
    %366 = tpu.matmul %364, %365, %cst_138 {dimension_numbers = #tpu.dot_dimension_numbers<[1], [0], [0], [1], [0, 0, 1, 1], [], []>} : vector<16x16xf32>, vector<16x32xf32>, vector<16x32xf32> -> vector<16x32xf32>
    %367 = arith.addf %350, %366 : vector<16x32xf32>
    %368 = vector.extract_strided_slice %314 {offsets = [0, 24], sizes = [16, 8], strides = [1, 1]} : vector<16x32xf32> to vector<16x8xf32>
    %369 = vector.extract_strided_slice %315 {offsets = [0, 24], sizes = [16, 8], strides = [1, 1]} : vector<16x32xf32> to vector<16x8xf32>
    %cst_139 = arith.constant dense<0.000000e+00> : vector<16x16xf32>
    %370 = tpu.matmul %368, %369, %cst_139 {dimension_numbers = #tpu.dot_dimension_numbers<[1], [1], [0], [0], [0, 0, 1, 0], [], []>} : vector<16x8xf32>, vector<16x8xf32>, vector<16x16xf32> -> vector<16x16xf32>
    %371 = arith.addf %370, %3 : vector<16x16xf32>
    %cst_140 = arith.constant dense<0xFF800000> : vector<16xf32>
    %372 = vector.multi_reduction <maximumf>, %371, %cst_140 [1] : vector<16x16xf32> to vector<16xf32>
    %373 = vector.shape_cast %372 : vector<16xf32> to vector<16x1xf32>
    %374 = vector.broadcast %373 : vector<16x1xf32> to vector<16x16xf32>
    %375 = arith.subf %371, %374 : vector<16x16xf32>
    %376 = math.exp %375 : vector<16x16xf32>
    %cst_141 = arith.constant dense<0.000000e+00> : vector<16xf32>
    %377 = vector.multi_reduction <add>, %376, %cst_141 [1] : vector<16x16xf32> to vector<16xf32>
    %378 = vector.shape_cast %377 : vector<16xf32> to vector<16x1xf32>
    %379 = tpu.reciprocal %378 {approx = true} : vector<16x1xf32> -> vector<16x1xf32>
    %380 = vector.broadcast %379 : vector<16x1xf32> to vector<16x16xf32>
    %381 = arith.mulf %376, %380 : vector<16x16xf32>
    %382 = vector.extract_strided_slice %313 {offsets = [0, 96], sizes = [16, 32], strides = [1, 1]} : vector<16x128xf32> to vector<16x32xf32>
    %cst_142 = arith.constant dense<0.000000e+00> : vector<16x32xf32>
    %383 = tpu.matmul %381, %382, %cst_142 {dimension_numbers = #tpu.dot_dimension_numbers<[1], [0], [0], [1], [0, 0, 1, 1], [], []>} : vector<16x16xf32>, vector<16x32xf32>, vector<16x32xf32> -> vector<16x32xf32>
    %384 = arith.addf %367, %383 : vector<16x32xf32>
    %c17 = arith.constant 17 : index
    %c0_143 = arith.constant 0 : index
    %385 = vector.load %arg4[%c17, %c0_143] : memref<56x128xf32, #tpu.memory_space<vmem>>, vector<1x32xf32>
    %386 = vector.broadcast %385 : vector<1x32xf32> to vector<16x32xf32>
    %387 = arith.addf %384, %386 : vector<16x32xf32>
    %cst_144 = arith.constant dense<0.000000e+00> : vector<2x32xf32>
    %388 = tpu.matmul %4, %387, %cst_144 {dimension_numbers = #tpu.dot_dimension_numbers<[1], [0], [0], [1], [0, 0, 1, 1], [], []>} : vector<2x16xf32>, vector<16x32xf32>, vector<2x32xf32> -> vector<2x32xf32>
    %c24 = arith.constant 24 : index
    %c0_145 = arith.constant 0 : index
    %389 = vector.load %arg4[%c24, %c0_145] : memref<56x128xf32, #tpu.memory_space<vmem>>, vector<32x128xf32>
    %cst_146 = arith.constant dense<0.000000e+00> : vector<2x128xf32>
    %390 = tpu.matmul %388, %389, %cst_146 {dimension_numbers = #tpu.dot_dimension_numbers<[1], [0], [0], [1], [0, 0, 1, 1], [], []>} : vector<2x32xf32>, vector<32x128xf32>, vector<2x128xf32> -> vector<2x128xf32>
    %c18 = arith.constant 18 : index
    %c0_147 = arith.constant 0 : index
    %391 = vector.load %arg4[%c18, %c0_147] : memref<56x128xf32, #tpu.memory_space<vmem>>, vector<1x128xf32>
    %392 = vector.broadcast %391 : vector<1x128xf32> to vector<2x128xf32>
    %393 = arith.addf %390, %392 : vector<2x128xf32>
    %394 = vector.extract_strided_slice %393 {offsets = [0, 0], sizes = [2, 2], strides = [1, 1]} : vector<2x128xf32> to vector<2x2xf32>
    %c0_148 = arith.constant 0 : index
    %c0_149 = arith.constant 0 : index
    %395 = vector.load %arg5[%c0_148, %c0_149] : memref<2x2xf32, #tpu.memory_space<vmem>>, vector<2x2xf32>
    tpu.vector_store %arg5[%c0_148, %c0_149], %394 {strides = array<i32>} : memref<2x2xf32, #tpu.memory_space<vmem>>, vector<2x2xf32>,
    return
  }
}

</mosaic_0001>

<llo_original>
// kernel: encoder_forward.1
$region0: #{encoder_forward.1}
  #allocation0 [shape = 'u32[]', space=smem, size = 0x4, offset = 0x4, fixed_abs, tag = 'smem constant byte address 0x4 - core index']
  #allocation1 [shape = 'u32[144,128]{1,0:T(1,128)}', space=vmem, size = 0x12000, scoped, tag = 'internal scratch']
  %s0 = inlined_call_operand.vmem [shape: f32[32,64], index: 0, kind: input, shape index: {}]
  %s1 = inlined_call_operand.vmem [shape: f32[5,32,64], index: 1, kind: input, shape index: {}]
  %s2 = inlined_call_operand.vmem [shape: f32[3,32,128], index: 2, kind: input, shape index: {}]
  %s3 = inlined_call_operand.vmem [shape: f32[2,64,32], index: 3, kind: input, shape index: {}]
  %s4 = inlined_call_operand.vmem [shape: f32[56,128], index: 4, kind: input, shape index: {}]
  %s5 = inlined_call_operand.hbm [shape: f32[2,2], index: 5, kind: output, shape index: {}]
  %s6 = sld [smem:[#allocation0]]
  $region30: #{encoder_forward.1} parent=0
    _
  %s8 = ssub.s32 1, %s6
  %s9 = scalar_select 0, %s8, %s6
  $region1: #{encoder_forward.1} parent=0
    #allocation2 [shape = 'u8[1024]{0}', space=vmem, size = 0x400, scoped, tag = 'output window, operand 0, single buffered']
    #allocation3 [shape = 's32[1]{0}', space=sflag, size = 0x4, scoped, tag = 'scoped memory for encoder_forward.1']
    %10 = vsyncpa [#allocation3], 0
    // Predicated region
    $region2: #{encoder_forward.1} parent=1 // pred_check
      _
    $region3: #{encoder_forward.1} parent=1 // pred_check_branch
      %12 = sbr.rel (0) target = $region5
    $region4: #{encoder_forward.1} parent=1 // pred_region
      _
    $region5: #{encoder_forward.1} parent=1 // pred_fallthru
      _
    // Predicated region
    $region6: #{encoder_forward.1} parent=1 // pred_check
      _
    $region7: #{encoder_forward.1} parent=1 // pred_check_branch
      %14 = sbr.rel (0) target = $region9
    $region8: #{encoder_forward.1} parent=1 // pred_region
      _
    $region9: #{encoder_forward.1} parent=1 // pred_fallthru
      _
    // Predicated region
    $region10: #{encoder_forward.1} parent=1 // pred_check
      _
    $region11: #{encoder_forward.1} parent=1 // pred_check_branch
      %16 = sbr.rel (0) target = $region13
    $region12: #{encoder_forward.1} parent=1 // pred_region
      _
    $region13: #{encoder_forward.1} parent=1 // pred_fallthru
      _
    // Predicated region
    $region14: #{encoder_forward.1} parent=1 // pred_check
      _
    $region15: #{encoder_forward.1} parent=1 // pred_check_branch
      %18 = sbr.rel (0) target = $region17
    $region16: #{encoder_forward.1} parent=1 // pred_region
      _
    $region17: #{encoder_forward.1} parent=1 // pred_fallthru
      _
    // Predicated region
    $region18: #{encoder_forward.1} parent=1 // pred_check
      _
    $region19: #{encoder_forward.1} parent=1 // pred_check_branch
      %20 = sbr.rel (0) target = $region21
    $region20: #{encoder_forward.1} parent=1 // pred_region
      _
    $region21: #{encoder_forward.1} parent=1 // pred_fallthru
      _
    %v21 = vld [vmem:[%s0] sm:$0xff]
    %v22 = vld [vmem:[%s0 + $0x8] sm:$0xff]
    %v23 = vld [vmem:[%s0 + $0x10] sm:$0xff]
    %v24 = vld [vmem:[%s0 + $0x18] sm:$0xff]
    %v25 = vld [vmem:[%s0] sm:$0x3]
    %v26 = vld [vmem:[%s1] sm:$0xff]
    %v27 = vld [vmem:[%s1 + $0x8] sm:$0xff]
    %v28 = vld [vmem:[%s1 + $0x10] sm:$0xff]
    %v29 = vld [vmem:[%s1 + $0x18] sm:$0xff]
    %v30 = vld [vmem:[%s4] sm:$0x1]
    %v31 = vlaneseq
    %v32 = vshrl.u32 %v31, 7
    %v33 = vsub.s32 0, %v32
    %v34 = vrot.slane %v30, %v33
    %vm35 = vcmask 261120
    %v37 = vsel %vm35, %v21, 0
    %v40 = vsel %vm35, %v22, 0
    %42 = vmatprep.subr.mxu0 0.0
    %43 = vmatpush1.msra.mxu0 0.0
    %44 = vmatprep.subr.mxu0 0.0
    %45 = vmatpush1.msra.mxu0 0.0
    %46 = vmatprep.subr.mxu0 0.0
    %47 = vmatpush1.msra.mxu0 0.0
    %48 = vmatprep.subr.mxu0 0.0
    %49 = vmatpush1.msra.mxu0 0.0
    %50 = vmatprep.subr.mxu0 0.0
    %51 = vmatpush1.msra.mxu0 0.0
    %52 = vmatprep.subr.mxu0 0.0
    %53 = vmatpush1.msra.mxu0 0.0
    %54 = vmatprep.subr.mxu0 0.0
    %55 = vmatpush1.msra.mxu0 0.0
    %56 = vmatprep.subr.mxu0 0.0
    %57 = vmatpush1.msra.mxu0 0.0
    %58 = vmatprep.subr.mxu0 0.0
    %59 = vmatpush1.msra.mxu0 0.0
    %60 = vmatprep.subr.mxu0 0.0
    %61 = vmatpush1.msra.mxu0 0.0
    %62 = vmatprep.subr.mxu0 0.0
    %63 = vmatpush1.msra.mxu0 0.0
    %64 = vmatprep.subr.mxu0 0.0
    %65 = vmatpush1.msra.mxu0 0.0
    %66 = vmatprep.subr.mxu0 0.0
    %67 = vmatpush1.msra.mxu0 %v29
    %68 = vmatprep.subr.mxu0 0.0
    %69 = vmatpush1.msra.mxu0 %v28
    %70 = vmatprep.subr.mxu0 0.0
    %71 = vmatpush1.msra.mxu0 %v27
    %72 = vmatprep.subr.mxu0 0.0
    %73 = vmatpush1.msra.mxu0 %v26
    %74 = vmatprep.subr.mxu0 0.0
    %75 = vmatpush2.msra.mxu0 0.0
    %76 = vmatprep.subr.mxu0 0.0
    %77 = vmatpush2.msra.mxu0 0.0
    %78 = vmatprep.subr.mxu0 0.0
    %79 = vmatpush2.msra.mxu0 0.0
    %80 = vmatprep.subr.mxu0 0.0
    %81 = vmatpush2.msra.mxu0 0.0
    %82 = vmatprep.subr.mxu0 0.0
    %83 = vmatpush2.msra.mxu0 0.0
    %84 = vmatprep.subr.mxu0 0.0
    %85 = vmatpush2.msra.mxu0 0.0
    %86 = vmatprep.subr.mxu0 0.0
    %87 = vmatpush2.msra.mxu0 0.0
    %88 = vmatprep.subr.mxu0 0.0
    %89 = vmatpush2.msra.mxu0 0.0
    %90 = vmatprep.subr.mxu0 0.0
    %91 = vmatpush2.msra.mxu0 0.0
    %92 = vmatprep.subr.mxu0 0.0
    %93 = vmatpush2.msra.mxu0 0.0
    %94 = vmatprep.subr.mxu0 0.0
    %95 = vmatpush2.msra.mxu0 0.0
    %96 = vmatprep.subr.mxu0 0.0
    %97 = vmatpush2.msra.mxu0 0.0
    %98 = vmatprep.subr.mxu0 0.0
    %99 = vmatpush2.msra.mxu0 0.0
    %100 = vmatprep.subr.mxu0 0.0
    %101 = vmatpush2.msra.mxu0 0.0
    %102 = vmatprep.subr.mxu0 0.0
    %103 = vmatpush2.msra.mxu0 0.0
    %104 = vmatprep.subr.mxu0 0.0
    %105 = vmatpush2.msra.mxu0 0.0
    %106 = vmatprep.mubr.f32.mxu0 0.0
    %107 = vmatmul.mubr.f32.gmra.mxu0 %v37
    %v108 = vpop.f32.mrf.mxu0
    %v109 = vadd.f32 %v34, %v108
    %v110 = vpop.f32.mrf.mxu0
    %111 = vmatprep.mubr.f32.mxu0 0.0
    %112 = vmatmul.mubr.f32.gmra.mxu0 %v40
    %v113 = vpop.f32.mrf.mxu0
    %v114 = vadd.f32 %v34, %v113
    %v115 = vpop.f32.mrf.mxu0
    %116 = vdwg.mxu0
    %v117 = vld [vmem:[%s2] sm:$0xff]
    %v118 = vld [vmem:[%s2 + $0x8] sm:$0xff]
    %v119 = vld [vmem:[%s2 + $0x10] sm:$0xff]
    %v120 = vld [vmem:[%s2 + $0x18] sm:$0xff]
    %121 = vmatprep.subr.mxu0 0.0
    %122 = vmatpush1.msra.mxu0 0.0
    %123 = vmatprep.subr.mxu0 0.0
    %124 = vmatpush1.msra.mxu0 0.0
    %125 = vmatprep.subr.mxu0 0.0
    %126 = vmatpush1.msra.mxu0 0.0
    %127 = vmatprep.subr.mxu0 0.0
    %128 = vmatpush1.msra.mxu0 0.0
    %129 = vmatprep.subr.mxu0 0.0
    %130 = vmatpush1.msra.mxu0 0.0
    %131 = vmatprep.subr.mxu0 0.0
    %132 = vmatpush1.msra.mxu0 0.0
    %133 = vmatprep.subr.mxu0 0.0
    %134 = vmatpush1.msra.mxu0 0.0
    %135 = vmatprep.subr.mxu0 0.0
    %136 = vmatpush1.msra.mxu0 0.0
    %137 = vmatprep.subr.mxu0 0.0
    %138 = vmatpush1.msra.mxu0 0.0
    %139 = vmatprep.subr.mxu0 0.0
    %140 = vmatpush1.msra.mxu0 0.0
    %141 = vmatprep.subr.mxu0 0.0
    %142 = vmatpush1.msra.mxu0 0.0
    %143 = vmatprep.subr.mxu0 0.0
    %144 = vmatpush1.msra.mxu0 0.0
    %145 = vmatprep.subr.mxu0 0.0
    %146 = vmatpush1.msra.mxu0 %v120
    %147 = vmatprep.subr.mxu0 0.0
    %148 = vmatpush1.msra.mxu0 %v119
    %149 = vmatprep.subr.mxu0 0.0
    %150 = vmatpush1.msra.mxu0 %v118
    %151 = vmatprep.subr.mxu0 0.0
    %152 = vmatpush1.msra.mxu0 %v117
    %153 = vmatprep.subr.mxu0 0.0
    %154 = vmatpush2.msra.mxu0 0.0
    %155 = vmatprep.subr.mxu0 0.0
    %156 = vmatpush2.msra.mxu0 0.0
    %157 = vmatprep.subr.mxu0 0.0
    %158 = vmatpush2.msra.mxu0 0.0
    %159 = vmatprep.subr.mxu0 0.0
    %160 = vmatpush2.msra.mxu0 0.0
    %161 = vmatprep.subr.mxu0 0.0
    %162 = vmatpush2.msra.mxu0 0.0
    %163 = vmatprep.subr.mxu0 0.0
    %164 = vmatpush2.msra.mxu0 0.0
    %165 = vmatprep.subr.mxu0 0.0
    %166 = vmatpush2.msra.mxu0 0.0
    %167 = vmatprep.subr.mxu0 0.0
    %168 = vmatpush2.msra.mxu0 0.0
    %169 = vmatprep.subr.mxu0 0.0
    %170 = vmatpush2.msra.mxu0 0.0
    %171 = vmatprep.subr.mxu0 0.0
    %172 = vmatpush2.msra.mxu0 0.0
    %173 = vmatprep.subr.mxu0 0.0
    %174 = vmatpush2.msra.mxu0 0.0
    %175 = vmatprep.subr.mxu0 0.0
    %176 = vmatpush2.msra.mxu0 0.0
    %177 = vmatprep.subr.mxu0 0.0
    %178 = vmatpush2.msra.mxu0 0.0
    %179 = vmatprep.subr.mxu0 0.0
    %180 = vmatpush2.msra.mxu0 0.0
    %181 = vmatprep.subr.mxu0 0.0
    %182 = vmatpush2.msra.mxu0 0.0
    %183 = vmatprep.subr.mxu0 0.0
    %184 = vmatpush2.msra.mxu0 0.0
    %185 = vmatprep.mubr.f32.mxu0 0.0
    %186 = vmatmul.mubr.f32.gmra.mxu0 %v37
    %v187 = vpop.f32.mrf.mxu0
    %v188 = vadd.f32 0.0, %v187
    %v189 = vpop.f32.mrf.mxu0
    %190 = vmatprep.mubr.f32.mxu0 0.0
    %191 = vmatmul.mubr.f32.gmra.mxu0 %v40
    %v192 = vpop.f32.mrf.mxu0
    %v193 = vadd.f32 0.0, %v192
    %v194 = vpop.f32.mrf.mxu0
    %195 = vdwg.mxu0
    %198 = vrot.lane.b32.xlu0 %v109, 96
    %v199 = vpop.permute.xlu0 %198
    %200 = vrot.lane.b32.xlu0 %v114, 96
    %v201 = vpop.permute.xlu0 %200
    %202 = vrot.lane.b32.xlu0 %v21, 96
    %v203 = vpop.permute.xlu0 %202
    %204 = vrot.lane.b32.xlu0 %v22, 96
    %v205 = vpop.permute.xlu0 %204
    %vm208 = vcmask 64512
    %v209 = vsel %vm208, %v109, 0
    %v211 = vsel %vm208, %v114, 0
    %v213 = vsel %vm208, %v199, 0
    %v215 = vsel %vm208, %v201, 0
    %217 = vmatprep.subr.mxu0 0.0
    %218 = vmatpush1.xpose.msra.mxu0 0.0
    %219 = vmatprep.subr.mxu0 0.0
    %220 = vmatpush1.xpose.msra.mxu0 0.0
    %221 = vmatprep.subr.mxu0 0.0
    %222 = vmatpush1.xpose.msra.mxu0 0.0
    %223 = vmatprep.subr.mxu0 0.0
    %224 = vmatpush1.xpose.msra.mxu0 0.0
    %225 = vmatprep.subr.mxu0 0.0
    %226 = vmatpush1.xpose.msra.mxu0 0.0
    %227 = vmatprep.subr.mxu0 0.0
    %228 = vmatpush1.xpose.msra.mxu0 0.0
    %229 = vmatprep.subr.mxu0 0.0
    %230 = vmatpush1.xpose.msra.mxu0 0.0
    %231 = vmatprep.subr.mxu0 0.0
    %232 = vmatpush1.xpose.msra.mxu0 0.0
    %233 = vmatprep.subr.mxu0 0.0
    %234 = vmatpush1.xpose.msra.mxu0 0.0
    %235 = vmatprep.subr.mxu0 0.0
    %236 = vmatpush1.xpose.msra.mxu0 0.0
    %237 = vmatprep.subr.mxu0 0.0
    %238 = vmatpush1.xpose.msra.mxu0 0.0
    %239 = vmatprep.subr.mxu0 0.0
    %240 = vmatpush1.xpose.msra.mxu0 0.0
    %241 = vmatprep.subr.mxu0 0.0
    %242 = vmatpush1.xpose.msra.mxu0 0.0
    %243 = vmatprep.subr.mxu0 0.0
    %244 = vmatpush1.xpose.msra.mxu0 0.0
    %245 = vmatprep.subr.mxu0 0.0
    %246 = vmatpush1.xpose.msra.mxu0 %v215
    %247 = vmatprep.subr.mxu0 0.0
    %248 = vmatpush1.xpose.msra.mxu0 %v213
    %249 = vmatprep.subr.mxu0 0.0
    %250 = vmatpush2.xpose.msra.mxu0 0.0
    %251 = vmatprep.subr.mxu0 0.0
    %252 = vmatpush2.xpose.msra.mxu0 0.0
    %253 = vmatprep.subr.mxu0 0.0
    %254 = vmatpush2.xpose.msra.mxu0 0.0
    %255 = vmatprep.subr.mxu0 0.0
    %256 = vmatpush2.xpose.msra.mxu0 0.0
    %257 = vmatprep.subr.mxu0 0.0
    %258 = vmatpush2.xpose.msra.mxu0 0.0
    %259 = vmatprep.subr.mxu0 0.0
    %260 = vmatpush2.xpose.msra.mxu0 0.0
    %261 = vmatprep.subr.mxu0 0.0
    %262 = vmatpush2.xpose.msra.mxu0 0.0
    %263 = vmatprep.subr.mxu0 0.0
    %264 = vmatpush2.xpose.msra.mxu0 0.0
    %265 = vmatprep.subr.mxu0 0.0
    %266 = vmatpush2.xpose.msra.mxu0 0.0
    %267 = vmatprep.subr.mxu0 0.0
    %268 = vmatpush2.xpose.msra.mxu0 0.0
    %269 = vmatprep.subr.mxu0 0.0
    %270 = vmatpush2.xpose.msra.mxu0 0.0
    %271 = vmatprep.subr.mxu0 0.0
    %272 = vmatpush2.xpose.msra.mxu0 0.0
    %273 = vmatprep.subr.mxu0 0.0
    %274 = vmatpush2.xpose.msra.mxu0 0.0
    %275 = vmatprep.subr.mxu0 0.0
    %276 = vmatpush2.xpose.msra.mxu0 0.0
    %277 = vmatprep.subr.mxu0 0.0
    %278 = vmatpush2.xpose.msra.mxu0 0.0
    %279 = vmatprep.subr.mxu0 0.0
    %280 = vmatpush2.xpose.msra.mxu0 0.0
    %281 = vmatprep.mubr.f32.mxu0 0.0
    %282 = vmatmul.mubr.f32.gmra.mxu0 %v209
    %v283 = vpop.f32.mrf.mxu0
    %v284 = vadd.f32 %v203, %v283
    %v285 = vpop.f32.mrf.mxu0
    %286 = vmatprep.mubr.f32.mxu0 0.0
    %287 = vmatmul.mubr.f32.gmra.mxu0 %v211
    %v288 = vpop.f32.mrf.mxu0
    %v289 = vadd.f32 %v205, %v288
    %v290 = vpop.f32.mrf.mxu0
    %291 = vdwg.mxu0
    %vm292 = vcmask 130048
    %v293 = vsel %vm292, %v284, -inf
    %294 = vmax.xlane.f32.xlu0 %v293
    %v295 = vpop.xlane.xlu0 %294
    %v296 = vsel %vm292, %v289, -inf
    %297 = vmax.xlane.f32.xlu0 %v296
    %v298 = vpop.xlane.xlu0 %297
    %v299 = vsub.f32 %v284, %v295
    %v300 = vsub.f32 %v289, %v298
    %v301 = vmul.f32 %v299, 1.442695
    %v302 = vpow.pop %v301
    %v303 = vmul.f32 %v300, 1.442695
    %v304 = vpow.pop %v303
    %v305 = vsel %vm292, %v302, 0.0
    %306 = vadd.xlane.f32.xlu0 %v305
    %v307 = vpop.xlane.xlu0 %306
    %v308 = vsel %vm292, %v304, 0.0
    %309 = vadd.xlane.f32.xlu0 %v308
    %v310 = vpop.xlane.xlu0 %309
    %v311 = vrcp.pop %v307
    %v312 = vrcp.pop %v310
    %v313 = vmul.f32 %v302, %v311
    %v314 = vmul.f32 %v304, %v312
    %315 = vrot.lane.b32.xlu0 %v109, 120
    %v316 = vpop.permute.xlu0 %315
    %317 = vrot.lane.b32.xlu0 %v114, 120
    %v318 = vpop.permute.xlu0 %317
    %319 = vrot.lane.b32.xlu0 %v109, 88
    %v320 = vpop.permute.xlu0 %319
    %321 = vrot.lane.b32.xlu0 %v114, 88
    %v322 = vpop.permute.xlu0 %321
    %v323 = vsel %vm208, %v316, 0
    %v325 = vsel %vm208, %v318, 0
    %v327 = vsel %vm208, %v320, 0
    %v329 = vsel %vm208, %v322, 0
    %331 = vmatprep.subr.mxu0 0.0
    %332 = vmatpush1.xpose.msra.mxu0 0.0
    %333 = vmatprep.subr.mxu0 0.0
    %334 = vmatpush1.xpose.msra.mxu0 0.0
    %335 = vmatprep.subr.mxu0 0.0
    %336 = vmatpush1.xpose.msra.mxu0 0.0
    %337 = vmatprep.subr.mxu0 0.0
    %338 = vmatpush1.xpose.msra.mxu0 0.0
    %339 = vmatprep.subr.mxu0 0.0
    %340 = vmatpush1.xpose.msra.mxu0 0.0
    %341 = vmatprep.subr.mxu0 0.0
    %342 = vmatpush1.xpose.msra.mxu0 0.0
    %343 = vmatprep.subr.mxu0 0.0
    %344 = vmatpush1.xpose.msra.mxu0 0.0
    %345 = vmatprep.subr.mxu0 0.0
    %346 = vmatpush1.xpose.msra.mxu0 0.0
    %347 = vmatprep.subr.mxu0 0.0
    %348 = vmatpush1.xpose.msra.mxu0 0.0
    %349 = vmatprep.subr.mxu0 0.0
    %350 = vmatpush1.xpose.msra.mxu0 0.0
    %351 = vmatprep.subr.mxu0 0.0
    %352 = vmatpush1.xpose.msra.mxu0 0.0
    %353 = vmatprep.subr.mxu0 0.0
    %354 = vmatpush1.xpose.msra.mxu0 0.0
    %355 = vmatprep.subr.mxu0 0.0
    %356 = vmatpush1.xpose.msra.mxu0 0.0
    %357 = vmatprep.subr.mxu0 0.0
    %358 = vmatpush1.xpose.msra.mxu0 0.0
    %359 = vmatprep.subr.mxu0 0.0
    %360 = vmatpush1.xpose.msra.mxu0 %v329
    %361 = vmatprep.subr.mxu0 0.0
    %362 = vmatpush1.xpose.msra.mxu0 %v327
    %363 = vmatprep.subr.mxu0 0.0
    %364 = vmatpush2.xpose.msra.mxu0 0.0
    %365 = vmatprep.subr.mxu0 0.0
    %366 = vmatpush2.xpose.msra.mxu0 0.0
    %367 = vmatprep.subr.mxu0 0.0
    %368 = vmatpush2.xpose.msra.mxu0 0.0
    %369 = vmatprep.subr.mxu0 0.0
    %370 = vmatpush2.xpose.msra.mxu0 0.0
    %371 = vmatprep.subr.mxu0 0.0
    %372 = vmatpush2.xpose.msra.mxu0 0.0
    %373 = vmatprep.subr.mxu0 0.0
    %374 = vmatpush2.xpose.msra.mxu0 0.0
    %375 = vmatprep.subr.mxu0 0.0
    %376 = vmatpush2.xpose.msra.mxu0 0.0
    %377 = vmatprep.subr.mxu0 0.0
    %378 = vmatpush2.xpose.msra.mxu0 0.0
    %379 = vmatprep.subr.mxu0 0.0
    %380 = vmatpush2.xpose.msra.mxu0 0.0
    %381 = vmatprep.subr.mxu0 0.0
    %382 = vmatpush2.xpose.msra.mxu0 0.0
    %383 = vmatprep.subr.mxu0 0.0
    %384 = vmatpush2.xpose.msra.mxu0 0.0
    %385 = vmatprep.subr.mxu0 0.0
    %386 = vmatpush2.xpose.msra.mxu0 0.0
    %387 = vmatprep.subr.mxu0 0.0
    %388 = vmatpush2.xpose.msra.mxu0 0.0
    %389 = vmatprep.subr.mxu0 0.0
    %390 = vmatpush2.xpose.msra.mxu0 0.0
    %391 = vmatprep.subr.mxu0 0.0
    %392 = vmatpush2.xpose.msra.mxu0 0.0
    %393 = vmatprep.subr.mxu0 0.0
    %394 = vmatpush2.xpose.msra.mxu0 0.0
    %395 = vmatprep.mubr.f32.mxu0 0.0
    %396 = vmatmul.mubr.f32.gmra.mxu0 %v323
    %v397 = vpop.f32.mrf.mxu0
    %v398 = vadd.f32 %v203, %v397
    %v399 = vpop.f32.mrf.mxu0
    %400 = vmatprep.mubr.f32.mxu0 0.0
    %401 = vmatmul.mubr.f32.gmra.mxu0 %v325
    %v402 = vpop.f32.mrf.mxu0
    %v403 = vadd.f32 %v205, %v402
    %v404 = vpop.f32.mrf.mxu0
    %405 = vdwg.mxu0
    %v406 = vsel %vm292, %v398, -inf
    %407 = vmax.xlane.f32.xlu0 %v406
    %v408 = vpop.xlane.xlu0 %407
    %v409 = vsel %vm292, %v403, -inf
    %410 = vmax.xlane.f32.xlu0 %v409
    %v411 = vpop.xlane.xlu0 %410
    %v412 = vsub.f32 %v398, %v408
    %v413 = vsub.f32 %v403, %v411
    %v414 = vmul.f32 %v412, 1.442695
    %v415 = vpow.pop %v414
    %v416 = vmul.f32 %v413, 1.442695
    %v417 = vpow.pop %v416
    %v418 = vsel %vm292, %v415, 0.0
    %419 = vadd.xlane.f32.xlu0 %v418
    %v420 = vpop.xlane.xlu0 %419
    %v421 = vsel %vm292, %v417, 0.0
    %422 = vadd.xlane.f32.xlu0 %v421
    %v423 = vpop.xlane.xlu0 %422
    %v424 = vrcp.pop %v420
    %v425 = vrcp.pop %v423
    %v426 = vmul.f32 %v415, %v424
    %v427 = vmul.f32 %v417, %v425
    %430 = vrot.lane.b32.xlu0 %v188, 96
    %v431 = vpop.permute.xlu0 %430
    %432 = vrot.lane.b32.xlu0 %v193, 96
    %v433 = vpop.permute.xlu0 %432
    %v437 = vsel %vm292, %v426, 0
    %v440 = vsel %vm292, %v427, 0
    %442 = vmatprep.subr.mxu0 0.0
    %443 = vmatpush1.msra.mxu0 0.0
    %444 = vmatprep.subr.mxu0 0.0
    %445 = vmatpush1.msra.mxu0 0.0
    %446 = vmatprep.subr.mxu0 0.0
    %447 = vmatpush1.msra.mxu0 0.0
    %448 = vmatprep.subr.mxu0 0.0
    %449 = vmatpush1.msra.mxu0 0.0
    %450 = vmatprep.subr.mxu0 0.0
    %451 = vmatpush1.msra.mxu0 0.0
    %452 = vmatprep.subr.mxu0 0.0
    %453 = vmatpush1.msra.mxu0 0.0
    %454 = vmatprep.subr.mxu0 0.0
    %455 = vmatpush1.msra.mxu0 0.0
    %456 = vmatprep.subr.mxu0 0.0
    %457 = vmatpush1.msra.mxu0 0.0
    %458 = vmatprep.subr.mxu0 0.0
    %459 = vmatpush1.msra.mxu0 0.0
    %460 = vmatprep.subr.mxu0 0.0
    %461 = vmatpush1.msra.mxu0 0.0
    %462 = vmatprep.subr.mxu0 0.0
    %463 = vmatpush1.msra.mxu0 0.0
    %464 = vmatprep.subr.mxu0 0.0
    %465 = vmatpush1.msra.mxu0 0.0
    %466 = vmatprep.subr.mxu0 0.0
    %467 = vmatpush1.msra.mxu0 0.0
    %468 = vmatprep.subr.mxu0 0.0
    %469 = vmatpush1.msra.mxu0 0.0
    %470 = vmatprep.subr.mxu0 0.0
    %471 = vmatpush1.msra.mxu0 %v433
    %472 = vmatprep.subr.mxu0 0.0
    %473 = vmatpush1.msra.mxu0 %v431
    %474 = vmatprep.subr.mxu0 0.0
    %475 = vmatpush2.msra.mxu0 0.0
    %476 = vmatprep.subr.mxu0 0.0
    %477 = vmatpush2.msra.mxu0 0.0
    %478 = vmatprep.subr.mxu0 0.0
    %479 = vmatpush2.msra.mxu0 0.0
    %480 = vmatprep.subr.mxu0 0.0
    %481 = vmatpush2.msra.mxu0 0.0
    %482 = vmatprep.subr.mxu0 0.0
    %483 = vmatpush2.msra.mxu0 0.0
    %484 = vmatprep.subr.mxu0 0.0
    %485 = vmatpush2.msra.mxu0 0.0
    %486 = vmatprep.subr.mxu0 0.0
    %487 = vmatpush2.msra.mxu0 0.0
    %488 = vmatprep.subr.mxu0 0.0
    %489 = vmatpush2.msra.mxu0 0.0
    %490 = vmatprep.subr.mxu0 0.0
    %491 = vmatpush2.msra.mxu0 0.0
    %492 = vmatprep.subr.mxu0 0.0
    %493 = vmatpush2.msra.mxu0 0.0
    %494 = vmatprep.subr.mxu0 0.0
    %495 = vmatpush2.msra.mxu0 0.0
    %496 = vmatprep.subr.mxu0 0.0
    %497 = vmatpush2.msra.mxu0 0.0
    %498 = vmatprep.subr.mxu0 0.0
    %499 = vmatpush2.msra.mxu0 0.0
    %500 = vmatprep.subr.mxu0 0.0
    %501 = vmatpush2.msra.mxu0 0.0
    %502 = vmatprep.subr.mxu0 0.0
    %503 = vmatpush2.msra.mxu0 0.0
    %504 = vmatprep.subr.mxu0 0.0
    %505 = vmatpush2.msra.mxu0 0.0
    %506 = vmatprep.mubr.f32.mxu0 0.0
    %507 = vmatmul.mubr.f32.gmra.mxu0 %v437
    %v508 = vpop.f32.mrf.mxu0
    %v509 = vadd.f32 0.0, %v508
    %v510 = vpop.f32.mrf.mxu0
    %511 = vmatprep.mubr.f32.mxu0 0.0
    %512 = vmatmul.mubr.f32.gmra.mxu0 %v440
    %v513 = vpop.f32.mrf.mxu0
    %v514 = vadd.f32 0.0, %v513
    %v515 = vpop.f32.mrf.mxu0
    %516 = vdwg.mxu0
    %v518 = vsel %vm292, %v313, 0
    %v521 = vsel %vm292, %v314, 0
    %523 = vmatprep.subr.mxu0 0.0
    %524 = vmatpush1.msra.mxu0 0.0
    %525 = vmatprep.subr.mxu0 0.0
    %526 = vmatpush1.msra.mxu0 0.0
    %527 = vmatprep.subr.mxu0 0.0
    %528 = vmatpush1.msra.mxu0 0.0
    %529 = vmatprep.subr.mxu0 0.0
    %530 = vmatpush1.msra.mxu0 0.0
    %531 = vmatprep.subr.mxu0 0.0
    %532 = vmatpush1.msra.mxu0 0.0
    %533 = vmatprep.subr.mxu0 0.0
    %534 = vmatpush1.msra.mxu0 0.0
    %535 = vmatprep.subr.mxu0 0.0
    %536 = vmatpush1.msra.mxu0 0.0
    %537 = vmatprep.subr.mxu0 0.0
    %538 = vmatpush1.msra.mxu0 0.0
    %539 = vmatprep.subr.mxu0 0.0
    %540 = vmatpush1.msra.mxu0 0.0
    %541 = vmatprep.subr.mxu0 0.0
    %542 = vmatpush1.msra.mxu0 0.0
    %543 = vmatprep.subr.mxu0 0.0
    %544 = vmatpush1.msra.mxu0 0.0
    %545 = vmatprep.subr.mxu0 0.0
    %546 = vmatpush1.msra.mxu0 0.0
    %547 = vmatprep.subr.mxu0 0.0
    %548 = vmatpush1.msra.mxu0 0.0
    %549 = vmatprep.subr.mxu0 0.0
    %550 = vmatpush1.msra.mxu0 0.0
    %551 = vmatprep.subr.mxu0 0.0
    %552 = vmatpush1.msra.mxu0 %v193
    %553 = vmatprep.subr.mxu0 0.0
    %554 = vmatpush1.msra.mxu0 %v188
    %555 = vmatprep.subr.mxu0 0.0
    %556 = vmatpush2.msra.mxu0 0.0
    %557 = vmatprep.subr.mxu0 0.0
    %558 = vmatpush2.msra.mxu0 0.0
    %559 = vmatprep.subr.mxu0 0.0
    %560 = vmatpush2.msra.mxu0 0.0
    %561 = vmatprep.subr.mxu0 0.0
    %562 = vmatpush2.msra.mxu0 0.0
    %563 = vmatprep.subr.mxu0 0.0
    %564 = vmatpush2.msra.mxu0 0.0
    %565 = vmatprep.subr.mxu0 0.0
    %566 = vmatpush2.msra.mxu0 0.0
    %567 = vmatprep.subr.mxu0 0.0
    %568 = vmatpush2.msra.mxu0 0.0
    %569 = vmatprep.subr.mxu0 0.0
    %570 = vmatpush2.msra.mxu0 0.0
    %571 = vmatprep.subr.mxu0 0.0
    %572 = vmatpush2.msra.mxu0 0.0
    %573 = vmatprep.subr.mxu0 0.0
    %574 = vmatpush2.msra.mxu0 0.0
    %575 = vmatprep.subr.mxu0 0.0
    %576 = vmatpush2.msra.mxu0 0.0
    %577 = vmatprep.subr.mxu0 0.0
    %578 = vmatpush2.msra.mxu0 0.0
    %579 = vmatprep.subr.mxu0 0.0
    %580 = vmatpush2.msra.mxu0 0.0
    %581 = vmatprep.subr.mxu0 0.0
    %582 = vmatpush2.msra.mxu0 0.0
    %583 = vmatprep.subr.mxu0 0.0
    %584 = vmatpush2.msra.mxu0 0.0
    %585 = vmatprep.subr.mxu0 0.0
    %586 = vmatpush2.msra.mxu0 0.0
    %587 = vmatprep.mubr.f32.mxu0 0.0
    %588 = vmatmul.mubr.f32.gmra.mxu0 %v518
    %v589 = vpop.f32.mrf.mxu0
    %v590 = vadd.f32 %v509, %v589
    %v591 = vpop.f32.mrf.mxu0
    %592 = vmatprep.mubr.f32.mxu0 0.0
    %593 = vmatmul.mubr.f32.gmra.mxu0 %v521
    %v594 = vpop.f32.mrf.mxu0
    %v595 = vadd.f32 %v514, %v594
    %v596 = vpop.f32.mrf.mxu0
    %597 = vdwg.mxu0
    %598 = vrot.lane.b32.xlu0 %v109, 112
    %v599 = vpop.permute.xlu0 %598
    %600 = vrot.lane.b32.xlu0 %v114, 112
    %v601 = vpop.permute.xlu0 %600
    %602 = vrot.lane.b32.xlu0 %v109, 80
    %v603 = vpop.permute.xlu0 %602
    %604 = vrot.lane.b32.xlu0 %v114, 80
    %v605 = vpop.permute.xlu0 %604
    %v606 = vsel %vm208, %v599, 0
    %v608 = vsel %vm208, %v601, 0
    %v610 = vsel %vm208, %v603, 0
    %v612 = vsel %vm208, %v605, 0
    %614 = vmatprep.subr.mxu0 0.0
    %615 = vmatpush1.xpose.msra.mxu0 0.0
    %616 = vmatprep.subr.mxu0 0.0
    %617 = vmatpush1.xpose.msra.mxu0 0.0
    %618 = vmatprep.subr.mxu0 0.0
    %619 = vmatpush1.xpose.msra.mxu0 0.0
    %620 = vmatprep.subr.mxu0 0.0
    %621 = vmatpush1.xpose.msra.mxu0 0.0
    %622 = vmatprep.subr.mxu0 0.0
    %623 = vmatpush1.xpose.msra.mxu0 0.0
    %624 = vmatprep.subr.mxu0 0.0
    %625 = vmatpush1.xpose.msra.mxu0 0.0
    %626 = vmatprep.subr.mxu0 0.0
    %627 = vmatpush1.xpose.msra.mxu0 0.0
    %628 = vmatprep.subr.mxu0 0.0
    %629 = vmatpush1.xpose.msra.mxu0 0.0
    %630 = vmatprep.subr.mxu0 0.0
    %631 = vmatpush1.xpose.msra.mxu0 0.0
    %632 = vmatprep.subr.mxu0 0.0
    %633 = vmatpush1.xpose.msra.mxu0 0.0
    %634 = vmatprep.subr.mxu0 0.0
    %635 = vmatpush1.xpose.msra.mxu0 0.0
    %636 = vmatprep.subr.mxu0 0.0
    %637 = vmatpush1.xpose.msra.mxu0 0.0
    %638 = vmatprep.subr.mxu0 0.0
    %639 = vmatpush1.xpose.msra.mxu0 0.0
    %640 = vmatprep.subr.mxu0 0.0
    %641 = vmatpush1.xpose.msra.mxu0 0.0
    %642 = vmatprep.subr.mxu0 0.0
    %643 = vmatpush1.xpose.msra.mxu0 %v612
    %644 = vmatprep.subr.mxu0 0.0
    %645 = vmatpush1.xpose.msra.mxu0 %v610
    %646 = vmatprep.subr.mxu0 0.0
    %647 = vmatpush2.xpose.msra.mxu0 0.0
    %648 = vmatprep.subr.mxu0 0.0
    %649 = vmatpush2.xpose.msra.mxu0 0.0
    %650 = vmatprep.subr.mxu0 0.0
    %651 = vmatpush2.xpose.msra.mxu0 0.0
    %652 = vmatprep.subr.mxu0 0.0
    %653 = vmatpush2.xpose.msra.mxu0 0.0
    %654 = vmatprep.subr.mxu0 0.0
    %655 = vmatpush2.xpose.msra.mxu0 0.0
    %656 = vmatprep.subr.mxu0 0.0
    %657 = vmatpush2.xpose.msra.mxu0 0.0
    %658 = vmatprep.subr.mxu0 0.0
    %659 = vmatpush2.xpose.msra.mxu0 0.0
    %660 = vmatprep.subr.mxu0 0.0
    %661 = vmatpush2.xpose.msra.mxu0 0.0
    %662 = vmatprep.subr.mxu0 0.0
    %663 = vmatpush2.xpose.msra.mxu0 0.0
    %664 = vmatprep.subr.mxu0 0.0
    %665 = vmatpush2.xpose.msra.mxu0 0.0
    %666 = vmatprep.subr.mxu0 0.0
    %667 = vmatpush2.xpose.msra.mxu0 0.0
    %668 = vmatprep.subr.mxu0 0.0
    %669 = vmatpush2.xpose.msra.mxu0 0.0
    %670 = vmatprep.subr.mxu0 0.0
    %671 = vmatpush2.xpose.msra.mxu0 0.0
    %672 = vmatprep.subr.mxu0 0.0
    %673 = vmatpush2.xpose.msra.mxu0 0.0
    %674 = vmatprep.subr.mxu0 0.0
    %675 = vmatpush2.xpose.msra.mxu0 0.0
    %676 = vmatprep.subr.mxu0 0.0
    %677 = vmatpush2.xpose.msra.mxu0 0.0
    %678 = vmatprep.mubr.f32.mxu0 0.0
    %679 = vmatmul.mubr.f32.gmra.mxu0 %v606
    %v680 = vpop.f32.mrf.mxu0
    %v681 = vadd.f32 %v203, %v680
    %v682 = vpop.f32.mrf.mxu0
    %683 = vmatprep.mubr.f32.mxu0 0.0
    %684 = vmatmul.mubr.f32.gmra.mxu0 %v608
    %v685 = vpop.f32.mrf.mxu0
    %v686 = vadd.f32 %v205, %v685
    %v687 = vpop.f32.mrf.mxu0
    %688 = vdwg.mxu0
    %v689 = vsel %vm292, %v681, -inf
    %690 = vmax.xlane.f32.xlu0 %v689
    %v691 = vpop.xlane.xlu0 %690
    %v692 = vsel %vm292, %v686, -inf
    %693 = vmax.xlane.f32.xlu0 %v692
    %v694 = vpop.xlane.xlu0 %693
    %v695 = vsub.f32 %v681, %v691
    %v696 = vsub.f32 %v686, %v694
    %v697 = vmul.f32 %v695, 1.442695
    %v698 = vpow.pop %v697
    %v699 = vmul.f32 %v696, 1.442695
    %v700 = vpow.pop %v699
    %v701 = vsel %vm292, %v698, 0.0
    %702 = vadd.xlane.f32.xlu0 %v701
    %v703 = vpop.xlane.xlu0 %702
    %v704 = vsel %vm292, %v700, 0.0
    %705 = vadd.xlane.f32.xlu0 %v704
    %v706 = vpop.xlane.xlu0 %705
    %v707 = vrcp.pop %v703
    %v708 = vrcp.pop %v706
    %v709 = vmul.f32 %v698, %v707
    %v710 = vmul.f32 %v700, %v708
    %711 = vrot.lane.b32.xlu0 %v188, 64
    %v712 = vpop.permute.xlu0 %711
    %713 = vrot.lane.b32.xlu0 %v193, 64
    %v714 = vpop.permute.xlu0 %713
    %v718 = vsel %vm292, %v709, 0
    %v721 = vsel %vm292, %v710, 0
    %723 = vmatprep.subr.mxu0 0.0
    %724 = vmatpush1.msra.mxu0 0.0
    %725 = vmatprep.subr.mxu0 0.0
    %726 = vmatpush1.msra.mxu0 0.0
    %727 = vmatprep.subr.mxu0 0.0
    %728 = vmatpush1.msra.mxu0 0.0
    %729 = vmatprep.subr.mxu0 0.0
    %730 = vmatpush1.msra.mxu0 0.0
    %731 = vmatprep.subr.mxu0 0.0
    %732 = vmatpush1.msra.mxu0 0.0
    %733 = vmatprep.subr.mxu0 0.0
    %734 = vmatpush1.msra.mxu0 0.0
    %735 = vmatprep.subr.mxu0 0.0
    %736 = vmatpush1.msra.mxu0 0.0
    %737 = vmatprep.subr.mxu0 0.0
    %738 = vmatpush1.msra.mxu0 0.0
    %739 = vmatprep.subr.mxu0 0.0
    %740 = vmatpush1.msra.mxu0 0.0
    %741 = vmatprep.subr.mxu0 0.0
    %742 = vmatpush1.msra.mxu0 0.0
    %743 = vmatprep.subr.mxu0 0.0
    %744 = vmatpush1.msra.mxu0 0.0
    %745 = vmatprep.subr.mxu0 0.0
    %746 = vmatpush1.msra.mxu0 0.0
    %747 = vmatprep.subr.mxu0 0.0
    %748 = vmatpush1.msra.mxu0 0.0
    %749 = vmatprep.subr.mxu0 0.0
    %750 = vmatpush1.msra.mxu0 0.0
    %751 = vmatprep.subr.mxu0 0.0
    %752 = vmatpush1.msra.mxu0 %v714
    %753 = vmatprep.subr.mxu0 0.0
    %754 = vmatpush1.msra.mxu0 %v712
    %755 = vmatprep.subr.mxu0 0.0
    %756 = vmatpush2.msra.mxu0 0.0
    %757 = vmatprep.subr.mxu0 0.0
    %758 = vmatpush2.msra.mxu0 0.0
    %759 = vmatprep.subr.mxu0 0.0
    %760 = vmatpush2.msra.mxu0 0.0
    %761 = vmatprep.subr.mxu0 0.0
    %762 = vmatpush2.msra.mxu0 0.0
    %763 = vmatprep.subr.mxu0 0.0
    %764 = vmatpush2.msra.mxu0 0.0
    %765 = vmatprep.subr.mxu0 0.0
    %766 = vmatpush2.msra.mxu0 0.0
    %767 = vmatprep.subr.mxu0 0.0
    %768 = vmatpush2.msra.mxu0 0.0
    %769 = vmatprep.subr.mxu0 0.0
    %770 = vmatpush2.msra.mxu0 0.0
    %771 = vmatprep.subr.mxu0 0.0
    %772 = vmatpush2.msra.mxu0 0.0
    %773 = vmatprep.subr.mxu0 0.0
    %774 = vmatpush2.msra.mxu0 0.0
    %775 = vmatprep.subr.mxu0 0.0
    %776 = vmatpush2.msra.mxu0 0.0
    %777 = vmatprep.subr.mxu0 0.0
    %778 = vmatpush2.msra.mxu0 0.0
    %779 = vmatprep.subr.mxu0 0.0
    %780 = vmatpush2.msra.mxu0 0.0
    %781 = vmatprep.subr.mxu0 0.0
    %782 = vmatpush2.msra.mxu0 0.0
    %783 = vmatprep.subr.mxu0 0.0
    %784 = vmatpush2.msra.mxu0 0.0
    %785 = vmatprep.subr.mxu0 0.0
    %786 = vmatpush2.msra.mxu0 0.0
    %787 = vmatprep.mubr.f32.mxu0 0.0
    %788 = vmatmul.mubr.f32.gmra.mxu0 %v718
    %v789 = vpop.f32.mrf.mxu0
    %v790 = vadd.f32 0.0, %v789
    %v791 = vpop.f32.mrf.mxu0
    %792 = vmatprep.mubr.f32.mxu0 0.0
    %793 = vmatmul.mubr.f32.gmra.mxu0 %v721
    %v794 = vpop.f32.mrf.mxu0
    %v795 = vadd.f32 0.0, %v794
    %v796 = vpop.f32.mrf.mxu0
    %797 = vdwg.mxu0
    %v798 = vadd.f32 %v590, %v790
    %v799 = vadd.f32 %v595, %v795
    %800 = vrot.lane.b32.xlu0 %v109, 104
    %v801 = vpop.permute.xlu0 %800
    %802 = vrot.lane.b32.xlu0 %v114, 104
    %v803 = vpop.permute.xlu0 %802
    %804 = vrot.lane.b32.xlu0 %v109, 72
    %v805 = vpop.permute.xlu0 %804
    %806 = vrot.lane.b32.xlu0 %v114, 72
    %v807 = vpop.permute.xlu0 %806
    %v808 = vsel %vm208, %v801, 0
    %v810 = vsel %vm208, %v803, 0
    %v812 = vsel %vm208, %v805, 0
    %v814 = vsel %vm208, %v807, 0
    %816 = vmatprep.subr.mxu0 0.0
    %817 = vmatpush1.xpose.msra.mxu0 0.0
    %818 = vmatprep.subr.mxu0 0.0
    %819 = vmatpush1.xpose.msra.mxu0 0.0
    %820 = vmatprep.subr.mxu0 0.0
    %821 = vmatpush1.xpose.msra.mxu0 0.0
    %822 = vmatprep.subr.mxu0 0.0
    %823 = vmatpush1.xpose.msra.mxu0 0.0
    %824 = vmatprep.subr.mxu0 0.0
    %825 = vmatpush1.xpose.msra.mxu0 0.0
    %826 = vmatprep.subr.mxu0 0.0
    %827 = vmatpush1.xpose.msra.mxu0 0.0
    %828 = vmatprep.subr.mxu0 0.0
    %829 = vmatpush1.xpose.msra.mxu0 0.0
    %830 = vmatprep.subr.mxu0 0.0
    %831 = vmatpush1.xpose.msra.mxu0 0.0
    %832 = vmatprep.subr.mxu0 0.0
    %833 = vmatpush1.xpose.msra.mxu0 0.0
    %834 = vmatprep.subr.mxu0 0.0
    %835 = vmatpush1.xpose.msra.mxu0 0.0
    %836 = vmatprep.subr.mxu0 0.0
    %837 = vmatpush1.xpose.msra.mxu0 0.0
    %838 = vmatprep.subr.mxu0 0.0
    %839 = vmatpush1.xpose.msra.mxu0 0.0
    %840 = vmatprep.subr.mxu0 0.0
    %841 = vmatpush1.xpose.msra.mxu0 0.0
    %842 = vmatprep.subr.mxu0 0.0
    %843 = vmatpush1.xpose.msra.mxu0 0.0
    %844 = vmatprep.subr.mxu0 0.0
    %845 = vmatpush1.xpose.msra.mxu0 %v814
    %846 = vmatprep.subr.mxu0 0.0
    %847 = vmatpush1.xpose.msra.mxu0 %v812
    %848 = vmatprep.subr.mxu0 0.0
    %849 = vmatpush2.xpose.msra.mxu0 0.0
    %850 = vmatprep.subr.mxu0 0.0
    %851 = vmatpush2.xpose.msra.mxu0 0.0
    %852 = vmatprep.subr.mxu0 0.0
    %853 = vmatpush2.xpose.msra.mxu0 0.0
    %854 = vmatprep.subr.mxu0 0.0
    %855 = vmatpush2.xpose.msra.mxu0 0.0
    %856 = vmatprep.subr.mxu0 0.0
    %857 = vmatpush2.xpose.msra.mxu0 0.0
    %858 = vmatprep.subr.mxu0 0.0
    %859 = vmatpush2.xpose.msra.mxu0 0.0
    %860 = vmatprep.subr.mxu0 0.0
    %861 = vmatpush2.xpose.msra.mxu0 0.0
    %862 = vmatprep.subr.mxu0 0.0
    %863 = vmatpush2.xpose.msra.mxu0 0.0
    %864 = vmatprep.subr.mxu0 0.0
    %865 = vmatpush2.xpose.msra.mxu0 0.0
    %866 = vmatprep.subr.mxu0 0.0
    %867 = vmatpush2.xpose.msra.mxu0 0.0
    %868 = vmatprep.subr.mxu0 0.0
    %869 = vmatpush2.xpose.msra.mxu0 0.0
    %870 = vmatprep.subr.mxu0 0.0
    %871 = vmatpush2.xpose.msra.mxu0 0.0
    %872 = vmatprep.subr.mxu0 0.0
    %873 = vmatpush2.xpose.msra.mxu0 0.0
    %874 = vmatprep.subr.mxu0 0.0
    %875 = vmatpush2.xpose.msra.mxu0 0.0
    %876 = vmatprep.subr.mxu0 0.0
    %877 = vmatpush2.xpose.msra.mxu0 0.0
    %878 = vmatprep.subr.mxu0 0.0
    %879 = vmatpush2.xpose.msra.mxu0 0.0
    %880 = vmatprep.mubr.f32.mxu0 0.0
    %881 = vmatmul.mubr.f32.gmra.mxu0 %v808
    %v882 = vpop.f32.mrf.mxu0
    %v883 = vadd.f32 %v203, %v882
    %v884 = vpop.f32.mrf.mxu0
    %885 = vmatprep.mubr.f32.mxu0 0.0
    %886 = vmatmul.mubr.f32.gmra.mxu0 %v810
    %v887 = vpop.f32.mrf.mxu0
    %v888 = vadd.f32 %v205, %v887
    %v889 = vpop.f32.mrf.mxu0
    %890 = vdwg.mxu0
    %v891 = vsel %vm292, %v883, -inf
    %892 = vmax.xlane.f32.xlu0 %v891
    %v893 = vpop.xlane.xlu0 %892
    %v894 = vsel %vm292, %v888, -inf
    %895 = vmax.xlane.f32.xlu0 %v894
    %v896 = vpop.xlane.xlu0 %895
    %v897 = vsub.f32 %v883, %v893
    %v898 = vsub.f32 %v888, %v896
    %v899 = vmul.f32 %v897, 1.442695
    %v900 = vpow.pop %v899
    %v901 = vmul.f32 %v898, 1.442695
    %v902 = vpow.pop %v901
    %v903 = vsel %vm292, %v900, 0.0
    %904 = vadd.xlane.f32.xlu0 %v903
    %v905 = vpop.xlane.xlu0 %904
    %v906 = vsel %vm292, %v902, 0.0
    %907 = vadd.xlane.f32.xlu0 %v906
    %v908 = vpop.xlane.xlu0 %907
    %v909 = vrcp.pop %v905
    %v910 = vrcp.pop %v908
    %v911 = vmul.f32 %v900, %v909
    %v912 = vmul.f32 %v902, %v910
    %913 = vrot.lane.b32.xlu0 %v188, 32
    %v914 = vpop.permute.xlu0 %913
    %915 = vrot.lane.b32.xlu0 %v193, 32
    %v916 = vpop.permute.xlu0 %915
    %v920 = vsel %vm292, %v911, 0
    %v923 = vsel %vm292, %v912, 0
    %925 = vmatprep.subr.mxu0 0.0
    %926 = vmatpush1.msra.mxu0 0.0
    %927 = vmatprep.subr.mxu0 0.0
    %928 = vmatpush1.msra.mxu0 0.0
    %929 = vmatprep.subr.mxu0 0.0
    %930 = vmatpush1.msra.mxu0 0.0
    %931 = vmatprep.subr.mxu0 0.0
    %932 = vmatpush1.msra.mxu0 0.0
    %933 = vmatprep.subr.mxu0 0.0
    %934 = vmatpush1.msra.mxu0 0.0
    %935 = vmatprep.subr.mxu0 0.0
    %936 = vmatpush1.msra.mxu0 0.0
    %937 = vmatprep.subr.mxu0 0.0
    %938 = vmatpush1.msra.mxu0 0.0
    %939 = vmatprep.subr.mxu0 0.0
    %940 = vmatpush1.msra.mxu0 0.0
    %941 = vmatprep.subr.mxu0 0.0
    %942 = vmatpush1.msra.mxu0 0.0
    %943 = vmatprep.subr.mxu0 0.0
    %944 = vmatpush1.msra.mxu0 0.0
    %945 = vmatprep.subr.mxu0 0.0
    %946 = vmatpush1.msra.mxu0 0.0
    %947 = vmatprep.subr.mxu0 0.0
    %948 = vmatpush1.msra.mxu0 0.0
    %949 = vmatprep.subr.mxu0 0.0
    %950 = vmatpush1.msra.mxu0 0.0
    %951 = vmatprep.subr.mxu0 0.0
    %952 = vmatpush1.msra.mxu0 0.0
    %953 = vmatprep.subr.mxu0 0.0
    %954 = vmatpush1.msra.mxu0 %v916
    %955 = vmatprep.subr.mxu0 0.0
    %956 = vmatpush1.msra.mxu0 %v914
    %957 = vmatprep.subr.mxu0 0.0
    %958 = vmatpush2.msra.mxu0 0.0
    %959 = vmatprep.subr.mxu0 0.0
    %960 = vmatpush2.msra.mxu0 0.0
    %961 = vmatprep.subr.mxu0 0.0
    %962 = vmatpush2.msra.mxu0 0.0
    %963 = vmatprep.subr.mxu0 0.0
    %964 = vmatpush2.msra.mxu0 0.0
    %965 = vmatprep.subr.mxu0 0.0
    %966 = vmatpush2.msra.mxu0 0.0
    %967 = vmatprep.subr.mxu0 0.0
    %968 = vmatpush2.msra.mxu0 0.0
    %969 = vmatprep.subr.mxu0 0.0
    %970 = vmatpush2.msra.mxu0 0.0
    %971 = vmatprep.subr.mxu0 0.0
    %972 = vmatpush2.msra.mxu0 0.0
    %973 = vmatprep.subr.mxu0 0.0
    %974 = vmatpush2.msra.mxu0 0.0
    %975 = vmatprep.subr.mxu0 0.0
    %976 = vmatpush2.msra.mxu0 0.0
    %977 = vmatprep.subr.mxu0 0.0
    %978 = vmatpush2.msra.mxu0 0.0
    %979 = vmatprep.subr.mxu0 0.0
    %980 = vmatpush2.msra.mxu0 0.0
    %981 = vmatprep.subr.mxu0 0.0
    %982 = vmatpush2.msra.mxu0 0.0
    %983 = vmatprep.subr.mxu0 0.0
    %984 = vmatpush2.msra.mxu0 0.0
    %985 = vmatprep.subr.mxu0 0.0
    %986 = vmatpush2.msra.mxu0 0.0
    %987 = vmatprep.subr.mxu0 0.0
    %988 = vmatpush2.msra.mxu0 0.0
    %989 = vmatprep.mubr.f32.mxu0 0.0
    %990 = vmatmul.mubr.f32.gmra.mxu0 %v920
    %v991 = vpop.f32.mrf.mxu0
    %v992 = vadd.f32 0.0, %v991
    %v993 = vpop.f32.mrf.mxu0
    %994 = vmatprep.mubr.f32.mxu0 0.0
    %995 = vmatmul.mubr.f32.gmra.mxu0 %v923
    %v996 = vpop.f32.mrf.mxu0
    %v997 = vadd.f32 0.0, %v996
    %v998 = vpop.f32.mrf.mxu0
    %999 = vdwg.mxu0
    %v1000 = vadd.f32 %v798, %v992
    %v1001 = vadd.f32 %v799, %v997
    %v1002 = vld [vmem:[%s4 + $0x1] sm:$0x1]
    %v1003 = vlaneseq
    %v1004 = vshrl.u32 %v1003, 7
    %v1005 = vsub.s32 0, %v1004
    %v1006 = vrot.slane %v1002, %v1005
    %v1007 = vadd.f32 %v1000, %v1006
    %v1008 = vadd.f32 %v1001, %v1006
    %v1009 = vadd.f32 %v21, %v1007
    %v1010 = vadd.f32 %v22, %v1008
    %v1011 = vld [vmem:[%s4 + $0x2] sm:$0x1]
    %v1012 = vld [vmem:[%s4 + $0x3] sm:$0x1]
    %v1013 = vsel %vm35, %v1009, 0.0
    %1014 = vadd.xlane.f32.xlu0 %v1013
    %v1015 = vpop.xlane.xlu0 %1014
    %v1016 = vsel %vm35, %v1010, 0.0
    %1017 = vadd.xlane.f32.xlu0 %v1016
    %v1018 = vpop.xlane.xlu0 %1017
    %v1019 = vrcp.pop 32.0
    %v1020 = vmul.f32 %v1015, %v1019
    %v1021 = vmul.f32 %v1018, %v1019
    %v1022 = vsub.f32 %v1009, %v1020
    %v1023 = vsub.f32 %v1010, %v1021
    %v1024 = vmul.f32 %v1022, %v1022
    %v1025 = vmul.f32 %v1023, %v1023
    %v1026 = vsel %vm35, %v1024, 0.0
    %1027 = vadd.xlane.f32.xlu0 %v1026
    %v1028 = vpop.xlane.xlu0 %1027
    %v1029 = vsel %vm35, %v1025, 0.0
    %1030 = vadd.xlane.f32.xlu0 %v1029
    %v1031 = vpop.xlane.xlu0 %1030
    %v1032 = vmul.f32 %v1028, %v1019
    %v1033 = vmul.f32 %v1031, %v1019
    %v1034 = vadd.f32 %v1032, 1e-05
    %v1035 = vadd.f32 %v1033, 1e-05
    %v1036 = vrsqrt.pop %v1034
    %v1037 = vrsqrt.pop %v1035
    %v1038 = vmul.f32 %v1022, %v1036
    %v1039 = vmul.f32 %v1023, %v1037
    %v1040 = vlaneseq
    %v1041 = vshrl.u32 %v1040, 7
    %v1042 = vsub.s32 0, %v1041
    %v1043 = vrot.slane %v1011, %v1042
    %v1044 = vmul.f32 %v1038, %v1043
    %v1045 = vmul.f32 %v1039, %v1043
    %v1046 = vlaneseq
    %v1047 = vshrl.u32 %v1046, 7
    %v1048 = vsub.s32 0, %v1047
    %v1049 = vrot.slane %v1012, %v1048
    %v1050 = vadd.f32 %v1044, %v1049
    %v1051 = vadd.f32 %v1045, %v1049
    %s1052 = scalar_lea.vmem %s1, 64
    %v1053 = vld [vmem:[%s1052] sm:$0xff]
    %v1054 = vld [vmem:[%s1052 + $0x8] sm:$0xff]
    %v1055 = vld [vmem:[%s1052 + $0x10] sm:$0xff]
    %v1056 = vld [vmem:[%s1052 + $0x18] sm:$0xff]
    %v1057 = vld [vmem:[%s4 + $0x4] sm:$0x1]
    %v1058 = vlaneseq
    %v1059 = vshrl.u32 %v1058, 7
    %v1060 = vsub.s32 0, %v1059
    %v1061 = vrot.slane %v1057, %v1060
    %v1063 = vsel %vm35, %v1050, 0
    %v1066 = vsel %vm35, %v1051, 0
    %1068 = vmatprep.subr.mxu0 0.0
    %1069 = vmatpush1.msra.mxu0 0.0
    %1070 = vmatprep.subr.mxu0 0.0
    %1071 = vmatpush1.msra.mxu0 0.0
    %1072 = vmatprep.subr.mxu0 0.0
    %1073 = vmatpush1.msra.mxu0 0.0
    %1074 = vmatprep.subr.mxu0 0.0
    %1075 = vmatpush1.msra.mxu0 0.0
    %1076 = vmatprep.subr.mxu0 0.0
    %1077 = vmatpush1.msra.mxu0 0.0
    %1078 = vmatprep.subr.mxu0 0.0
    %1079 = vmatpush1.msra.mxu0 0.0
    %1080 = vmatprep.subr.mxu0 0.0
    %1081 = vmatpush1.msra.mxu0 0.0
    %1082 = vmatprep.subr.mxu0 0.0
    %1083 = vmatpush1.msra.mxu0 0.0
    %1084 = vmatprep.subr.mxu0 0.0
    %1085 = vmatpush1.msra.mxu0 0.0
    %1086 = vmatprep.subr.mxu0 0.0
    %1087 = vmatpush1.msra.mxu0 0.0
    %1088 = vmatprep.subr.mxu0 0.0
    %1089 = vmatpush1.msra.mxu0 0.0
    %1090 = vmatprep.subr.mxu0 0.0
    %1091 = vmatpush1.msra.mxu0 0.0
    %1092 = vmatprep.subr.mxu0 0.0
    %1093 = vmatpush1.msra.mxu0 %v1056
    %1094 = vmatprep.subr.mxu0 0.0
    %1095 = vmatpush1.msra.mxu0 %v1055
    %1096 = vmatprep.subr.mxu0 0.0
    %1097 = vmatpush1.msra.mxu0 %v1054
    %1098 = vmatprep.subr.mxu0 0.0
    %1099 = vmatpush1.msra.mxu0 %v1053
    %1100 = vmatprep.subr.mxu0 0.0
    %1101 = vmatpush2.msra.mxu0 0.0
    %1102 = vmatprep.subr.mxu0 0.0
    %1103 = vmatpush2.msra.mxu0 0.0
    %1104 = vmatprep.subr.mxu0 0.0
    %1105 = vmatpush2.msra.mxu0 0.0
    %1106 = vmatprep.subr.mxu0 0.0
    %1107 = vmatpush2.msra.mxu0 0.0
    %1108 = vmatprep.subr.mxu0 0.0
    %1109 = vmatpush2.msra.mxu0 0.0
    %1110 = vmatprep.subr.mxu0 0.0
    %1111 = vmatpush2.msra.mxu0 0.0
    %1112 = vmatprep.subr.mxu0 0.0
    %1113 = vmatpush2.msra.mxu0 0.0
    %1114 = vmatprep.subr.mxu0 0.0
    %1115 = vmatpush2.msra.mxu0 0.0
    %1116 = vmatprep.subr.mxu0 0.0
    %1117 = vmatpush2.msra.mxu0 0.0
    %1118 = vmatprep.subr.mxu0 0.0
    %1119 = vmatpush2.msra.mxu0 0.0
    %1120 = vmatprep.subr.mxu0 0.0
    %1121 = vmatpush2.msra.mxu0 0.0
    %1122 = vmatprep.subr.mxu0 0.0
    %1123 = vmatpush2.msra.mxu0 0.0
    %1124 = vmatprep.subr.mxu0 0.0
    %1125 = vmatpush2.msra.mxu0 0.0
    %1126 = vmatprep.subr.mxu0 0.0
    %1127 = vmatpush2.msra.mxu0 0.0
    %1128 = vmatprep.subr.mxu0 0.0
    %1129 = vmatpush2.msra.mxu0 0.0
    %1130 = vmatprep.subr.mxu0 0.0
    %1131 = vmatpush2.msra.mxu0 0.0
    %1132 = vmatprep.mubr.f32.mxu0 0.0
    %1133 = vmatmul.mubr.f32.gmra.mxu0 %v1063
    %v1134 = vpop.f32.mrf.mxu0
    %v1135 = vadd.f32 %v1061, %v1134
    %v1136 = vpop.f32.mrf.mxu0
    %1137 = vmatprep.mubr.f32.mxu0 0.0
    %1138 = vmatmul.mubr.f32.gmra.mxu0 %v1066
    %v1139 = vpop.f32.mrf.mxu0
    %v1140 = vadd.f32 %v1061, %v1139
    %v1141 = vpop.f32.mrf.mxu0
    %1142 = vdwg.mxu0
    %v1143 = vmax.f32 %v1135, 0.0
    %v1144 = vmax.f32 %v1140, 0.0
    %v1145 = vld [vmem:[%s3] sm:$0xff]
    %v1146 = vld [vmem:[%s3 + $0x8] sm:$0xff]
    %v1147 = vld [vmem:[%s3 + $0x10] sm:$0xff]
    %v1148 = vld [vmem:[%s3 + $0x18] sm:$0xff]
    %v1149 = vld [vmem:[%s3 + $0x20] sm:$0xff]
    %v1150 = vld [vmem:[%s3 + $0x28] sm:$0xff]
    %v1151 = vld [vmem:[%s3 + $0x30] sm:$0xff]
    %v1152 = vld [vmem:[%s3 + $0x38] sm:$0xff]
    %v1153 = vld [vmem:[%s4 + $0x5] sm:$0x1]
    %v1154 = vlaneseq
    %v1155 = vshrl.u32 %v1154, 7
    %v1156 = vsub.s32 0, %v1155
    %v1157 = vrot.slane %v1153, %v1156
    %vm1158 = vcmask 523264
    %v1160 = vsel %vm1158, %v1143, 0
    %v1163 = vsel %vm1158, %v1144, 0
    %1165 = vmatprep.subr.mxu0 0.0
    %1166 = vmatpush1.msra.mxu0 0.0
    %1167 = vmatprep.subr.mxu0 0.0
    %1168 = vmatpush1.msra.mxu0 0.0
    %1169 = vmatprep.subr.mxu0 0.0
    %1170 = vmatpush1.msra.mxu0 0.0
    %1171 = vmatprep.subr.mxu0 0.0
    %1172 = vmatpush1.msra.mxu0 0.0
    %1173 = vmatprep.subr.mxu0 0.0
    %1174 = vmatpush1.msra.mxu0 0.0
    %1175 = vmatprep.subr.mxu0 0.0
    %1176 = vmatpush1.msra.mxu0 0.0
    %1177 = vmatprep.subr.mxu0 0.0
    %1178 = vmatpush1.msra.mxu0 0.0
    %1179 = vmatprep.subr.mxu0 0.0
    %1180 = vmatpush1.msra.mxu0 0.0
    %1181 = vmatprep.subr.mxu0 0.0
    %1182 = vmatpush1.msra.mxu0 %v1152
    %1183 = vmatprep.subr.mxu0 0.0
    %1184 = vmatpush1.msra.mxu0 %v1151
    %1185 = vmatprep.subr.mxu0 0.0
    %1186 = vmatpush1.msra.mxu0 %v1150
    %1187 = vmatprep.subr.mxu0 0.0
    %1188 = vmatpush1.msra.mxu0 %v1149
    %1189 = vmatprep.subr.mxu0 0.0
    %1190 = vmatpush1.msra.mxu0 %v1148
    %1191 = vmatprep.subr.mxu0 0.0
    %1192 = vmatpush1.msra.mxu0 %v1147
    %1193 = vmatprep.subr.mxu0 0.0
    %1194 = vmatpush1.msra.mxu0 %v1146
    %1195 = vmatprep.subr.mxu0 0.0
    %1196 = vmatpush1.msra.mxu0 %v1145
    %1197 = vmatprep.subr.mxu0 0.0
    %1198 = vmatpush2.msra.mxu0 0.0
    %1199 = vmatprep.subr.mxu0 0.0
    %1200 = vmatpush2.msra.mxu0 0.0
    %1201 = vmatprep.subr.mxu0 0.0
    %1202 = vmatpush2.msra.mxu0 0.0
    %1203 = vmatprep.subr.mxu0 0.0
    %1204 = vmatpush2.msra.mxu0 0.0
    %1205 = vmatprep.subr.mxu0 0.0
    %1206 = vmatpush2.msra.mxu0 0.0
    %1207 = vmatprep.subr.mxu0 0.0
    %1208 = vmatpush2.msra.mxu0 0.0
    %1209 = vmatprep.subr.mxu0 0.0
    %1210 = vmatpush2.msra.mxu0 0.0
    %1211 = vmatprep.subr.mxu0 0.0
    %1212 = vmatpush2.msra.mxu0 0.0
    %1213 = vmatprep.subr.mxu0 0.0
    %1214 = vmatpush2.msra.mxu0 0.0
    %1215 = vmatprep.subr.mxu0 0.0
    %1216 = vmatpush2.msra.mxu0 0.0
    %1217 = vmatprep.subr.mxu0 0.0
    %1218 = vmatpush2.msra.mxu0 0.0
    %1219 = vmatprep.subr.mxu0 0.0
    %1220 = vmatpush2.msra.mxu0 0.0
    %1221 = vmatprep.subr.mxu0 0.0
    %1222 = vmatpush2.msra.mxu0 0.0
    %1223 = vmatprep.subr.mxu0 0.0
    %1224 = vmatpush2.msra.mxu0 0.0
    %1225 = vmatprep.subr.mxu0 0.0
    %1226 = vmatpush2.msra.mxu0 0.0
    %1227 = vmatprep.subr.mxu0 0.0
    %1228 = vmatpush2.msra.mxu0 0.0
    %1229 = vmatprep.mubr.f32.mxu0 0.0
    %1230 = vmatmul.mubr.f32.gmra.mxu0 %v1160
    %v1231 = vpop.f32.mrf.mxu0
    %v1232 = vadd.f32 %v1157, %v1231
    %v1233 = vpop.f32.mrf.mxu0
    %1234 = vmatprep.mubr.f32.mxu0 0.0
    %1235 = vmatmul.mubr.f32.gmra.mxu0 %v1163
    %v1236 = vpop.f32.mrf.mxu0
    %v1237 = vadd.f32 %v1157, %v1236
    %v1238 = vpop.f32.mrf.mxu0
    %1239 = vdwg.mxu0
    %v1240 = vadd.f32 %v1050, %v1232
    %v1241 = vadd.f32 %v1051, %v1237
    %v1242 = vld [vmem:[%s4 + $0x6] sm:$0x1]
    %v1243 = vld [vmem:[%s4 + $0x7] sm:$0x1]
    %v1244 = vsel %vm35, %v1240, 0.0
    %1245 = vadd.xlane.f32.xlu0 %v1244
    %v1246 = vpop.xlane.xlu0 %1245
    %v1247 = vsel %vm35, %v1241, 0.0
    %1248 = vadd.xlane.f32.xlu0 %v1247
    %v1249 = vpop.xlane.xlu0 %1248
    %v1250 = vmul.f32 %v1246, %v1019
    %v1251 = vmul.f32 %v1249, %v1019
    %v1252 = vsub.f32 %v1240, %v1250
    %v1253 = vsub.f32 %v1241, %v1251
    %v1254 = vmul.f32 %v1252, %v1252
    %v1255 = vmul.f32 %v1253, %v1253
    %v1256 = vsel %vm35, %v1254, 0.0
    %1257 = vadd.xlane.f32.xlu0 %v1256
    %v1258 = vpop.xlane.xlu0 %1257
    %v1259 = vsel %vm35, %v1255, 0.0
    %1260 = vadd.xlane.f32.xlu0 %v1259
    %v1261 = vpop.xlane.xlu0 %1260
    %v1262 = vmul.f32 %v1258, %v1019
    %v1263 = vmul.f32 %v1261, %v1019
    %v1264 = vadd.f32 %v1262, 1e-05
    %v1265 = vadd.f32 %v1263, 1e-05
    %v1266 = vrsqrt.pop %v1264
    %v1267 = vrsqrt.pop %v1265
    %v1268 = vmul.f32 %v1252, %v1266
    %v1269 = vmul.f32 %v1253, %v1267
    %v1270 = vlaneseq
    %v1271 = vshrl.u32 %v1270, 7
    %v1272 = vsub.s32 0, %v1271
    %v1273 = vrot.slane %v1242, %v1272
    %v1274 = vmul.f32 %v1268, %v1273
    %v1275 = vmul.f32 %v1269, %v1273
    %v1276 = vlaneseq
    %v1277 = vshrl.u32 %v1276, 7
    %v1278 = vsub.s32 0, %v1277
    %v1279 = vrot.slane %v1243, %v1278
    %v1280 = vadd.f32 %v1274, %v1279
    %v1281 = vadd.f32 %v1275, %v1279
    %s1282 = scalar_lea.vmem %s1, 32
    %v1283 = vld [vmem:[%s1282] sm:$0xff]
    %v1284 = vld [vmem:[%s1282 + $0x8] sm:$0xff]
    %v1285 = vld [vmem:[%s1282 + $0x10] sm:$0xff]
    %v1286 = vld [vmem:[%s1282 + $0x18] sm:$0xff]
    %v1287 = vld [vmem:[%s4 + $0x8] sm:$0x1]
    %v1288 = vlaneseq
    %v1289 = vshrl.u32 %v1288, 7
    %v1290 = vsub.s32 0, %v1289
    %v1291 = vrot.slane %v1287, %v1290
    %v1293 = vsel %vm35, %v1280, 0
    %v1296 = vsel %vm35, %v1281, 0
    %1298 = vmatprep.subr.mxu0 0.0
    %1299 = vmatpush1.msra.mxu0 0.0
    %1300 = vmatprep.subr.mxu0 0.0
    %1301 = vmatpush1.msra.mxu0 0.0
    %1302 = vmatprep.subr.mxu0 0.0
    %1303 = vmatpush1.msra.mxu0 0.0
    %1304 = vmatprep.subr.mxu0 0.0
    %1305 = vmatpush1.msra.mxu0 0.0
    %1306 = vmatprep.subr.mxu0 0.0
    %1307 = vmatpush1.msra.mxu0 0.0
    %1308 = vmatprep.subr.mxu0 0.0
    %1309 = vmatpush1.msra.mxu0 0.0
    %1310 = vmatprep.subr.mxu0 0.0
    %1311 = vmatpush1.msra.mxu0 0.0
    %1312 = vmatprep.subr.mxu0 0.0
    %1313 = vmatpush1.msra.mxu0 0.0
    %1314 = vmatprep.subr.mxu0 0.0
    %1315 = vmatpush1.msra.mxu0 0.0
    %1316 = vmatprep.subr.mxu0 0.0
    %1317 = vmatpush1.msra.mxu0 0.0
    %1318 = vmatprep.subr.mxu0 0.0
    %1319 = vmatpush1.msra.mxu0 0.0
    %1320 = vmatprep.subr.mxu0 0.0
    %1321 = vmatpush1.msra.mxu0 0.0
    %1322 = vmatprep.subr.mxu0 0.0
    %1323 = vmatpush1.msra.mxu0 %v1286
    %1324 = vmatprep.subr.mxu0 0.0
    %1325 = vmatpush1.msra.mxu0 %v1285
    %1326 = vmatprep.subr.mxu0 0.0
    %1327 = vmatpush1.msra.mxu0 %v1284
    %1328 = vmatprep.subr.mxu0 0.0
    %1329 = vmatpush1.msra.mxu0 %v1283
    %1330 = vmatprep.subr.mxu0 0.0
    %1331 = vmatpush2.msra.mxu0 0.0
    %1332 = vmatprep.subr.mxu0 0.0
    %1333 = vmatpush2.msra.mxu0 0.0
    %1334 = vmatprep.subr.mxu0 0.0
    %1335 = vmatpush2.msra.mxu0 0.0
    %1336 = vmatprep.subr.mxu0 0.0
    %1337 = vmatpush2.msra.mxu0 0.0
    %1338 = vmatprep.subr.mxu0 0.0
    %1339 = vmatpush2.msra.mxu0 0.0
    %1340 = vmatprep.subr.mxu0 0.0
    %1341 = vmatpush2.msra.mxu0 0.0
    %1342 = vmatprep.subr.mxu0 0.0
    %1343 = vmatpush2.msra.mxu0 0.0
    %1344 = vmatprep.subr.mxu0 0.0
    %1345 = vmatpush2.msra.mxu0 0.0
    %1346 = vmatprep.subr.mxu0 0.0
    %1347 = vmatpush2.msra.mxu0 0.0
    %1348 = vmatprep.subr.mxu0 0.0
    %1349 = vmatpush2.msra.mxu0 0.0
    %1350 = vmatprep.subr.mxu0 0.0
    %1351 = vmatpush2.msra.mxu0 0.0
    %1352 = vmatprep.subr.mxu0 0.0
    %1353 = vmatpush2.msra.mxu0 0.0
    %1354 = vmatprep.subr.mxu0 0.0
    %1355 = vmatpush2.msra.mxu0 0.0
    %1356 = vmatprep.subr.mxu0 0.0
    %1357 = vmatpush2.msra.mxu0 0.0
    %1358 = vmatprep.subr.mxu0 0.0
    %1359 = vmatpush2.msra.mxu0 0.0
    %1360 = vmatprep.subr.mxu0 0.0
    %1361 = vmatpush2.msra.mxu0 0.0
    %1362 = vmatprep.mubr.f32.mxu0 0.0
    %1363 = vmatmul.mubr.f32.gmra.mxu0 %v1293
    %v1364 = vpop.f32.mrf.mxu0
    %v1365 = vadd.f32 %v1291, %v1364
    %v1366 = vpop.f32.mrf.mxu0
    %1367 = vmatprep.mubr.f32.mxu0 0.0
    %1368 = vmatmul.mubr.f32.gmra.mxu0 %v1296
    %v1369 = vpop.f32.mrf.mxu0
    %v1370 = vadd.f32 %v1291, %v1369
    %v1371 = vpop.f32.mrf.mxu0
    %1372 = vdwg.mxu0
    %s1373 = scalar_lea.vmem %s2, 32
    %v1374 = vld [vmem:[%s1373] sm:$0xff]
    %v1375 = vld [vmem:[%s1373 + $0x8] sm:$0xff]
    %v1376 = vld [vmem:[%s1373 + $0x10] sm:$0xff]
    %v1377 = vld [vmem:[%s1373 + $0x18] sm:$0xff]
    %1378 = vmatprep.subr.mxu0 0.0
    %1379 = vmatpush1.msra.mxu0 0.0
    %1380 = vmatprep.subr.mxu0 0.0
    %1381 = vmatpush1.msra.mxu0 0.0
    %1382 = vmatprep.subr.mxu0 0.0
    %1383 = vmatpush1.msra.mxu0 0.0
    %1384 = vmatprep.subr.mxu0 0.0
    %1385 = vmatpush1.msra.mxu0 0.0
    %1386 = vmatprep.subr.mxu0 0.0
    %1387 = vmatpush1.msra.mxu0 0.0
    %1388 = vmatprep.subr.mxu0 0.0
    %1389 = vmatpush1.msra.mxu0 0.0
    %1390 = vmatprep.subr.mxu0 0.0
    %1391 = vmatpush1.msra.mxu0 0.0
    %1392 = vmatprep.subr.mxu0 0.0
    %1393 = vmatpush1.msra.mxu0 0.0
    %1394 = vmatprep.subr.mxu0 0.0
    %1395 = vmatpush1.msra.mxu0 0.0
    %1396 = vmatprep.subr.mxu0 0.0
    %1397 = vmatpush1.msra.mxu0 0.0
    %1398 = vmatprep.subr.mxu0 0.0
    %1399 = vmatpush1.msra.mxu0 0.0
    %1400 = vmatprep.subr.mxu0 0.0
    %1401 = vmatpush1.msra.mxu0 0.0
    %1402 = vmatprep.subr.mxu0 0.0
    %1403 = vmatpush1.msra.mxu0 %v1377
    %1404 = vmatprep.subr.mxu0 0.0
    %1405 = vmatpush1.msra.mxu0 %v1376
    %1406 = vmatprep.subr.mxu0 0.0
    %1407 = vmatpush1.msra.mxu0 %v1375
    %1408 = vmatprep.subr.mxu0 0.0
    %1409 = vmatpush1.msra.mxu0 %v1374
    %1410 = vmatprep.subr.mxu0 0.0
    %1411 = vmatpush2.msra.mxu0 0.0
    %1412 = vmatprep.subr.mxu0 0.0
    %1413 = vmatpush2.msra.mxu0 0.0
    %1414 = vmatprep.subr.mxu0 0.0
    %1415 = vmatpush2.msra.mxu0 0.0
    %1416 = vmatprep.subr.mxu0 0.0
    %1417 = vmatpush2.msra.mxu0 0.0
    %1418 = vmatprep.subr.mxu0 0.0
    %1419 = vmatpush2.msra.mxu0 0.0
    %1420 = vmatprep.subr.mxu0 0.0
    %1421 = vmatpush2.msra.mxu0 0.0
    %1422 = vmatprep.subr.mxu0 0.0
    %1423 = vmatpush2.msra.mxu0 0.0
    %1424 = vmatprep.subr.mxu0 0.0
    %1425 = vmatpush2.msra.mxu0 0.0
    %1426 = vmatprep.subr.mxu0 0.0
    %1427 = vmatpush2.msra.mxu0 0.0
    %1428 = vmatprep.subr.mxu0 0.0
    %1429 = vmatpush2.msra.mxu0 0.0
    %1430 = vmatprep.subr.mxu0 0.0
    %1431 = vmatpush2.msra.mxu0 0.0
    %1432 = vmatprep.subr.mxu0 0.0
    %1433 = vmatpush2.msra.mxu0 0.0
    %1434 = vmatprep.subr.mxu0 0.0
    %1435 = vmatpush2.msra.mxu0 0.0
    %1436 = vmatprep.subr.mxu0 0.0
    %1437 = vmatpush2.msra.mxu0 0.0
    %1438 = vmatprep.subr.mxu0 0.0
    %1439 = vmatpush2.msra.mxu0 0.0
    %1440 = vmatprep.subr.mxu0 0.0
    %1441 = vmatpush2.msra.mxu0 0.0
    %1442 = vmatprep.mubr.f32.mxu0 0.0
    %1443 = vmatmul.mubr.f32.gmra.mxu0 %v1293
    %v1444 = vpop.f32.mrf.mxu0
    %v1445 = vadd.f32 0.0, %v1444
    %v1446 = vpop.f32.mrf.mxu0
    %1447 = vmatprep.mubr.f32.mxu0 0.0
    %1448 = vmatmul.mubr.f32.gmra.mxu0 %v1296
    %v1449 = vpop.f32.mrf.mxu0
    %v1450 = vadd.f32 0.0, %v1449
    %v1451 = vpop.f32.mrf.mxu0
    %1452 = vdwg.mxu0
    %1455 = vrot.lane.b32.xlu0 %v1365, 96
    %v1456 = vpop.permute.xlu0 %1455
    %1457 = vrot.lane.b32.xlu0 %v1370, 96
    %v1458 = vpop.permute.xlu0 %1457
    %v1459 = vsel %vm208, %v1365, 0
    %v1461 = vsel %vm208, %v1370, 0
    %v1463 = vsel %vm208, %v1456, 0
    %v1465 = vsel %vm208, %v1458, 0
    %1467 = vmatprep.subr.mxu0 0.0
    %1468 = vmatpush1.xpose.msra.mxu0 0.0
    %1469 = vmatprep.subr.mxu0 0.0
    %1470 = vmatpush1.xpose.msra.mxu0 0.0
    %1471 = vmatprep.subr.mxu0 0.0
    %1472 = vmatpush1.xpose.msra.mxu0 0.0
    %1473 = vmatprep.subr.mxu0 0.0
    %1474 = vmatpush1.xpose.msra.mxu0 0.0
    %1475 = vmatprep.subr.mxu0 0.0
    %1476 = vmatpush1.xpose.msra.mxu0 0.0
    %1477 = vmatprep.subr.mxu0 0.0
    %1478 = vmatpush1.xpose.msra.mxu0 0.0
    %1479 = vmatprep.subr.mxu0 0.0
    %1480 = vmatpush1.xpose.msra.mxu0 0.0
    %1481 = vmatprep.subr.mxu0 0.0
    %1482 = vmatpush1.xpose.msra.mxu0 0.0
    %1483 = vmatprep.subr.mxu0 0.0
    %1484 = vmatpush1.xpose.msra.mxu0 0.0
    %1485 = vmatprep.subr.mxu0 0.0
    %1486 = vmatpush1.xpose.msra.mxu0 0.0
    %1487 = vmatprep.subr.mxu0 0.0
    %1488 = vmatpush1.xpose.msra.mxu0 0.0
    %1489 = vmatprep.subr.mxu0 0.0
    %1490 = vmatpush1.xpose.msra.mxu0 0.0
    %1491 = vmatprep.subr.mxu0 0.0
    %1492 = vmatpush1.xpose.msra.mxu0 0.0
    %1493 = vmatprep.subr.mxu0 0.0
    %1494 = vmatpush1.xpose.msra.mxu0 0.0
    %1495 = vmatprep.subr.mxu0 0.0
    %1496 = vmatpush1.xpose.msra.mxu0 %v1465
    %1497 = vmatprep.subr.mxu0 0.0
    %1498 = vmatpush1.xpose.msra.mxu0 %v1463
    %1499 = vmatprep.subr.mxu0 0.0
    %1500 = vmatpush2.xpose.msra.mxu0 0.0
    %1501 = vmatprep.subr.mxu0 0.0
    %1502 = vmatpush2.xpose.msra.mxu0 0.0
    %1503 = vmatprep.subr.mxu0 0.0
    %1504 = vmatpush2.xpose.msra.mxu0 0.0
    %1505 = vmatprep.subr.mxu0 0.0
    %1506 = vmatpush2.xpose.msra.mxu0 0.0
    %1507 = vmatprep.subr.mxu0 0.0
    %1508 = vmatpush2.xpose.msra.mxu0 0.0
    %1509 = vmatprep.subr.mxu0 0.0
    %1510 = vmatpush2.xpose.msra.mxu0 0.0
    %1511 = vmatprep.subr.mxu0 0.0
    %1512 = vmatpush2.xpose.msra.mxu0 0.0
    %1513 = vmatprep.subr.mxu0 0.0
    %1514 = vmatpush2.xpose.msra.mxu0 0.0
    %1515 = vmatprep.subr.mxu0 0.0
    %1516 = vmatpush2.xpose.msra.mxu0 0.0
    %1517 = vmatprep.subr.mxu0 0.0
    %1518 = vmatpush2.xpose.msra.mxu0 0.0
    %1519 = vmatprep.subr.mxu0 0.0
    %1520 = vmatpush2.xpose.msra.mxu0 0.0
    %1521 = vmatprep.subr.mxu0 0.0
    %1522 = vmatpush2.xpose.msra.mxu0 0.0
    %1523 = vmatprep.subr.mxu0 0.0
    %1524 = vmatpush2.xpose.msra.mxu0 0.0
    %1525 = vmatprep.subr.mxu0 0.0
    %1526 = vmatpush2.xpose.msra.mxu0 0.0
    %1527 = vmatprep.subr.mxu0 0.0
    %1528 = vmatpush2.xpose.msra.mxu0 0.0
    %1529 = vmatprep.subr.mxu0 0.0
    %1530 = vmatpush2.xpose.msra.mxu0 0.0
    %1531 = vmatprep.mubr.f32.mxu0 0.0
    %1532 = vmatmul.mubr.f32.gmra.mxu0 %v1459
    %v1533 = vpop.f32.mrf.mxu0
    %v1534 = vadd.f32 %v203, %v1533
    %v1535 = vpop.f32.mrf.mxu0
    %1536 = vmatprep.mubr.f32.mxu0 0.0
    %1537 = vmatmul.mubr.f32.gmra.mxu0 %v1461
    %v1538 = vpop.f32.mrf.mxu0
    %v1539 = vadd.f32 %v205, %v1538
    %v1540 = vpop.f32.mrf.mxu0
    %1541 = vdwg.mxu0
    %v1542 = vsel %vm292, %v1534, -inf
    %1543 = vmax.xlane.f32.xlu0 %v1542
    %v1544 = vpop.xlane.xlu0 %1543
    %v1545 = vsel %vm292, %v1539, -inf
    %1546 = vmax.xlane.f32.xlu0 %v1545
    %v1547 = vpop.xlane.xlu0 %1546
    %v1548 = vsub.f32 %v1534, %v1544
    %v1549 = vsub.f32 %v1539, %v1547
    %v1550 = vmul.f32 %v1548, 1.442695
    %v1551 = vpow.pop %v1550
    %v1552 = vmul.f32 %v1549, 1.442695
    %v1553 = vpow.pop %v1552
    %v1554 = vsel %vm292, %v1551, 0.0
    %1555 = vadd.xlane.f32.xlu0 %v1554
    %v1556 = vpop.xlane.xlu0 %1555
    %v1557 = vsel %vm292, %v1553, 0.0
    %1558 = vadd.xlane.f32.xlu0 %v1557
    %v1559 = vpop.xlane.xlu0 %1558
    %v1560 = vrcp.pop %v1556
    %v1561 = vrcp.pop %v1559
    %v1562 = vmul.f32 %v1551, %v1560
    %v1563 = vmul.f32 %v1553, %v1561
    %1564 = vrot.lane.b32.xlu0 %v1365, 120
    %v1565 = vpop.permute.xlu0 %1564
    %1566 = vrot.lane.b32.xlu0 %v1370, 120
    %v1567 = vpop.permute.xlu0 %1566
    %1568 = vrot.lane.b32.xlu0 %v1365, 88
    %v1569 = vpop.permute.xlu0 %1568
    %1570 = vrot.lane.b32.xlu0 %v1370, 88
    %v1571 = vpop.permute.xlu0 %1570
    %v1572 = vsel %vm208, %v1565, 0
    %v1574 = vsel %vm208, %v1567, 0
    %v1576 = vsel %vm208, %v1569, 0
    %v1578 = vsel %vm208, %v1571, 0
    %1580 = vmatprep.subr.mxu0 0.0
    %1581 = vmatpush1.xpose.msra.mxu0 0.0
    %1582 = vmatprep.subr.mxu0 0.0
    %1583 = vmatpush1.xpose.msra.mxu0 0.0
    %1584 = vmatprep.subr.mxu0 0.0
    %1585 = vmatpush1.xpose.msra.mxu0 0.0
    %1586 = vmatprep.subr.mxu0 0.0
    %1587 = vmatpush1.xpose.msra.mxu0 0.0
    %1588 = vmatprep.subr.mxu0 0.0
    %1589 = vmatpush1.xpose.msra.mxu0 0.0
    %1590 = vmatprep.subr.mxu0 0.0
    %1591 = vmatpush1.xpose.msra.mxu0 0.0
    %1592 = vmatprep.subr.mxu0 0.0
    %1593 = vmatpush1.xpose.msra.mxu0 0.0
    %1594 = vmatprep.subr.mxu0 0.0
    %1595 = vmatpush1.xpose.msra.mxu0 0.0
    %1596 = vmatprep.subr.mxu0 0.0
    %1597 = vmatpush1.xpose.msra.mxu0 0.0
    %1598 = vmatprep.subr.mxu0 0.0
    %1599 = vmatpush1.xpose.msra.mxu0 0.0
    %1600 = vmatprep.subr.mxu0 0.0
    %1601 = vmatpush1.xpose.msra.mxu0 0.0
    %1602 = vmatprep.subr.mxu0 0.0
    %1603 = vmatpush1.xpose.msra.mxu0 0.0
    %1604 = vmatprep.subr.mxu0 0.0
    %1605 = vmatpush1.xpose.msra.mxu0 0.0
    %1606 = vmatprep.subr.mxu0 0.0
    %1607 = vmatpush1.xpose.msra.mxu0 0.0
    %1608 = vmatprep.subr.mxu0 0.0
    %1609 = vmatpush1.xpose.msra.mxu0 %v1578
    %1610 = vmatprep.subr.mxu0 0.0
    %1611 = vmatpush1.xpose.msra.mxu0 %v1576
    %1612 = vmatprep.subr.mxu0 0.0
    %1613 = vmatpush2.xpose.msra.mxu0 0.0
    %1614 = vmatprep.subr.mxu0 0.0
    %1615 = vmatpush2.xpose.msra.mxu0 0.0
    %1616 = vmatprep.subr.mxu0 0.0
    %1617 = vmatpush2.xpose.msra.mxu0 0.0
    %1618 = vmatprep.subr.mxu0 0.0
    %1619 = vmatpush2.xpose.msra.mxu0 0.0
    %1620 = vmatprep.subr.mxu0 0.0
    %1621 = vmatpush2.xpose.msra.mxu0 0.0
    %1622 = vmatprep.subr.mxu0 0.0
    %1623 = vmatpush2.xpose.msra.mxu0 0.0
    %1624 = vmatprep.subr.mxu0 0.0
    %1625 = vmatpush2.xpose.msra.mxu0 0.0
    %1626 = vmatprep.subr.mxu0 0.0
    %1627 = vmatpush2.xpose.msra.mxu0 0.0
    %1628 = vmatprep.subr.mxu0 0.0
    %1629 = vmatpush2.xpose.msra.mxu0 0.0
    %1630 = vmatprep.subr.mxu0 0.0
    %1631 = vmatpush2.xpose.msra.mxu0 0.0
    %1632 = vmatprep.subr.mxu0 0.0
    %1633 = vmatpush2.xpose.msra.mxu0 0.0
    %1634 = vmatprep.subr.mxu0 0.0
    %1635 = vmatpush2.xpose.msra.mxu0 0.0
    %1636 = vmatprep.subr.mxu0 0.0
    %1637 = vmatpush2.xpose.msra.mxu0 0.0
    %1638 = vmatprep.subr.mxu0 0.0
    %1639 = vmatpush2.xpose.msra.mxu0 0.0
    %1640 = vmatprep.subr.mxu0 0.0
    %1641 = vmatpush2.xpose.msra.mxu0 0.0
    %1642 = vmatprep.subr.mxu0 0.0
    %1643 = vmatpush2.xpose.msra.mxu0 0.0
    %1644 = vmatprep.mubr.f32.mxu0 0.0
    %1645 = vmatmul.mubr.f32.gmra.mxu0 %v1572
    %v1646 = vpop.f32.mrf.mxu0
    %v1647 = vadd.f32 %v203, %v1646
    %v1648 = vpop.f32.mrf.mxu0
    %1649 = vmatprep.mubr.f32.mxu0 0.0
    %1650 = vmatmul.mubr.f32.gmra.mxu0 %v1574
    %v1651 = vpop.f32.mrf.mxu0
    %v1652 = vadd.f32 %v205, %v1651
    %v1653 = vpop.f32.mrf.mxu0
    %1654 = vdwg.mxu0
    %v1655 = vsel %vm292, %v1647, -inf
    %1656 = vmax.xlane.f32.xlu0 %v1655
    %v1657 = vpop.xlane.xlu0 %1656
    %v1658 = vsel %vm292, %v1652, -inf
    %1659 = vmax.xlane.f32.xlu0 %v1658
    %v1660 = vpop.xlane.xlu0 %1659
    %v1661 = vsub.f32 %v1647, %v1657
    %v1662 = vsub.f32 %v1652, %v1660
    %v1663 = vmul.f32 %v1661, 1.442695
    %v1664 = vpow.pop %v1663
    %v1665 = vmul.f32 %v1662, 1.442695
    %v1666 = vpow.pop %v1665
    %v1667 = vsel %vm292, %v1664, 0.0
    %1668 = vadd.xlane.f32.xlu0 %v1667
    %v1669 = vpop.xlane.xlu0 %1668
    %v1670 = vsel %vm292, %v1666, 0.0
    %1671 = vadd.xlane.f32.xlu0 %v1670
    %v1672 = vpop.xlane.xlu0 %1671
    %v1673 = vrcp.pop %v1669
    %v1674 = vrcp.pop %v1672
    %v1675 = vmul.f32 %v1664, %v1673
    %v1676 = vmul.f32 %v1666, %v1674
    %1679 = vrot.lane.b32.xlu0 %v1445, 96
    %v1680 = vpop.permute.xlu0 %1679
    %1681 = vrot.lane.b32.xlu0 %v1450, 96
    %v1682 = vpop.permute.xlu0 %1681
    %v1686 = vsel %vm292, %v1675, 0
    %v1689 = vsel %vm292, %v1676, 0
    %1691 = vmatprep.subr.mxu0 0.0
    %1692 = vmatpush1.msra.mxu0 0.0
    %1693 = vmatprep.subr.mxu0 0.0
    %1694 = vmatpush1.msra.mxu0 0.0
    %1695 = vmatprep.subr.mxu0 0.0
    %1696 = vmatpush1.msra.mxu0 0.0
    %1697 = vmatprep.subr.mxu0 0.0
    %1698 = vmatpush1.msra.mxu0 0.0
    %1699 = vmatprep.subr.mxu0 0.0
    %1700 = vmatpush1.msra.mxu0 0.0
    %1701 = vmatprep.subr.mxu0 0.0
    %1702 = vmatpush1.msra.mxu0 0.0
    %1703 = vmatprep.subr.mxu0 0.0
    %1704 = vmatpush1.msra.mxu0 0.0
    %1705 = vmatprep.subr.mxu0 0.0
    %1706 = vmatpush1.msra.mxu0 0.0
    %1707 = vmatprep.subr.mxu0 0.0
    %1708 = vmatpush1.msra.mxu0 0.0
    %1709 = vmatprep.subr.mxu0 0.0
    %1710 = vmatpush1.msra.mxu0 0.0
    %1711 = vmatprep.subr.mxu0 0.0
    %1712 = vmatpush1.msra.mxu0 0.0
    %1713 = vmatprep.subr.mxu0 0.0
    %1714 = vmatpush1.msra.mxu0 0.0
    %1715 = vmatprep.subr.mxu0 0.0
    %1716 = vmatpush1.msra.mxu0 0.0
    %1717 = vmatprep.subr.mxu0 0.0
    %1718 = vmatpush1.msra.mxu0 0.0
    %1719 = vmatprep.subr.mxu0 0.0
    %1720 = vmatpush1.msra.mxu0 %v1682
    %1721 = vmatprep.subr.mxu0 0.0
    %1722 = vmatpush1.msra.mxu0 %v1680
    %1723 = vmatprep.subr.mxu0 0.0
    %1724 = vmatpush2.msra.mxu0 0.0
    %1725 = vmatprep.subr.mxu0 0.0
    %1726 = vmatpush2.msra.mxu0 0.0
    %1727 = vmatprep.subr.mxu0 0.0
    %1728 = vmatpush2.msra.mxu0 0.0
    %1729 = vmatprep.subr.mxu0 0.0
    %1730 = vmatpush2.msra.mxu0 0.0
    %1731 = vmatprep.subr.mxu0 0.0
    %1732 = vmatpush2.msra.mxu0 0.0
    %1733 = vmatprep.subr.mxu0 0.0
    %1734 = vmatpush2.msra.mxu0 0.0
    %1735 = vmatprep.subr.mxu0 0.0
    %1736 = vmatpush2.msra.mxu0 0.0
    %1737 = vmatprep.subr.mxu0 0.0
    %1738 = vmatpush2.msra.mxu0 0.0
    %1739 = vmatprep.subr.mxu0 0.0
    %1740 = vmatpush2.msra.mxu0 0.0
    %1741 = vmatprep.subr.mxu0 0.0
    %1742 = vmatpush2.msra.mxu0 0.0
    %1743 = vmatprep.subr.mxu0 0.0
    %1744 = vmatpush2.msra.mxu0 0.0
    %1745 = vmatprep.subr.mxu0 0.0
    %1746 = vmatpush2.msra.mxu0 0.0
    %1747 = vmatprep.subr.mxu0 0.0
    %1748 = vmatpush2.msra.mxu0 0.0
    %1749 = vmatprep.subr.mxu0 0.0
    %1750 = vmatpush2.msra.mxu0 0.0
    %1751 = vmatprep.subr.mxu0 0.0
    %1752 = vmatpush2.msra.mxu0 0.0
    %1753 = vmatprep.subr.mxu0 0.0
    %1754 = vmatpush2.msra.mxu0 0.0
    %1755 = vmatprep.mubr.f32.mxu0 0.0
    %1756 = vmatmul.mubr.f32.gmra.mxu0 %v1686
    %v1757 = vpop.f32.mrf.mxu0
    %v1758 = vadd.f32 0.0, %v1757
    %v1759 = vpop.f32.mrf.mxu0
    %1760 = vmatprep.mubr.f32.mxu0 0.0
    %1761 = vmatmul.mubr.f32.gmra.mxu0 %v1689
    %v1762 = vpop.f32.mrf.mxu0
    %v1763 = vadd.f32 0.0, %v1762
    %v1764 = vpop.f32.mrf.mxu0
    %1765 = vdwg.mxu0
    %v1767 = vsel %vm292, %v1562, 0
    %v1770 = vsel %vm292, %v1563, 0
    %1772 = vmatprep.subr.mxu0 0.0
    %1773 = vmatpush1.msra.mxu0 0.0
    %1774 = vmatprep.subr.mxu0 0.0
    %1775 = vmatpush1.msra.mxu0 0.0
    %1776 = vmatprep.subr.mxu0 0.0
    %1777 = vmatpush1.msra.mxu0 0.0
    %1778 = vmatprep.subr.mxu0 0.0
    %1779 = vmatpush1.msra.mxu0 0.0
    %1780 = vmatprep.subr.mxu0 0.0
    %1781 = vmatpush1.msra.mxu0 0.0
    %1782 = vmatprep.subr.mxu0 0.0
    %1783 = vmatpush1.msra.mxu0 0.0
    %1784 = vmatprep.subr.mxu0 0.0
    %1785 = vmatpush1.msra.mxu0 0.0
    %1786 = vmatprep.subr.mxu0 0.0
    %1787 = vmatpush1.msra.mxu0 0.0
    %1788 = vmatprep.subr.mxu0 0.0
    %1789 = vmatpush1.msra.mxu0 0.0
    %1790 = vmatprep.subr.mxu0 0.0
    %1791 = vmatpush1.msra.mxu0 0.0
    %1792 = vmatprep.subr.mxu0 0.0
    %1793 = vmatpush1.msra.mxu0 0.0
    %1794 = vmatprep.subr.mxu0 0.0
    %1795 = vmatpush1.msra.mxu0 0.0
    %1796 = vmatprep.subr.mxu0 0.0
    %1797 = vmatpush1.msra.mxu0 0.0
    %1798 = vmatprep.subr.mxu0 0.0
    %1799 = vmatpush1.msra.mxu0 0.0
    %1800 = vmatprep.subr.mxu0 0.0
    %1801 = vmatpush1.msra.mxu0 %v1450
    %1802 = vmatprep.subr.mxu0 0.0
    %1803 = vmatpush1.msra.mxu0 %v1445
    %1804 = vmatprep.subr.mxu0 0.0
    %1805 = vmatpush2.msra.mxu0 0.0
    %1806 = vmatprep.subr.mxu0 0.0
    %1807 = vmatpush2.msra.mxu0 0.0
    %1808 = vmatprep.subr.mxu0 0.0
    %1809 = vmatpush2.msra.mxu0 0.0
    %1810 = vmatprep.subr.mxu0 0.0
    %1811 = vmatpush2.msra.mxu0 0.0
    %1812 = vmatprep.subr.mxu0 0.0
    %1813 = vmatpush2.msra.mxu0 0.0
    %1814 = vmatprep.subr.mxu0 0.0
    %1815 = vmatpush2.msra.mxu0 0.0
    %1816 = vmatprep.subr.mxu0 0.0
    %1817 = vmatpush2.msra.mxu0 0.0
    %1818 = vmatprep.subr.mxu0 0.0
    %1819 = vmatpush2.msra.mxu0 0.0
    %1820 = vmatprep.subr.mxu0 0.0
    %1821 = vmatpush2.msra.mxu0 0.0
    %1822 = vmatprep.subr.mxu0 0.0
    %1823 = vmatpush2.msra.mxu0 0.0
    %1824 = vmatprep.subr.mxu0 0.0
    %1825 = vmatpush2.msra.mxu0 0.0
    %1826 = vmatprep.subr.mxu0 0.0
    %1827 = vmatpush2.msra.mxu0 0.0
    %1828 = vmatprep.subr.mxu0 0.0
    %1829 = vmatpush2.msra.mxu0 0.0
    %1830 = vmatprep.subr.mxu0 0.0
    %1831 = vmatpush2.msra.mxu0 0.0
    %1832 = vmatprep.subr.mxu0 0.0
    %1833 = vmatpush2.msra.mxu0 0.0
    %1834 = vmatprep.subr.mxu0 0.0
    %1835 = vmatpush2.msra.mxu0 0.0
    %1836 = vmatprep.mubr.f32.mxu0 0.0
    %1837 = vmatmul.mubr.f32.gmra.mxu0 %v1767
    %v1838 = vpop.f32.mrf.mxu0
    %v1839 = vadd.f32 %v1758, %v1838
    %v1840 = vpop.f32.mrf.mxu0
    %1841 = vmatprep.mubr.f32.mxu0 0.0
    %1842 = vmatmul.mubr.f32.gmra.mxu0 %v1770
    %v1843 = vpop.f32.mrf.mxu0
    %v1844 = vadd.f32 %v1763, %v1843
    %v1845 = vpop.f32.mrf.mxu0
    %1846 = vdwg.mxu0
    %1847 = vrot.lane.b32.xlu0 %v1365, 112
    %v1848 = vpop.permute.xlu0 %1847
    %1849 = vrot.lane.b32.xlu0 %v1370, 112
    %v1850 = vpop.permute.xlu0 %1849
    %1851 = vrot.lane.b32.xlu0 %v1365, 80
    %v1852 = vpop.permute.xlu0 %1851
    %1853 = vrot.lane.b32.xlu0 %v1370, 80
    %v1854 = vpop.permute.xlu0 %1853
    %v1855 = vsel %vm208, %v1848, 0
    %v1857 = vsel %vm208, %v1850, 0
    %v1859 = vsel %vm208, %v1852, 0
    %v1861 = vsel %vm208, %v1854, 0
    %1863 = vmatprep.subr.mxu0 0.0
    %1864 = vmatpush1.xpose.msra.mxu0 0.0
    %1865 = vmatprep.subr.mxu0 0.0
    %1866 = vmatpush1.xpose.msra.mxu0 0.0
    %1867 = vmatprep.subr.mxu0 0.0
    %1868 = vmatpush1.xpose.msra.mxu0 0.0
    %1869 = vmatprep.subr.mxu0 0.0
    %1870 = vmatpush1.xpose.msra.mxu0 0.0
    %1871 = vmatprep.subr.mxu0 0.0
    %1872 = vmatpush1.xpose.msra.mxu0 0.0
    %1873 = vmatprep.subr.mxu0 0.0
    %1874 = vmatpush1.xpose.msra.mxu0 0.0
    %1875 = vmatprep.subr.mxu0 0.0
    %1876 = vmatpush1.xpose.msra.mxu0 0.0
    %1877 = vmatprep.subr.mxu0 0.0
    %1878 = vmatpush1.xpose.msra.mxu0 0.0
    %1879 = vmatprep.subr.mxu0 0.0
    %1880 = vmatpush1.xpose.msra.mxu0 0.0
    %1881 = vmatprep.subr.mxu0 0.0
    %1882 = vmatpush1.xpose.msra.mxu0 0.0
    %1883 = vmatprep.subr.mxu0 0.0
    %1884 = vmatpush1.xpose.msra.mxu0 0.0
    %1885 = vmatprep.subr.mxu0 0.0
    %1886 = vmatpush1.xpose.msra.mxu0 0.0
    %1887 = vmatprep.subr.mxu0 0.0
    %1888 = vmatpush1.xpose.msra.mxu0 0.0
    %1889 = vmatprep.subr.mxu0 0.0
    %1890 = vmatpush1.xpose.msra.mxu0 0.0
    %1891 = vmatprep.subr.mxu0 0.0
    %1892 = vmatpush1.xpose.msra.mxu0 %v1861
    %1893 = vmatprep.subr.mxu0 0.0
    %1894 = vmatpush1.xpose.msra.mxu0 %v1859
    %1895 = vmatprep.subr.mxu0 0.0
    %1896 = vmatpush2.xpose.msra.mxu0 0.0
    %1897 = vmatprep.subr.mxu0 0.0
    %1898 = vmatpush2.xpose.msra.mxu0 0.0
    %1899 = vmatprep.subr.mxu0 0.0
    %1900 = vmatpush2.xpose.msra.mxu0 0.0
    %1901 = vmatprep.subr.mxu0 0.0
    %1902 = vmatpush2.xpose.msra.mxu0 0.0
    %1903 = vmatprep.subr.mxu0 0.0
    %1904 = vmatpush2.xpose.msra.mxu0 0.0
    %1905 = vmatprep.subr.mxu0 0.0
    %1906 = vmatpush2.xpose.msra.mxu0 0.0
    %1907 = vmatprep.subr.mxu0 0.0
    %1908 = vmatpush2.xpose.msra.mxu0 0.0
    %1909 = vmatprep.subr.mxu0 0.0
    %1910 = vmatpush2.xpose.msra.mxu0 0.0
    %1911 = vmatprep.subr.mxu0 0.0
    %1912 = vmatpush2.xpose.msra.mxu0 0.0
    %1913 = vmatprep.subr.mxu0 0.0
    %1914 = vmatpush2.xpose.msra.mxu0 0.0
    %1915 = vmatprep.subr.mxu0 0.0
    %1916 = vmatpush2.xpose.msra.mxu0 0.0
    %1917 = vmatprep.subr.mxu0 0.0
    %1918 = vmatpush2.xpose.msra.mxu0 0.0
    %1919 = vmatprep.subr.mxu0 0.0
    %1920 = vmatpush2.xpose.msra.mxu0 0.0
    %1921 = vmatprep.subr.mxu0 0.0
    %1922 = vmatpush2.xpose.msra.mxu0 0.0
    %1923 = vmatprep.subr.mxu0 0.0
    %1924 = vmatpush2.xpose.msra.mxu0 0.0
    %1925 = vmatprep.subr.mxu0 0.0
    %1926 = vmatpush2.xpose.msra.mxu0 0.0
    %1927 = vmatprep.mubr.f32.mxu0 0.0
    %1928 = vmatmul.mubr.f32.gmra.mxu0 %v1855
    %v1929 = vpop.f32.mrf.mxu0
    %v1930 = vadd.f32 %v203, %v1929
    %v1931 = vpop.f32.mrf.mxu0
    %1932 = vmatprep.mubr.f32.mxu0 0.0
    %1933 = vmatmul.mubr.f32.gmra.mxu0 %v1857
    %v1934 = vpop.f32.mrf.mxu0
    %v1935 = vadd.f32 %v205, %v1934
    %v1936 = vpop.f32.mrf.mxu0
    %1937 = vdwg.mxu0
    %v1938 = vsel %vm292, %v1930, -inf
    %1939 = vmax.xlane.f32.xlu0 %v1938
    %v1940 = vpop.xlane.xlu0 %1939
    %v1941 = vsel %vm292, %v1935, -inf
    %1942 = vmax.xlane.f32.xlu0 %v1941
    %v1943 = vpop.xlane.xlu0 %1942
    %v1944 = vsub.f32 %v1930, %v1940
    %v1945 = vsub.f32 %v1935, %v1943
    %v1946 = vmul.f32 %v1944, 1.442695
    %v1947 = vpow.pop %v1946
    %v1948 = vmul.f32 %v1945, 1.442695
    %v1949 = vpow.pop %v1948
    %v1950 = vsel %vm292, %v1947, 0.0
    %1951 = vadd.xlane.f32.xlu0 %v1950
    %v1952 = vpop.xlane.xlu0 %1951
    %v1953 = vsel %vm292, %v1949, 0.0
    %1954 = vadd.xlane.f32.xlu0 %v1953
    %v1955 = vpop.xlane.xlu0 %1954
    %v1956 = vrcp.pop %v1952
    %v1957 = vrcp.pop %v1955
    %v1958 = vmul.f32 %v1947, %v1956
    %v1959 = vmul.f32 %v1949, %v1957
    %1960 = vrot.lane.b32.xlu0 %v1445, 64
    %v1961 = vpop.permute.xlu0 %1960
    %1962 = vrot.lane.b32.xlu0 %v1450, 64
    %v1963 = vpop.permute.xlu0 %1962
    %v1967 = vsel %vm292, %v1958, 0
    %v1970 = vsel %vm292, %v1959, 0
    %1972 = vmatprep.subr.mxu0 0.0
    %1973 = vmatpush1.msra.mxu0 0.0
    %1974 = vmatprep.subr.mxu0 0.0
    %1975 = vmatpush1.msra.mxu0 0.0
    %1976 = vmatprep.subr.mxu0 0.0
    %1977 = vmatpush1.msra.mxu0 0.0
    %1978 = vmatprep.subr.mxu0 0.0
    %1979 = vmatpush1.msra.mxu0 0.0
    %1980 = vmatprep.subr.mxu0 0.0
    %1981 = vmatpush1.msra.mxu0 0.0
    %1982 = vmatprep.subr.mxu0 0.0
    %1983 = vmatpush1.msra.mxu0 0.0
    %1984 = vmatprep.subr.mxu0 0.0
    %1985 = vmatpush1.msra.mxu0 0.0
    %1986 = vmatprep.subr.mxu0 0.0
    %1987 = vmatpush1.msra.mxu0 0.0
    %1988 = vmatprep.subr.mxu0 0.0
    %1989 = vmatpush1.msra.mxu0 0.0
    %1990 = vmatprep.subr.mxu0 0.0
    %1991 = vmatpush1.msra.mxu0 0.0
    %1992 = vmatprep.subr.mxu0 0.0
    %1993 = vmatpush1.msra.mxu0 0.0
    %1994 = vmatprep.subr.mxu0 0.0
    %1995 = vmatpush1.msra.mxu0 0.0
    %1996 = vmatprep.subr.mxu0 0.0
    %1997 = vmatpush1.msra.mxu0 0.0
    %1998 = vmatprep.subr.mxu0 0.0
    %1999 = vmatpush1.msra.mxu0 0.0
    %2000 = vmatprep.subr.mxu0 0.0
    %2001 = vmatpush1.msra.mxu0 %v1963
    %2002 = vmatprep.subr.mxu0 0.0
    %2003 = vmatpush1.msra.mxu0 %v1961
    %2004 = vmatprep.subr.mxu0 0.0
    %2005 = vmatpush2.msra.mxu0 0.0
    %2006 = vmatprep.subr.mxu0 0.0
    %2007 = vmatpush2.msra.mxu0 0.0
    %2008 = vmatprep.subr.mxu0 0.0
    %2009 = vmatpush2.msra.mxu0 0.0
    %2010 = vmatprep.subr.mxu0 0.0
    %2011 = vmatpush2.msra.mxu0 0.0
    %2012 = vmatprep.subr.mxu0 0.0
    %2013 = vmatpush2.msra.mxu0 0.0
    %2014 = vmatprep.subr.mxu0 0.0
    %2015 = vmatpush2.msra.mxu0 0.0
    %2016 = vmatprep.subr.mxu0 0.0
    %2017 = vmatpush2.msra.mxu0 0.0
    %2018 = vmatprep.subr.mxu0 0.0
    %2019 = vmatpush2.msra.mxu0 0.0
    %2020 = vmatprep.subr.mxu0 0.0
    %2021 = vmatpush2.msra.mxu0 0.0
    %2022 = vmatprep.subr.mxu0 0.0
    %2023 = vmatpush2.msra.mxu0 0.0
    %2024 = vmatprep.subr.mxu0 0.0
    %2025 = vmatpush2.msra.mxu0 0.0
    %2026 = vmatprep.subr.mxu0 0.0
    %2027 = vmatpush2.msra.mxu0 0.0
    %2028 = vmatprep.subr.mxu0 0.0
    %2029 = vmatpush2.msra.mxu0 0.0
    %2030 = vmatprep.subr.mxu0 0.0
    %2031 = vmatpush2.msra.mxu0 0.0
    %2032 = vmatprep.subr.mxu0 0.0
    %2033 = vmatpush2.msra.mxu0 0.0
    %2034 = vmatprep.subr.mxu0 0.0
    %2035 = vmatpush2.msra.mxu0 0.0
    %2036 = vmatprep.mubr.f32.mxu0 0.0
    %2037 = vmatmul.mubr.f32.gmra.mxu0 %v1967
    %v2038 = vpop.f32.mrf.mxu0
    %v2039 = vadd.f32 0.0, %v2038
    %v2040 = vpop.f32.mrf.mxu0
    %2041 = vmatprep.mubr.f32.mxu0 0.0
    %2042 = vmatmul.mubr.f32.gmra.mxu0 %v1970
    %v2043 = vpop.f32.mrf.mxu0
    %v2044 = vadd.f32 0.0, %v2043
    %v2045 = vpop.f32.mrf.mxu0
    %2046 = vdwg.mxu0
    %v2047 = vadd.f32 %v1839, %v2039
    %v2048 = vadd.f32 %v1844, %v2044
    %2049 = vrot.lane.b32.xlu0 %v1365, 104
    %v2050 = vpop.permute.xlu0 %2049
    %2051 = vrot.lane.b32.xlu0 %v1370, 104
    %v2052 = vpop.permute.xlu0 %2051
    %2053 = vrot.lane.b32.xlu0 %v1365, 72
    %v2054 = vpop.permute.xlu0 %2053
    %2055 = vrot.lane.b32.xlu0 %v1370, 72
    %v2056 = vpop.permute.xlu0 %2055
    %v2057 = vsel %vm208, %v2050, 0
    %v2059 = vsel %vm208, %v2052, 0
    %v2061 = vsel %vm208, %v2054, 0
    %v2063 = vsel %vm208, %v2056, 0
    %2065 = vmatprep.subr.mxu0 0.0
    %2066 = vmatpush1.xpose.msra.mxu0 0.0
    %2067 = vmatprep.subr.mxu0 0.0
    %2068 = vmatpush1.xpose.msra.mxu0 0.0
    %2069 = vmatprep.subr.mxu0 0.0
    %2070 = vmatpush1.xpose.msra.mxu0 0.0
    %2071 = vmatprep.subr.mxu0 0.0
    %2072 = vmatpush1.xpose.msra.mxu0 0.0
    %2073 = vmatprep.subr.mxu0 0.0
    %2074 = vmatpush1.xpose.msra.mxu0 0.0
    %2075 = vmatprep.subr.mxu0 0.0
    %2076 = vmatpush1.xpose.msra.mxu0 0.0
    %2077 = vmatprep.subr.mxu0 0.0
    %2078 = vmatpush1.xpose.msra.mxu0 0.0
    %2079 = vmatprep.subr.mxu0 0.0
    %2080 = vmatpush1.xpose.msra.mxu0 0.0
    %2081 = vmatprep.subr.mxu0 0.0
    %2082 = vmatpush1.xpose.msra.mxu0 0.0
    %2083 = vmatprep.subr.mxu0 0.0
    %2084 = vmatpush1.xpose.msra.mxu0 0.0
    %2085 = vmatprep.subr.mxu0 0.0
    %2086 = vmatpush1.xpose.msra.mxu0 0.0
    %2087 = vmatprep.subr.mxu0 0.0
    %2088 = vmatpush1.xpose.msra.mxu0 0.0
    %2089 = vmatprep.subr.mxu0 0.0
    %2090 = vmatpush1.xpose.msra.mxu0 0.0
    %2091 = vmatprep.subr.mxu0 0.0
    %2092 = vmatpush1.xpose.msra.mxu0 0.0
    %2093 = vmatprep.subr.mxu0 0.0
    %2094 = vmatpush1.xpose.msra.mxu0 %v2063
    %2095 = vmatprep.subr.mxu0 0.0
    %2096 = vmatpush1.xpose.msra.mxu0 %v2061
    %2097 = vmatprep.subr.mxu0 0.0
    %2098 = vmatpush2.xpose.msra.mxu0 0.0
    %2099 = vmatprep.subr.mxu0 0.0
    %2100 = vmatpush2.xpose.msra.mxu0 0.0
    %2101 = vmatprep.subr.mxu0 0.0
    %2102 = vmatpush2.xpose.msra.mxu0 0.0
    %2103 = vmatprep.subr.mxu0 0.0
    %2104 = vmatpush2.xpose.msra.mxu0 0.0
    %2105 = vmatprep.subr.mxu0 0.0
    %2106 = vmatpush2.xpose.msra.mxu0 0.0
    %2107 = vmatprep.subr.mxu0 0.0
    %2108 = vmatpush2.xpose.msra.mxu0 0.0
    %2109 = vmatprep.subr.mxu0 0.0
    %2110 = vmatpush2.xpose.msra.mxu0 0.0
    %2111 = vmatprep.subr.mxu0 0.0
    %2112 = vmatpush2.xpose.msra.mxu0 0.0
    %2113 = vmatprep.subr.mxu0 0.0
    %2114 = vmatpush2.xpose.msra.mxu0 0.0
    %2115 = vmatprep.subr.mxu0 0.0
    %2116 = vmatpush2.xpose.msra.mxu0 0.0
    %2117 = vmatprep.subr.mxu0 0.0
    %2118 = vmatpush2.xpose.msra.mxu0 0.0
    %2119 = vmatprep.subr.mxu0 0.0
    %2120 = vmatpush2.xpose.msra.mxu0 0.0
    %2121 = vmatprep.subr.mxu0 0.0
    %2122 = vmatpush2.xpose.msra.mxu0 0.0
    %2123 = vmatprep.subr.mxu0 0.0
    %2124 = vmatpush2.xpose.msra.mxu0 0.0
    %2125 = vmatprep.subr.mxu0 0.0
    %2126 = vmatpush2.xpose.msra.mxu0 0.0
    %2127 = vmatprep.subr.mxu0 0.0
    %2128 = vmatpush2.xpose.msra.mxu0 0.0
    %2129 = vmatprep.mubr.f32.mxu0 0.0
    %2130 = vmatmul.mubr.f32.gmra.mxu0 %v2057
    %v2131 = vpop.f32.mrf.mxu0
    %v2132 = vadd.f32 %v203, %v2131
    %v2133 = vpop.f32.mrf.mxu0
    %2134 = vmatprep.mubr.f32.mxu0 0.0
    %2135 = vmatmul.mubr.f32.gmra.mxu0 %v2059
    %v2136 = vpop.f32.mrf.mxu0
    %v2137 = vadd.f32 %v205, %v2136
    %v2138 = vpop.f32.mrf.mxu0
    %2139 = vdwg.mxu0
    %v2140 = vsel %vm292, %v2132, -inf
    %2141 = vmax.xlane.f32.xlu0 %v2140
    %v2142 = vpop.xlane.xlu0 %2141
    %v2143 = vsel %vm292, %v2137, -inf
    %2144 = vmax.xlane.f32.xlu0 %v2143
    %v2145 = vpop.xlane.xlu0 %2144
    %v2146 = vsub.f32 %v2132, %v2142
    %v2147 = vsub.f32 %v2137, %v2145
    %v2148 = vmul.f32 %v2146, 1.442695
    %v2149 = vpow.pop %v2148
    %v2150 = vmul.f32 %v2147, 1.442695
    %v2151 = vpow.pop %v2150
    %v2152 = vsel %vm292, %v2149, 0.0
    %2153 = vadd.xlane.f32.xlu0 %v2152
    %v2154 = vpop.xlane.xlu0 %2153
    %v2155 = vsel %vm292, %v2151, 0.0
    %2156 = vadd.xlane.f32.xlu0 %v2155
    %v2157 = vpop.xlane.xlu0 %2156
    %v2158 = vrcp.pop %v2154
    %v2159 = vrcp.pop %v2157
    %v2160 = vmul.f32 %v2149, %v2158
    %v2161 = vmul.f32 %v2151, %v2159
    %2162 = vrot.lane.b32.xlu0 %v1445, 32
    %v2163 = vpop.permute.xlu0 %2162
    %2164 = vrot.lane.b32.xlu0 %v1450, 32
    %v2165 = vpop.permute.xlu0 %2164
    %v2169 = vsel %vm292, %v2160, 0
    %v2172 = vsel %vm292, %v2161, 0
    %2174 = vmatprep.subr.mxu0 0.0
    %2175 = vmatpush1.msra.mxu0 0.0
    %2176 = vmatprep.subr.mxu0 0.0
    %2177 = vmatpush1.msra.mxu0 0.0
    %2178 = vmatprep.subr.mxu0 0.0
    %2179 = vmatpush1.msra.mxu0 0.0
    %2180 = vmatprep.subr.mxu0 0.0
    %2181 = vmatpush1.msra.mxu0 0.0
    %2182 = vmatprep.subr.mxu0 0.0
    %2183 = vmatpush1.msra.mxu0 0.0
    %2184 = vmatprep.subr.mxu0 0.0
    %2185 = vmatpush1.msra.mxu0 0.0
    %2186 = vmatprep.subr.mxu0 0.0
    %2187 = vmatpush1.msra.mxu0 0.0
    %2188 = vmatprep.subr.mxu0 0.0
    %2189 = vmatpush1.msra.mxu0 0.0
    %2190 = vmatprep.subr.mxu0 0.0
    %2191 = vmatpush1.msra.mxu0 0.0
    %2192 = vmatprep.subr.mxu0 0.0
    %2193 = vmatpush1.msra.mxu0 0.0
    %2194 = vmatprep.subr.mxu0 0.0
    %2195 = vmatpush1.msra.mxu0 0.0
    %2196 = vmatprep.subr.mxu0 0.0
    %2197 = vmatpush1.msra.mxu0 0.0
    %2198 = vmatprep.subr.mxu0 0.0
    %2199 = vmatpush1.msra.mxu0 0.0
    %2200 = vmatprep.subr.mxu0 0.0
    %2201 = vmatpush1.msra.mxu0 0.0
    %2202 = vmatprep.subr.mxu0 0.0
    %2203 = vmatpush1.msra.mxu0 %v2165
    %2204 = vmatprep.subr.mxu0 0.0
    %2205 = vmatpush1.msra.mxu0 %v2163
    %2206 = vmatprep.subr.mxu0 0.0
    %2207 = vmatpush2.msra.mxu0 0.0
    %2208 = vmatprep.subr.mxu0 0.0
    %2209 = vmatpush2.msra.mxu0 0.0
    %2210 = vmatprep.subr.mxu0 0.0
    %2211 = vmatpush2.msra.mxu0 0.0
    %2212 = vmatprep.subr.mxu0 0.0
    %2213 = vmatpush2.msra.mxu0 0.0
    %2214 = vmatprep.subr.mxu0 0.0
    %2215 = vmatpush2.msra.mxu0 0.0
    %2216 = vmatprep.subr.mxu0 0.0
    %2217 = vmatpush2.msra.mxu0 0.0
    %2218 = vmatprep.subr.mxu0 0.0
    %2219 = vmatpush2.msra.mxu0 0.0
    %2220 = vmatprep.subr.mxu0 0.0
    %2221 = vmatpush2.msra.mxu0 0.0
    %2222 = vmatprep.subr.mxu0 0.0
    %2223 = vmatpush2.msra.mxu0 0.0
    %2224 = vmatprep.subr.mxu0 0.0
    %2225 = vmatpush2.msra.mxu0 0.0
    %2226 = vmatprep.subr.mxu0 0.0
    %2227 = vmatpush2.msra.mxu0 0.0
    %2228 = vmatprep.subr.mxu0 0.0
    %2229 = vmatpush2.msra.mxu0 0.0
    %2230 = vmatprep.subr.mxu0 0.0
    %2231 = vmatpush2.msra.mxu0 0.0
    %2232 = vmatprep.subr.mxu0 0.0
    %2233 = vmatpush2.msra.mxu0 0.0
    %2234 = vmatprep.subr.mxu0 0.0
    %2235 = vmatpush2.msra.mxu0 0.0
    %2236 = vmatprep.subr.mxu0 0.0
    %2237 = vmatpush2.msra.mxu0 0.0
    %2238 = vmatprep.mubr.f32.mxu0 0.0
    %2239 = vmatmul.mubr.f32.gmra.mxu0 %v2169
    %v2240 = vpop.f32.mrf.mxu0
    %v2241 = vadd.f32 0.0, %v2240
    %v2242 = vpop.f32.mrf.mxu0
    %2243 = vmatprep.mubr.f32.mxu0 0.0
    %2244 = vmatmul.mubr.f32.gmra.mxu0 %v2172
    %v2245 = vpop.f32.mrf.mxu0
    %v2246 = vadd.f32 0.0, %v2245
    %v2247 = vpop.f32.mrf.mxu0
    %2248 = vdwg.mxu0
    %v2249 = vadd.f32 %v2047, %v2241
    %v2250 = vadd.f32 %v2048, %v2246
    %v2251 = vld [vmem:[%s4 + $0x9] sm:$0x1]
    %v2252 = vlaneseq
    %v2253 = vshrl.u32 %v2252, 7
    %v2254 = vsub.s32 0, %v2253
    %v2255 = vrot.slane %v2251, %v2254
    %v2256 = vadd.f32 %v2249, %v2255
    %v2257 = vadd.f32 %v2250, %v2255
    %v2258 = vadd.f32 %v1280, %v2256
    %v2259 = vadd.f32 %v1281, %v2257
    %v2260 = vld [vmem:[%s4 + $0xa] sm:$0x1]
    %v2261 = vld [vmem:[%s4 + $0xb] sm:$0x1]
    %v2262 = vsel %vm35, %v2258, 0.0
    %2263 = vadd.xlane.f32.xlu0 %v2262
    %v2264 = vpop.xlane.xlu0 %2263
    %v2265 = vsel %vm35, %v2259, 0.0
    %2266 = vadd.xlane.f32.xlu0 %v2265
    %v2267 = vpop.xlane.xlu0 %2266
    %v2268 = vmul.f32 %v2264, %v1019
    %v2269 = vmul.f32 %v2267, %v1019
    %v2270 = vsub.f32 %v2258, %v2268
    %v2271 = vsub.f32 %v2259, %v2269
    %v2272 = vmul.f32 %v2270, %v2270
    %v2273 = vmul.f32 %v2271, %v2271
    %v2274 = vsel %vm35, %v2272, 0.0
    %2275 = vadd.xlane.f32.xlu0 %v2274
    %v2276 = vpop.xlane.xlu0 %2275
    %v2277 = vsel %vm35, %v2273, 0.0
    %2278 = vadd.xlane.f32.xlu0 %v2277
    %v2279 = vpop.xlane.xlu0 %2278
    %v2280 = vmul.f32 %v2276, %v1019
    %v2281 = vmul.f32 %v2279, %v1019
    %v2282 = vadd.f32 %v2280, 1e-05
    %v2283 = vadd.f32 %v2281, 1e-05
    %v2284 = vrsqrt.pop %v2282
    %v2285 = vrsqrt.pop %v2283
    %v2286 = vmul.f32 %v2270, %v2284
    %v2287 = vmul.f32 %v2271, %v2285
    %v2288 = vlaneseq
    %v2289 = vshrl.u32 %v2288, 7
    %v2290 = vsub.s32 0, %v2289
    %v2291 = vrot.slane %v2260, %v2290
    %v2292 = vmul.f32 %v2286, %v2291
    %v2293 = vmul.f32 %v2287, %v2291
    %v2294 = vlaneseq
    %v2295 = vshrl.u32 %v2294, 7
    %v2296 = vsub.s32 0, %v2295
    %v2297 = vrot.slane %v2261, %v2296
    %v2298 = vadd.f32 %v2292, %v2297
    %v2299 = vadd.f32 %v2293, %v2297
    %s2300 = scalar_lea.vmem %s1, 96
    %v2301 = vld [vmem:[%s2300] sm:$0xff]
    %v2302 = vld [vmem:[%s2300 + $0x8] sm:$0xff]
    %v2303 = vld [vmem:[%s2300 + $0x10] sm:$0xff]
    %v2304 = vld [vmem:[%s2300 + $0x18] sm:$0xff]
    %v2305 = vld [vmem:[%s4 + $0xc] sm:$0x1]
    %v2306 = vlaneseq
    %v2307 = vshrl.u32 %v2306, 7
    %v2308 = vsub.s32 0, %v2307
    %v2309 = vrot.slane %v2305, %v2308
    %v2311 = vsel %vm35, %v2298, 0
    %v2314 = vsel %vm35, %v2299, 0
    %2316 = vmatprep.subr.mxu0 0.0
    %2317 = vmatpush1.msra.mxu0 0.0
    %2318 = vmatprep.subr.mxu0 0.0
    %2319 = vmatpush1.msra.mxu0 0.0
    %2320 = vmatprep.subr.mxu0 0.0
    %2321 = vmatpush1.msra.mxu0 0.0
    %2322 = vmatprep.subr.mxu0 0.0
    %2323 = vmatpush1.msra.mxu0 0.0
    %2324 = vmatprep.subr.mxu0 0.0
    %2325 = vmatpush1.msra.mxu0 0.0
    %2326 = vmatprep.subr.mxu0 0.0
    %2327 = vmatpush1.msra.mxu0 0.0
    %2328 = vmatprep.subr.mxu0 0.0
    %2329 = vmatpush1.msra.mxu0 0.0
    %2330 = vmatprep.subr.mxu0 0.0
    %2331 = vmatpush1.msra.mxu0 0.0
    %2332 = vmatprep.subr.mxu0 0.0
    %2333 = vmatpush1.msra.mxu0 0.0
    %2334 = vmatprep.subr.mxu0 0.0
    %2335 = vmatpush1.msra.mxu0 0.0
    %2336 = vmatprep.subr.mxu0 0.0
    %2337 = vmatpush1.msra.mxu0 0.0
    %2338 = vmatprep.subr.mxu0 0.0
    %2339 = vmatpush1.msra.mxu0 0.0
    %2340 = vmatprep.subr.mxu0 0.0
    %2341 = vmatpush1.msra.mxu0 %v2304
    %2342 = vmatprep.subr.mxu0 0.0
    %2343 = vmatpush1.msra.mxu0 %v2303
    %2344 = vmatprep.subr.mxu0 0.0
    %2345 = vmatpush1.msra.mxu0 %v2302
    %2346 = vmatprep.subr.mxu0 0.0
    %2347 = vmatpush1.msra.mxu0 %v2301
    %2348 = vmatprep.subr.mxu0 0.0
    %2349 = vmatpush2.msra.mxu0 0.0
    %2350 = vmatprep.subr.mxu0 0.0
    %2351 = vmatpush2.msra.mxu0 0.0
    %2352 = vmatprep.subr.mxu0 0.0
    %2353 = vmatpush2.msra.mxu0 0.0
    %2354 = vmatprep.subr.mxu0 0.0
    %2355 = vmatpush2.msra.mxu0 0.0
    %2356 = vmatprep.subr.mxu0 0.0
    %2357 = vmatpush2.msra.mxu0 0.0
    %2358 = vmatprep.subr.mxu0 0.0
    %2359 = vmatpush2.msra.mxu0 0.0
    %2360 = vmatprep.subr.mxu0 0.0
    %2361 = vmatpush2.msra.mxu0 0.0
    %2362 = vmatprep.subr.mxu0 0.0
    %2363 = vmatpush2.msra.mxu0 0.0
    %2364 = vmatprep.subr.mxu0 0.0
    %2365 = vmatpush2.msra.mxu0 0.0
    %2366 = vmatprep.subr.mxu0 0.0
    %2367 = vmatpush2.msra.mxu0 0.0
    %2368 = vmatprep.subr.mxu0 0.0
    %2369 = vmatpush2.msra.mxu0 0.0
    %2370 = vmatprep.subr.mxu0 0.0
    %2371 = vmatpush2.msra.mxu0 0.0
    %2372 = vmatprep.subr.mxu0 0.0
    %2373 = vmatpush2.msra.mxu0 0.0
    %2374 = vmatprep.subr.mxu0 0.0
    %2375 = vmatpush2.msra.mxu0 0.0
    %2376 = vmatprep.subr.mxu0 0.0
    %2377 = vmatpush2.msra.mxu0 0.0
    %2378 = vmatprep.subr.mxu0 0.0
    %2379 = vmatpush2.msra.mxu0 0.0
    %2380 = vmatprep.mubr.f32.mxu0 0.0
    %2381 = vmatmul.mubr.f32.gmra.mxu0 %v2311
    %v2382 = vpop.f32.mrf.mxu0
    %v2383 = vadd.f32 %v2309, %v2382
    %v2384 = vpop.f32.mrf.mxu0
    %2385 = vmatprep.mubr.f32.mxu0 0.0
    %2386 = vmatmul.mubr.f32.gmra.mxu0 %v2314
    %v2387 = vpop.f32.mrf.mxu0
    %v2388 = vadd.f32 %v2309, %v2387
    %v2389 = vpop.f32.mrf.mxu0
    %2390 = vdwg.mxu0
    %v2391 = vmax.f32 %v2383, 0.0
    %v2392 = vmax.f32 %v2388, 0.0
    %s2393 = scalar_lea.vmem %s3, 64
    %v2394 = vld [vmem:[%s2393] sm:$0xff]
    %v2395 = vld [vmem:[%s2393 + $0x8] sm:$0xff]
    %v2396 = vld [vmem:[%s2393 + $0x10] sm:$0xff]
    %v2397 = vld [vmem:[%s2393 + $0x18] sm:$0xff]
    %v2398 = vld [vmem:[%s2393 + $0x20] sm:$0xff]
    %v2399 = vld [vmem:[%s2393 + $0x28] sm:$0xff]
    %v2400 = vld [vmem:[%s2393 + $0x30] sm:$0xff]
    %v2401 = vld [vmem:[%s2393 + $0x38] sm:$0xff]
    %v2402 = vld [vmem:[%s4 + $0xd] sm:$0x1]
    %v2403 = vlaneseq
    %v2404 = vshrl.u32 %v2403, 7
    %v2405 = vsub.s32 0, %v2404
    %v2406 = vrot.slane %v2402, %v2405
    %v2408 = vsel %vm1158, %v2391, 0
    %v2411 = vsel %vm1158, %v2392, 0
    %2413 = vmatprep.subr.mxu0 0.0
    %2414 = vmatpush1.msra.mxu0 0.0
    %2415 = vmatprep.subr.mxu0 0.0
    %2416 = vmatpush1.msra.mxu0 0.0
    %2417 = vmatprep.subr.mxu0 0.0
    %2418 = vmatpush1.msra.mxu0 0.0
    %2419 = vmatprep.subr.mxu0 0.0
    %2420 = vmatpush1.msra.mxu0 0.0
    %2421 = vmatprep.subr.mxu0 0.0
    %2422 = vmatpush1.msra.mxu0 0.0
    %2423 = vmatprep.subr.mxu0 0.0
    %2424 = vmatpush1.msra.mxu0 0.0
    %2425 = vmatprep.subr.mxu0 0.0
    %2426 = vmatpush1.msra.mxu0 0.0
    %2427 = vmatprep.subr.mxu0 0.0
    %2428 = vmatpush1.msra.mxu0 0.0
    %2429 = vmatprep.subr.mxu0 0.0
    %2430 = vmatpush1.msra.mxu0 %v2401
    %2431 = vmatprep.subr.mxu0 0.0
    %2432 = vmatpush1.msra.mxu0 %v2400
    %2433 = vmatprep.subr.mxu0 0.0
    %2434 = vmatpush1.msra.mxu0 %v2399
    %2435 = vmatprep.subr.mxu0 0.0
    %2436 = vmatpush1.msra.mxu0 %v2398
    %2437 = vmatprep.subr.mxu0 0.0
    %2438 = vmatpush1.msra.mxu0 %v2397
    %2439 = vmatprep.subr.mxu0 0.0
    %2440 = vmatpush1.msra.mxu0 %v2396
    %2441 = vmatprep.subr.mxu0 0.0
    %2442 = vmatpush1.msra.mxu0 %v2395
    %2443 = vmatprep.subr.mxu0 0.0
    %2444 = vmatpush1.msra.mxu0 %v2394
    %2445 = vmatprep.subr.mxu0 0.0
    %2446 = vmatpush2.msra.mxu0 0.0
    %2447 = vmatprep.subr.mxu0 0.0
    %2448 = vmatpush2.msra.mxu0 0.0
    %2449 = vmatprep.subr.mxu0 0.0
    %2450 = vmatpush2.msra.mxu0 0.0
    %2451 = vmatprep.subr.mxu0 0.0
    %2452 = vmatpush2.msra.mxu0 0.0
    %2453 = vmatprep.subr.mxu0 0.0
    %2454 = vmatpush2.msra.mxu0 0.0
    %2455 = vmatprep.subr.mxu0 0.0
    %2456 = vmatpush2.msra.mxu0 0.0
    %2457 = vmatprep.subr.mxu0 0.0
    %2458 = vmatpush2.msra.mxu0 0.0
    %2459 = vmatprep.subr.mxu0 0.0
    %2460 = vmatpush2.msra.mxu0 0.0
    %2461 = vmatprep.subr.mxu0 0.0
    %2462 = vmatpush2.msra.mxu0 0.0
    %2463 = vmatprep.subr.mxu0 0.0
    %2464 = vmatpush2.msra.mxu0 0.0
    %2465 = vmatprep.subr.mxu0 0.0
    %2466 = vmatpush2.msra.mxu0 0.0
    %2467 = vmatprep.subr.mxu0 0.0
    %2468 = vmatpush2.msra.mxu0 0.0
    %2469 = vmatprep.subr.mxu0 0.0
    %2470 = vmatpush2.msra.mxu0 0.0
    %2471 = vmatprep.subr.mxu0 0.0
    %2472 = vmatpush2.msra.mxu0 0.0
    %2473 = vmatprep.subr.mxu0 0.0
    %2474 = vmatpush2.msra.mxu0 0.0
    %2475 = vmatprep.subr.mxu0 0.0
    %2476 = vmatpush2.msra.mxu0 0.0
    %2477 = vmatprep.mubr.f32.mxu0 0.0
    %2478 = vmatmul.mubr.f32.gmra.mxu0 %v2408
    %v2479 = vpop.f32.mrf.mxu0
    %v2480 = vadd.f32 %v2406, %v2479
    %v2481 = vpop.f32.mrf.mxu0
    %2482 = vmatprep.mubr.f32.mxu0 0.0
    %2483 = vmatmul.mubr.f32.gmra.mxu0 %v2411
    %v2484 = vpop.f32.mrf.mxu0
    %v2485 = vadd.f32 %v2406, %v2484
    %v2486 = vpop.f32.mrf.mxu0
    %2487 = vdwg.mxu0
    %v2488 = vadd.f32 %v2298, %v2480
    %v2489 = vadd.f32 %v2299, %v2485
    %v2490 = vld [vmem:[%s4 + $0xe] sm:$0x1]
    %v2491 = vld [vmem:[%s4 + $0xf] sm:$0x1]
    %v2492 = vsel %vm35, %v2488, 0.0
    %2493 = vadd.xlane.f32.xlu0 %v2492
    %v2494 = vpop.xlane.xlu0 %2493
    %v2495 = vsel %vm35, %v2489, 0.0
    %2496 = vadd.xlane.f32.xlu0 %v2495
    %v2497 = vpop.xlane.xlu0 %2496
    %v2498 = vmul.f32 %v2494, %v1019
    %v2499 = vmul.f32 %v2497, %v1019
    %v2500 = vsub.f32 %v2488, %v2498
    %v2501 = vsub.f32 %v2489, %v2499
    %v2502 = vmul.f32 %v2500, %v2500
    %v2503 = vmul.f32 %v2501, %v2501
    %v2504 = vsel %vm35, %v2502, 0.0
    %2505 = vadd.xlane.f32.xlu0 %v2504
    %v2506 = vpop.xlane.xlu0 %2505
    %v2507 = vsel %vm35, %v2503, 0.0
    %2508 = vadd.xlane.f32.xlu0 %v2507
    %v2509 = vpop.xlane.xlu0 %2508
    %v2510 = vmul.f32 %v2506, %v1019
    %v2511 = vmul.f32 %v2509, %v1019
    %v2512 = vadd.f32 %v2510, 1e-05
    %v2513 = vadd.f32 %v2511, 1e-05
    %v2514 = vrsqrt.pop %v2512
    %v2515 = vrsqrt.pop %v2513
    %v2516 = vmul.f32 %v2500, %v2514
    %v2517 = vmul.f32 %v2501, %v2515
    %v2518 = vlaneseq
    %v2519 = vshrl.u32 %v2518, 7
    %v2520 = vsub.s32 0, %v2519
    %v2521 = vrot.slane %v2490, %v2520
    %v2522 = vmul.f32 %v2516, %v2521
    %v2523 = vmul.f32 %v2517, %v2521
    %v2524 = vlaneseq
    %v2525 = vshrl.u32 %v2524, 7
    %v2526 = vsub.s32 0, %v2525
    %v2527 = vrot.slane %v2491, %v2526
    %v2528 = vadd.f32 %v2522, %v2527
    %v2529 = vadd.f32 %v2523, %v2527
    %s2530 = scalar_lea.vmem %s1, 128
    %v2531 = vld [vmem:[%s2530] sm:$0xff]
    %v2532 = vld [vmem:[%s2530 + $0x8] sm:$0xff]
    %v2533 = vld [vmem:[%s2530 + $0x10] sm:$0xff]
    %v2534 = vld [vmem:[%s2530 + $0x18] sm:$0xff]
    %v2535 = vld [vmem:[%s4 + $0x10] sm:$0x1]
    %v2536 = vlaneseq
    %v2537 = vshrl.u32 %v2536, 7
    %v2538 = vsub.s32 0, %v2537
    %v2539 = vrot.slane %v2535, %v2538
    %v2541 = vsel %vm35, %v23, 0
    %v2544 = vsel %vm35, %v24, 0
    %2546 = vmatprep.subr.mxu0 0.0
    %2547 = vmatpush1.msra.mxu0 0.0
    %2548 = vmatprep.subr.mxu0 0.0
    %2549 = vmatpush1.msra.mxu0 0.0
    %2550 = vmatprep.subr.mxu0 0.0
    %2551 = vmatpush1.msra.mxu0 0.0
    %2552 = vmatprep.subr.mxu0 0.0
    %2553 = vmatpush1.msra.mxu0 0.0
    %2554 = vmatprep.subr.mxu0 0.0
    %2555 = vmatpush1.msra.mxu0 0.0
    %2556 = vmatprep.subr.mxu0 0.0
    %2557 = vmatpush1.msra.mxu0 0.0
    %2558 = vmatprep.subr.mxu0 0.0
    %2559 = vmatpush1.msra.mxu0 0.0
    %2560 = vmatprep.subr.mxu0 0.0
    %2561 = vmatpush1.msra.mxu0 0.0
    %2562 = vmatprep.subr.mxu0 0.0
    %2563 = vmatpush1.msra.mxu0 0.0
    %2564 = vmatprep.subr.mxu0 0.0
    %2565 = vmatpush1.msra.mxu0 0.0
    %2566 = vmatprep.subr.mxu0 0.0
    %2567 = vmatpush1.msra.mxu0 0.0
    %2568 = vmatprep.subr.mxu0 0.0
    %2569 = vmatpush1.msra.mxu0 0.0
    %2570 = vmatprep.subr.mxu0 0.0
    %2571 = vmatpush1.msra.mxu0 %v2534
    %2572 = vmatprep.subr.mxu0 0.0
    %2573 = vmatpush1.msra.mxu0 %v2533
    %2574 = vmatprep.subr.mxu0 0.0
    %2575 = vmatpush1.msra.mxu0 %v2532
    %2576 = vmatprep.subr.mxu0 0.0
    %2577 = vmatpush1.msra.mxu0 %v2531
    %2578 = vmatprep.subr.mxu0 0.0
    %2579 = vmatpush2.msra.mxu0 0.0
    %2580 = vmatprep.subr.mxu0 0.0
    %2581 = vmatpush2.msra.mxu0 0.0
    %2582 = vmatprep.subr.mxu0 0.0
    %2583 = vmatpush2.msra.mxu0 0.0
    %2584 = vmatprep.subr.mxu0 0.0
    %2585 = vmatpush2.msra.mxu0 0.0
    %2586 = vmatprep.subr.mxu0 0.0
    %2587 = vmatpush2.msra.mxu0 0.0
    %2588 = vmatprep.subr.mxu0 0.0
    %2589 = vmatpush2.msra.mxu0 0.0
    %2590 = vmatprep.subr.mxu0 0.0
    %2591 = vmatpush2.msra.mxu0 0.0
    %2592 = vmatprep.subr.mxu0 0.0
    %2593 = vmatpush2.msra.mxu0 0.0
    %2594 = vmatprep.subr.mxu0 0.0
    %2595 = vmatpush2.msra.mxu0 0.0
    %2596 = vmatprep.subr.mxu0 0.0
    %2597 = vmatpush2.msra.mxu0 0.0
    %2598 = vmatprep.subr.mxu0 0.0
    %2599 = vmatpush2.msra.mxu0 0.0
    %2600 = vmatprep.subr.mxu0 0.0
    %2601 = vmatpush2.msra.mxu0 0.0
    %2602 = vmatprep.subr.mxu0 0.0
    %2603 = vmatpush2.msra.mxu0 0.0
    %2604 = vmatprep.subr.mxu0 0.0
    %2605 = vmatpush2.msra.mxu0 0.0
    %2606 = vmatprep.subr.mxu0 0.0
    %2607 = vmatpush2.msra.mxu0 0.0
    %2608 = vmatprep.subr.mxu0 0.0
    %2609 = vmatpush2.msra.mxu0 0.0
    %2610 = vmatprep.mubr.f32.mxu0 0.0
    %2611 = vmatmul.mubr.f32.gmra.mxu0 %v2541
    %v2612 = vpop.f32.mrf.mxu0
    %v2613 = vadd.f32 %v2539, %v2612
    %v2614 = vpop.f32.mrf.mxu0
    %2615 = vmatprep.mubr.f32.mxu0 0.0
    %2616 = vmatmul.mubr.f32.gmra.mxu0 %v2544
    %v2617 = vpop.f32.mrf.mxu0
    %v2618 = vadd.f32 %v2539, %v2617
    %v2619 = vpop.f32.mrf.mxu0
    %2620 = vdwg.mxu0
    %v2622 = vsel %vm35, %v2528, 0
    %v2625 = vsel %vm35, %v2529, 0
    %2627 = vmatprep.subr.mxu0 0.0
    %2628 = vmatpush1.msra.mxu0 0.0
    %2629 = vmatprep.subr.mxu0 0.0
    %2630 = vmatpush1.msra.mxu0 0.0
    %2631 = vmatprep.subr.mxu0 0.0
    %2632 = vmatpush1.msra.mxu0 0.0
    %2633 = vmatprep.subr.mxu0 0.0
    %2634 = vmatpush1.msra.mxu0 0.0
    %2635 = vmatprep.subr.mxu0 0.0
    %2636 = vmatpush1.msra.mxu0 0.0
    %2637 = vmatprep.subr.mxu0 0.0
    %2638 = vmatpush1.msra.mxu0 0.0
    %2639 = vmatprep.subr.mxu0 0.0
    %2640 = vmatpush1.msra.mxu0 0.0
    %2641 = vmatprep.subr.mxu0 0.0
    %2642 = vmatpush1.msra.mxu0 0.0
    %2643 = vmatprep.subr.mxu0 0.0
    %2644 = vmatpush1.msra.mxu0 0.0
    %2645 = vmatprep.subr.mxu0 0.0
    %2646 = vmatpush1.msra.mxu0 0.0
    %2647 = vmatprep.subr.mxu0 0.0
    %2648 = vmatpush1.msra.mxu0 0.0
    %2649 = vmatprep.subr.mxu0 0.0
    %2650 = vmatpush1.msra.mxu0 0.0
    %2651 = vmatprep.subr.mxu0 0.0
    %2652 = vmatpush1.msra.mxu0 %v2534
    %2653 = vmatprep.subr.mxu0 0.0
    %2654 = vmatpush1.msra.mxu0 %v2533
    %2655 = vmatprep.subr.mxu0 0.0
    %2656 = vmatpush1.msra.mxu0 %v2532
    %2657 = vmatprep.subr.mxu0 0.0
    %2658 = vmatpush1.msra.mxu0 %v2531
    %2659 = vmatprep.subr.mxu0 0.0
    %2660 = vmatpush2.msra.mxu0 0.0
    %2661 = vmatprep.subr.mxu0 0.0
    %2662 = vmatpush2.msra.mxu0 0.0
    %2663 = vmatprep.subr.mxu0 0.0
    %2664 = vmatpush2.msra.mxu0 0.0
    %2665 = vmatprep.subr.mxu0 0.0
    %2666 = vmatpush2.msra.mxu0 0.0
    %2667 = vmatprep.subr.mxu0 0.0
    %2668 = vmatpush2.msra.mxu0 0.0
    %2669 = vmatprep.subr.mxu0 0.0
    %2670 = vmatpush2.msra.mxu0 0.0
    %2671 = vmatprep.subr.mxu0 0.0
    %2672 = vmatpush2.msra.mxu0 0.0
    %2673 = vmatprep.subr.mxu0 0.0
    %2674 = vmatpush2.msra.mxu0 0.0
    %2675 = vmatprep.subr.mxu0 0.0
    %2676 = vmatpush2.msra.mxu0 0.0
    %2677 = vmatprep.subr.mxu0 0.0
    %2678 = vmatpush2.msra.mxu0 0.0
    %2679 = vmatprep.subr.mxu0 0.0
    %2680 = vmatpush2.msra.mxu0 0.0
    %2681 = vmatprep.subr.mxu0 0.0
    %2682 = vmatpush2.msra.mxu0 0.0
    %2683 = vmatprep.subr.mxu0 0.0
    %2684 = vmatpush2.msra.mxu0 0.0
    %2685 = vmatprep.subr.mxu0 0.0
    %2686 = vmatpush2.msra.mxu0 0.0
    %2687 = vmatprep.subr.mxu0 0.0
    %2688 = vmatpush2.msra.mxu0 0.0
    %2689 = vmatprep.subr.mxu0 0.0
    %2690 = vmatpush2.msra.mxu0 0.0
    %2691 = vmatprep.mubr.f32.mxu0 0.0
    %2692 = vmatmul.mubr.f32.gmra.mxu0 %v2622
    %v2693 = vpop.f32.mrf.mxu0
    %v2694 = vadd.f32 %v2539, %v2693
    %v2695 = vpop.f32.mrf.mxu0
    %2696 = vmatprep.mubr.f32.mxu0 0.0
    %2697 = vmatmul.mubr.f32.gmra.mxu0 %v2625
    %v2698 = vpop.f32.mrf.mxu0
    %v2699 = vadd.f32 %v2539, %v2698
    %v2700 = vpop.f32.mrf.mxu0
    %2701 = vdwg.mxu0
    %s2702 = scalar_lea.vmem %s2, 64
    %v2703 = vld [vmem:[%s2702] sm:$0xff]
    %v2704 = vld [vmem:[%s2702 + $0x8] sm:$0xff]
    %v2705 = vld [vmem:[%s2702 + $0x10] sm:$0xff]
    %v2706 = vld [vmem:[%s2702 + $0x18] sm:$0xff]
    %2707 = vmatprep.subr.mxu0 0.0
    %2708 = vmatpush1.msra.mxu0 0.0
    %2709 = vmatprep.subr.mxu0 0.0
    %2710 = vmatpush1.msra.mxu0 0.0
    %2711 = vmatprep.subr.mxu0 0.0
    %2712 = vmatpush1.msra.mxu0 0.0
    %2713 = vmatprep.subr.mxu0 0.0
    %2714 = vmatpush1.msra.mxu0 0.0
    %2715 = vmatprep.subr.mxu0 0.0
    %2716 = vmatpush1.msra.mxu0 0.0
    %2717 = vmatprep.subr.mxu0 0.0
    %2718 = vmatpush1.msra.mxu0 0.0
    %2719 = vmatprep.subr.mxu0 0.0
    %2720 = vmatpush1.msra.mxu0 0.0
    %2721 = vmatprep.subr.mxu0 0.0
    %2722 = vmatpush1.msra.mxu0 0.0
    %2723 = vmatprep.subr.mxu0 0.0
    %2724 = vmatpush1.msra.mxu0 0.0
    %2725 = vmatprep.subr.mxu0 0.0
    %2726 = vmatpush1.msra.mxu0 0.0
    %2727 = vmatprep.subr.mxu0 0.0
    %2728 = vmatpush1.msra.mxu0 0.0
    %2729 = vmatprep.subr.mxu0 0.0
    %2730 = vmatpush1.msra.mxu0 0.0
    %2731 = vmatprep.subr.mxu0 0.0
    %2732 = vmatpush1.msra.mxu0 %v2706
    %2733 = vmatprep.subr.mxu0 0.0
    %2734 = vmatpush1.msra.mxu0 %v2705
    %2735 = vmatprep.subr.mxu0 0.0
    %2736 = vmatpush1.msra.mxu0 %v2704
    %2737 = vmatprep.subr.mxu0 0.0
    %2738 = vmatpush1.msra.mxu0 %v2703
    %2739 = vmatprep.subr.mxu0 0.0
    %2740 = vmatpush2.msra.mxu0 0.0
    %2741 = vmatprep.subr.mxu0 0.0
    %2742 = vmatpush2.msra.mxu0 0.0
    %2743 = vmatprep.subr.mxu0 0.0
    %2744 = vmatpush2.msra.mxu0 0.0
    %2745 = vmatprep.subr.mxu0 0.0
    %2746 = vmatpush2.msra.mxu0 0.0
    %2747 = vmatprep.subr.mxu0 0.0
    %2748 = vmatpush2.msra.mxu0 0.0
    %2749 = vmatprep.subr.mxu0 0.0
    %2750 = vmatpush2.msra.mxu0 0.0
    %2751 = vmatprep.subr.mxu0 0.0
    %2752 = vmatpush2.msra.mxu0 0.0
    %2753 = vmatprep.subr.mxu0 0.0
    %2754 = vmatpush2.msra.mxu0 0.0
    %2755 = vmatprep.subr.mxu0 0.0
    %2756 = vmatpush2.msra.mxu0 0.0
    %2757 = vmatprep.subr.mxu0 0.0
    %2758 = vmatpush2.msra.mxu0 0.0
    %2759 = vmatprep.subr.mxu0 0.0
    %2760 = vmatpush2.msra.mxu0 0.0
    %2761 = vmatprep.subr.mxu0 0.0
    %2762 = vmatpush2.msra.mxu0 0.0
    %2763 = vmatprep.subr.mxu0 0.0
    %2764 = vmatpush2.msra.mxu0 0.0
    %2765 = vmatprep.subr.mxu0 0.0
    %2766 = vmatpush2.msra.mxu0 0.0
    %2767 = vmatprep.subr.mxu0 0.0
    %2768 = vmatpush2.msra.mxu0 0.0
    %2769 = vmatprep.subr.mxu0 0.0
    %2770 = vmatpush2.msra.mxu0 0.0
    %2771 = vmatprep.mubr.f32.mxu0 0.0
    %2772 = vmatmul.mubr.f32.gmra.mxu0 %v2622
    %v2773 = vpop.f32.mrf.mxu0
    %v2774 = vadd.f32 0.0, %v2773
    %v2775 = vpop.f32.mrf.mxu0
    %2776 = vmatprep.mubr.f32.mxu0 0.0
    %2777 = vmatmul.mubr.f32.gmra.mxu0 %v2625
    %v2778 = vpop.f32.mrf.mxu0
    %v2779 = vadd.f32 0.0, %v2778
    %v2780 = vpop.f32.mrf.mxu0
    %2781 = vdwg.mxu0
    %2784 = vrot.lane.b32.xlu0 %v2694, 96
    %v2785 = vpop.permute.xlu0 %2784
    %2786 = vrot.lane.b32.xlu0 %v2699, 96
    %v2787 = vpop.permute.xlu0 %2786
    %2788 = vrot.lane.b32.xlu0 %v23, 96
    %v2789 = vpop.permute.xlu0 %2788
    %2790 = vrot.lane.b32.xlu0 %v24, 96
    %v2791 = vpop.permute.xlu0 %2790
    %v2795 = vsel %vm208, %v2613, 0
    %v2798 = vsel %vm208, %v2618, 0
    %v2800 = vsel %vm208, %v2785, 0
    %v2802 = vsel %vm208, %v2787, 0
    %2804 = vmatprep.subr.mxu0 0.0
    %2805 = vmatpush1.xpose.msra.mxu0 0.0
    %2806 = vmatprep.subr.mxu0 0.0
    %2807 = vmatpush1.xpose.msra.mxu0 0.0
    %2808 = vmatprep.subr.mxu0 0.0
    %2809 = vmatpush1.xpose.msra.mxu0 0.0
    %2810 = vmatprep.subr.mxu0 0.0
    %2811 = vmatpush1.xpose.msra.mxu0 0.0
    %2812 = vmatprep.subr.mxu0 0.0
    %2813 = vmatpush1.xpose.msra.mxu0 0.0
    %2814 = vmatprep.subr.mxu0 0.0
    %2815 = vmatpush1.xpose.msra.mxu0 0.0
    %2816 = vmatprep.subr.mxu0 0.0
    %2817 = vmatpush1.xpose.msra.mxu0 0.0
    %2818 = vmatprep.subr.mxu0 0.0
    %2819 = vmatpush1.xpose.msra.mxu0 0.0
    %2820 = vmatprep.subr.mxu0 0.0
    %2821 = vmatpush1.xpose.msra.mxu0 0.0
    %2822 = vmatprep.subr.mxu0 0.0
    %2823 = vmatpush1.xpose.msra.mxu0 0.0
    %2824 = vmatprep.subr.mxu0 0.0
    %2825 = vmatpush1.xpose.msra.mxu0 0.0
    %2826 = vmatprep.subr.mxu0 0.0
    %2827 = vmatpush1.xpose.msra.mxu0 0.0
    %2828 = vmatprep.subr.mxu0 0.0
    %2829 = vmatpush1.xpose.msra.mxu0 0.0
    %2830 = vmatprep.subr.mxu0 0.0
    %2831 = vmatpush1.xpose.msra.mxu0 0.0
    %2832 = vmatprep.subr.mxu0 0.0
    %2833 = vmatpush1.xpose.msra.mxu0 %v2802
    %2834 = vmatprep.subr.mxu0 0.0
    %2835 = vmatpush1.xpose.msra.mxu0 %v2800
    %2836 = vmatprep.subr.mxu0 0.0
    %2837 = vmatpush2.xpose.msra.mxu0 0.0
    %2838 = vmatprep.subr.mxu0 0.0
    %2839 = vmatpush2.xpose.msra.mxu0 0.0
    %2840 = vmatprep.subr.mxu0 0.0
    %2841 = vmatpush2.xpose.msra.mxu0 0.0
    %2842 = vmatprep.subr.mxu0 0.0
    %2843 = vmatpush2.xpose.msra.mxu0 0.0
    %2844 = vmatprep.subr.mxu0 0.0
    %2845 = vmatpush2.xpose.msra.mxu0 0.0
    %2846 = vmatprep.subr.mxu0 0.0
    %2847 = vmatpush2.xpose.msra.mxu0 0.0
    %2848 = vmatprep.subr.mxu0 0.0
    %2849 = vmatpush2.xpose.msra.mxu0 0.0
    %2850 = vmatprep.subr.mxu0 0.0
    %2851 = vmatpush2.xpose.msra.mxu0 0.0
    %2852 = vmatprep.subr.mxu0 0.0
    %2853 = vmatpush2.xpose.msra.mxu0 0.0
    %2854 = vmatprep.subr.mxu0 0.0
    %2855 = vmatpush2.xpose.msra.mxu0 0.0
    %2856 = vmatprep.subr.mxu0 0.0
    %2857 = vmatpush2.xpose.msra.mxu0 0.0
    %2858 = vmatprep.subr.mxu0 0.0
    %2859 = vmatpush2.xpose.msra.mxu0 0.0
    %2860 = vmatprep.subr.mxu0 0.0
    %2861 = vmatpush2.xpose.msra.mxu0 0.0
    %2862 = vmatprep.subr.mxu0 0.0
    %2863 = vmatpush2.xpose.msra.mxu0 0.0
    %2864 = vmatprep.subr.mxu0 0.0
    %2865 = vmatpush2.xpose.msra.mxu0 0.0
    %2866 = vmatprep.subr.mxu0 0.0
    %2867 = vmatpush2.xpose.msra.mxu0 0.0
    %2868 = vmatprep.mubr.f32.mxu0 0.0
    %2869 = vmatmul.mubr.f32.gmra.mxu0 %v2795
    %v2870 = vpop.f32.mrf.mxu0
    %v2871 = vadd.f32 %v2789, %v2870
    %v2872 = vpop.f32.mrf.mxu0
    %2873 = vmatprep.mubr.f32.mxu0 0.0
    %2874 = vmatmul.mubr.f32.gmra.mxu0 %v2798
    %v2875 = vpop.f32.mrf.mxu0
    %v2876 = vadd.f32 %v2791, %v2875
    %v2877 = vpop.f32.mrf.mxu0
    %2878 = vdwg.mxu0
    %v2879 = vsel %vm292, %v2871, -inf
    %2880 = vmax.xlane.f32.xlu0 %v2879
    %v2881 = vpop.xlane.xlu0 %2880
    %v2882 = vsel %vm292, %v2876, -inf
    %2883 = vmax.xlane.f32.xlu0 %v2882
    %v2884 = vpop.xlane.xlu0 %2883
    %v2885 = vsub.f32 %v2871, %v2881
    %v2886 = vsub.f32 %v2876, %v2884
    %v2887 = vmul.f32 %v2885, 1.442695
    %v2888 = vpow.pop %v2887
    %v2889 = vmul.f32 %v2886, 1.442695
    %v2890 = vpow.pop %v2889
    %v2891 = vsel %vm292, %v2888, 0.0
    %2892 = vadd.xlane.f32.xlu0 %v2891
    %v2893 = vpop.xlane.xlu0 %2892
    %v2894 = vsel %vm292, %v2890, 0.0
    %2895 = vadd.xlane.f32.xlu0 %v2894
    %v2896 = vpop.xlane.xlu0 %2895
    %v2897 = vrcp.pop %v2893
    %v2898 = vrcp.pop %v2896
    %v2899 = vmul.f32 %v2888, %v2897
    %v2900 = vmul.f32 %v2890, %v2898
    %2901 = vrot.lane.b32.xlu0 %v2613, 120
    %v2902 = vpop.permute.xlu0 %2901
    %2903 = vrot.lane.b32.xlu0 %v2618, 120
    %v2904 = vpop.permute.xlu0 %2903
    %2905 = vrot.lane.b32.xlu0 %v2694, 88
    %v2906 = vpop.permute.xlu0 %2905
    %2907 = vrot.lane.b32.xlu0 %v2699, 88
    %v2908 = vpop.permute.xlu0 %2907
    %v2909 = vsel %vm208, %v2902, 0
    %v2911 = vsel %vm208, %v2904, 0
    %v2913 = vsel %vm208, %v2906, 0
    %v2915 = vsel %vm208, %v2908, 0
    %2917 = vmatprep.subr.mxu0 0.0
    %2918 = vmatpush1.xpose.msra.mxu0 0.0
    %2919 = vmatprep.subr.mxu0 0.0
    %2920 = vmatpush1.xpose.msra.mxu0 0.0
    %2921 = vmatprep.subr.mxu0 0.0
    %2922 = vmatpush1.xpose.msra.mxu0 0.0
    %2923 = vmatprep.subr.mxu0 0.0
    %2924 = vmatpush1.xpose.msra.mxu0 0.0
    %2925 = vmatprep.subr.mxu0 0.0
    %2926 = vmatpush1.xpose.msra.mxu0 0.0
    %2927 = vmatprep.subr.mxu0 0.0
    %2928 = vmatpush1.xpose.msra.mxu0 0.0
    %2929 = vmatprep.subr.mxu0 0.0
    %2930 = vmatpush1.xpose.msra.mxu0 0.0
    %2931 = vmatprep.subr.mxu0 0.0
    %2932 = vmatpush1.xpose.msra.mxu0 0.0
    %2933 = vmatprep.subr.mxu0 0.0
    %2934 = vmatpush1.xpose.msra.mxu0 0.0
    %2935 = vmatprep.subr.mxu0 0.0
    %2936 = vmatpush1.xpose.msra.mxu0 0.0
    %2937 = vmatprep.subr.mxu0 0.0
    %2938 = vmatpush1.xpose.msra.mxu0 0.0
    %2939 = vmatprep.subr.mxu0 0.0
    %2940 = vmatpush1.xpose.msra.mxu0 0.0
    %2941 = vmatprep.subr.mxu0 0.0
    %2942 = vmatpush1.xpose.msra.mxu0 0.0
    %2943 = vmatprep.subr.mxu0 0.0
    %2944 = vmatpush1.xpose.msra.mxu0 0.0
    %2945 = vmatprep.subr.mxu0 0.0
    %2946 = vmatpush1.xpose.msra.mxu0 %v2915
    %2947 = vmatprep.subr.mxu0 0.0
    %2948 = vmatpush1.xpose.msra.mxu0 %v2913
    %2949 = vmatprep.subr.mxu0 0.0
    %2950 = vmatpush2.xpose.msra.mxu0 0.0
    %2951 = vmatprep.subr.mxu0 0.0
    %2952 = vmatpush2.xpose.msra.mxu0 0.0
    %2953 = vmatprep.subr.mxu0 0.0
    %2954 = vmatpush2.xpose.msra.mxu0 0.0
    %2955 = vmatprep.subr.mxu0 0.0
    %2956 = vmatpush2.xpose.msra.mxu0 0.0
    %2957 = vmatprep.subr.mxu0 0.0
    %2958 = vmatpush2.xpose.msra.mxu0 0.0
    %2959 = vmatprep.subr.mxu0 0.0
    %2960 = vmatpush2.xpose.msra.mxu0 0.0
    %2961 = vmatprep.subr.mxu0 0.0
    %2962 = vmatpush2.xpose.msra.mxu0 0.0
    %2963 = vmatprep.subr.mxu0 0.0
    %2964 = vmatpush2.xpose.msra.mxu0 0.0
    %2965 = vmatprep.subr.mxu0 0.0
    %2966 = vmatpush2.xpose.msra.mxu0 0.0
    %2967 = vmatprep.subr.mxu0 0.0
    %2968 = vmatpush2.xpose.msra.mxu0 0.0
    %2969 = vmatprep.subr.mxu0 0.0
    %2970 = vmatpush2.xpose.msra.mxu0 0.0
    %2971 = vmatprep.subr.mxu0 0.0
    %2972 = vmatpush2.xpose.msra.mxu0 0.0
    %2973 = vmatprep.subr.mxu0 0.0
    %2974 = vmatpush2.xpose.msra.mxu0 0.0
    %2975 = vmatprep.subr.mxu0 0.0
    %2976 = vmatpush2.xpose.msra.mxu0 0.0
    %2977 = vmatprep.subr.mxu0 0.0
    %2978 = vmatpush2.xpose.msra.mxu0 0.0
    %2979 = vmatprep.subr.mxu0 0.0
    %2980 = vmatpush2.xpose.msra.mxu0 0.0
    %2981 = vmatprep.mubr.f32.mxu0 0.0
    %2982 = vmatmul.mubr.f32.gmra.mxu0 %v2909
    %v2983 = vpop.f32.mrf.mxu0
    %v2984 = vadd.f32 %v2789, %v2983
    %v2985 = vpop.f32.mrf.mxu0
    %2986 = vmatprep.mubr.f32.mxu0 0.0
    %2987 = vmatmul.mubr.f32.gmra.mxu0 %v2911
    %v2988 = vpop.f32.mrf.mxu0
    %v2989 = vadd.f32 %v2791, %v2988
    %v2990 = vpop.f32.mrf.mxu0
    %2991 = vdwg.mxu0
    %v2992 = vsel %vm292, %v2984, -inf
    %2993 = vmax.xlane.f32.xlu0 %v2992
    %v2994 = vpop.xlane.xlu0 %2993
    %v2995 = vsel %vm292, %v2989, -inf
    %2996 = vmax.xlane.f32.xlu0 %v2995
    %v2997 = vpop.xlane.xlu0 %2996
    %v2998 = vsub.f32 %v2984, %v2994
    %v2999 = vsub.f32 %v2989, %v2997
    %v3000 = vmul.f32 %v2998, 1.442695
    %v3001 = vpow.pop %v3000
    %v3002 = vmul.f32 %v2999, 1.442695
    %v3003 = vpow.pop %v3002
    %v3004 = vsel %vm292, %v3001, 0.0
    %3005 = vadd.xlane.f32.xlu0 %v3004
    %v3006 = vpop.xlane.xlu0 %3005
    %v3007 = vsel %vm292, %v3003, 0.0
    %3008 = vadd.xlane.f32.xlu0 %v3007
    %v3009 = vpop.xlane.xlu0 %3008
    %v3010 = vrcp.pop %v3006
    %v3011 = vrcp.pop %v3009
    %v3012 = vmul.f32 %v3001, %v3010
    %v3013 = vmul.f32 %v3003, %v3011
    %3016 = vrot.lane.b32.xlu0 %v2774, 96
    %v3017 = vpop.permute.xlu0 %3016
    %3018 = vrot.lane.b32.xlu0 %v2779, 96
    %v3019 = vpop.permute.xlu0 %3018
    %v3023 = vsel %vm292, %v3012, 0
    %v3026 = vsel %vm292, %v3013, 0
    %3028 = vmatprep.subr.mxu0 0.0
    %3029 = vmatpush1.msra.mxu0 0.0
    %3030 = vmatprep.subr.mxu0 0.0
    %3031 = vmatpush1.msra.mxu0 0.0
    %3032 = vmatprep.subr.mxu0 0.0
    %3033 = vmatpush1.msra.mxu0 0.0
    %3034 = vmatprep.subr.mxu0 0.0
    %3035 = vmatpush1.msra.mxu0 0.0
    %3036 = vmatprep.subr.mxu0 0.0
    %3037 = vmatpush1.msra.mxu0 0.0
    %3038 = vmatprep.subr.mxu0 0.0
    %3039 = vmatpush1.msra.mxu0 0.0
    %3040 = vmatprep.subr.mxu0 0.0
    %3041 = vmatpush1.msra.mxu0 0.0
    %3042 = vmatprep.subr.mxu0 0.0
    %3043 = vmatpush1.msra.mxu0 0.0
    %3044 = vmatprep.subr.mxu0 0.0
    %3045 = vmatpush1.msra.mxu0 0.0
    %3046 = vmatprep.subr.mxu0 0.0
    %3047 = vmatpush1.msra.mxu0 0.0
    %3048 = vmatprep.subr.mxu0 0.0
    %3049 = vmatpush1.msra.mxu0 0.0
    %3050 = vmatprep.subr.mxu0 0.0
    %3051 = vmatpush1.msra.mxu0 0.0
    %3052 = vmatprep.subr.mxu0 0.0
    %3053 = vmatpush1.msra.mxu0 0.0
    %3054 = vmatprep.subr.mxu0 0.0
    %3055 = vmatpush1.msra.mxu0 0.0
    %3056 = vmatprep.subr.mxu0 0.0
    %3057 = vmatpush1.msra.mxu0 %v3019
    %3058 = vmatprep.subr.mxu0 0.0
    %3059 = vmatpush1.msra.mxu0 %v3017
    %3060 = vmatprep.subr.mxu0 0.0
    %3061 = vmatpush2.msra.mxu0 0.0
    %3062 = vmatprep.subr.mxu0 0.0
    %3063 = vmatpush2.msra.mxu0 0.0
    %3064 = vmatprep.subr.mxu0 0.0
    %3065 = vmatpush2.msra.mxu0 0.0
    %3066 = vmatprep.subr.mxu0 0.0
    %3067 = vmatpush2.msra.mxu0 0.0
    %3068 = vmatprep.subr.mxu0 0.0
    %3069 = vmatpush2.msra.mxu0 0.0
    %3070 = vmatprep.subr.mxu0 0.0
    %3071 = vmatpush2.msra.mxu0 0.0
    %3072 = vmatprep.subr.mxu0 0.0
    %3073 = vmatpush2.msra.mxu0 0.0
    %3074 = vmatprep.subr.mxu0 0.0
    %3075 = vmatpush2.msra.mxu0 0.0
    %3076 = vmatprep.subr.mxu0 0.0
    %3077 = vmatpush2.msra.mxu0 0.0
    %3078 = vmatprep.subr.mxu0 0.0
    %3079 = vmatpush2.msra.mxu0 0.0
    %3080 = vmatprep.subr.mxu0 0.0
    %3081 = vmatpush2.msra.mxu0 0.0
    %3082 = vmatprep.subr.mxu0 0.0
    %3083 = vmatpush2.msra.mxu0 0.0
    %3084 = vmatprep.subr.mxu0 0.0
    %3085 = vmatpush2.msra.mxu0 0.0
    %3086 = vmatprep.subr.mxu0 0.0
    %3087 = vmatpush2.msra.mxu0 0.0
    %3088 = vmatprep.subr.mxu0 0.0
    %3089 = vmatpush2.msra.mxu0 0.0
    %3090 = vmatprep.subr.mxu0 0.0
    %3091 = vmatpush2.msra.mxu0 0.0
    %3092 = vmatprep.mubr.f32.mxu0 0.0
    %3093 = vmatmul.mubr.f32.gmra.mxu0 %v3023
    %v3094 = vpop.f32.mrf.mxu0
    %v3095 = vadd.f32 0.0, %v3094
    %v3096 = vpop.f32.mrf.mxu0
    %3097 = vmatprep.mubr.f32.mxu0 0.0
    %3098 = vmatmul.mubr.f32.gmra.mxu0 %v3026
    %v3099 = vpop.f32.mrf.mxu0
    %v3100 = vadd.f32 0.0, %v3099
    %v3101 = vpop.f32.mrf.mxu0
    %3102 = vdwg.mxu0
    %v3104 = vsel %vm292, %v2899, 0
    %v3107 = vsel %vm292, %v2900, 0
    %3109 = vmatprep.subr.mxu0 0.0
    %3110 = vmatpush1.msra.mxu0 0.0
    %3111 = vmatprep.subr.mxu0 0.0
    %3112 = vmatpush1.msra.mxu0 0.0
    %3113 = vmatprep.subr.mxu0 0.0
    %3114 = vmatpush1.msra.mxu0 0.0
    %3115 = vmatprep.subr.mxu0 0.0
    %3116 = vmatpush1.msra.mxu0 0.0
    %3117 = vmatprep.subr.mxu0 0.0
    %3118 = vmatpush1.msra.mxu0 0.0
    %3119 = vmatprep.subr.mxu0 0.0
    %3120 = vmatpush1.msra.mxu0 0.0
    %3121 = vmatprep.subr.mxu0 0.0
    %3122 = vmatpush1.msra.mxu0 0.0
    %3123 = vmatprep.subr.mxu0 0.0
    %3124 = vmatpush1.msra.mxu0 0.0
    %3125 = vmatprep.subr.mxu0 0.0
    %3126 = vmatpush1.msra.mxu0 0.0
    %3127 = vmatprep.subr.mxu0 0.0
    %3128 = vmatpush1.msra.mxu0 0.0
    %3129 = vmatprep.subr.mxu0 0.0
    %3130 = vmatpush1.msra.mxu0 0.0
    %3131 = vmatprep.subr.mxu0 0.0
    %3132 = vmatpush1.msra.mxu0 0.0
    %3133 = vmatprep.subr.mxu0 0.0
    %3134 = vmatpush1.msra.mxu0 0.0
    %3135 = vmatprep.subr.mxu0 0.0
    %3136 = vmatpush1.msra.mxu0 0.0
    %3137 = vmatprep.subr.mxu0 0.0
    %3138 = vmatpush1.msra.mxu0 %v2779
    %3139 = vmatprep.subr.mxu0 0.0
    %3140 = vmatpush1.msra.mxu0 %v2774
    %3141 = vmatprep.subr.mxu0 0.0
    %3142 = vmatpush2.msra.mxu0 0.0
    %3143 = vmatprep.subr.mxu0 0.0
    %3144 = vmatpush2.msra.mxu0 0.0
    %3145 = vmatprep.subr.mxu0 0.0
    %3146 = vmatpush2.msra.mxu0 0.0
    %3147 = vmatprep.subr.mxu0 0.0
    %3148 = vmatpush2.msra.mxu0 0.0
    %3149 = vmatprep.subr.mxu0 0.0
    %3150 = vmatpush2.msra.mxu0 0.0
    %3151 = vmatprep.subr.mxu0 0.0
    %3152 = vmatpush2.msra.mxu0 0.0
    %3153 = vmatprep.subr.mxu0 0.0
    %3154 = vmatpush2.msra.mxu0 0.0
    %3155 = vmatprep.subr.mxu0 0.0
    %3156 = vmatpush2.msra.mxu0 0.0
    %3157 = vmatprep.subr.mxu0 0.0
    %3158 = vmatpush2.msra.mxu0 0.0
    %3159 = vmatprep.subr.mxu0 0.0
    %3160 = vmatpush2.msra.mxu0 0.0
    %3161 = vmatprep.subr.mxu0 0.0
    %3162 = vmatpush2.msra.mxu0 0.0
    %3163 = vmatprep.subr.mxu0 0.0
    %3164 = vmatpush2.msra.mxu0 0.0
    %3165 = vmatprep.subr.mxu0 0.0
    %3166 = vmatpush2.msra.mxu0 0.0
    %3167 = vmatprep.subr.mxu0 0.0
    %3168 = vmatpush2.msra.mxu0 0.0
    %3169 = vmatprep.subr.mxu0 0.0
    %3170 = vmatpush2.msra.mxu0 0.0
    %3171 = vmatprep.subr.mxu0 0.0
    %3172 = vmatpush2.msra.mxu0 0.0
    %3173 = vmatprep.mubr.f32.mxu0 0.0
    %3174 = vmatmul.mubr.f32.gmra.mxu0 %v3104
    %v3175 = vpop.f32.mrf.mxu0
    %v3176 = vadd.f32 %v3095, %v3175
    %v3177 = vpop.f32.mrf.mxu0
    %3178 = vmatprep.mubr.f32.mxu0 0.0
    %3179 = vmatmul.mubr.f32.gmra.mxu0 %v3107
    %v3180 = vpop.f32.mrf.mxu0
    %v3181 = vadd.f32 %v3100, %v3180
    %v3182 = vpop.f32.mrf.mxu0
    %3183 = vdwg.mxu0
    %3184 = vrot.lane.b32.xlu0 %v2613, 112
    %v3185 = vpop.permute.xlu0 %3184
    %3186 = vrot.lane.b32.xlu0 %v2618, 112
    %v3187 = vpop.permute.xlu0 %3186
    %3188 = vrot.lane.b32.xlu0 %v2694, 80
    %v3189 = vpop.permute.xlu0 %3188
    %3190 = vrot.lane.b32.xlu0 %v2699, 80
    %v3191 = vpop.permute.xlu0 %3190
    %v3192 = vsel %vm208, %v3185, 0
    %v3194 = vsel %vm208, %v3187, 0
    %v3196 = vsel %vm208, %v3189, 0
    %v3198 = vsel %vm208, %v3191, 0
    %3200 = vmatprep.subr.mxu0 0.0
    %3201 = vmatpush1.xpose.msra.mxu0 0.0
    %3202 = vmatprep.subr.mxu0 0.0
    %3203 = vmatpush1.xpose.msra.mxu0 0.0
    %3204 = vmatprep.subr.mxu0 0.0
    %3205 = vmatpush1.xpose.msra.mxu0 0.0
    %3206 = vmatprep.subr.mxu0 0.0
    %3207 = vmatpush1.xpose.msra.mxu0 0.0
    %3208 = vmatprep.subr.mxu0 0.0
    %3209 = vmatpush1.xpose.msra.mxu0 0.0
    %3210 = vmatprep.subr.mxu0 0.0
    %3211 = vmatpush1.xpose.msra.mxu0 0.0
    %3212 = vmatprep.subr.mxu0 0.0
    %3213 = vmatpush1.xpose.msra.mxu0 0.0
    %3214 = vmatprep.subr.mxu0 0.0
    %3215 = vmatpush1.xpose.msra.mxu0 0.0
    %3216 = vmatprep.subr.mxu0 0.0
    %3217 = vmatpush1.xpose.msra.mxu0 0.0
    %3218 = vmatprep.subr.mxu0 0.0
    %3219 = vmatpush1.xpose.msra.mxu0 0.0
    %3220 = vmatprep.subr.mxu0 0.0
    %3221 = vmatpush1.xpose.msra.mxu0 0.0
    %3222 = vmatprep.subr.mxu0 0.0
    %3223 = vmatpush1.xpose.msra.mxu0 0.0
    %3224 = vmatprep.subr.mxu0 0.0
    %3225 = vmatpush1.xpose.msra.mxu0 0.0
    %3226 = vmatprep.subr.mxu0 0.0
    %3227 = vmatpush1.xpose.msra.mxu0 0.0
    %3228 = vmatprep.subr.mxu0 0.0
    %3229 = vmatpush1.xpose.msra.mxu0 %v3198
    %3230 = vmatprep.subr.mxu0 0.0
    %3231 = vmatpush1.xpose.msra.mxu0 %v3196
    %3232 = vmatprep.subr.mxu0 0.0
    %3233 = vmatpush2.xpose.msra.mxu0 0.0
    %3234 = vmatprep.subr.mxu0 0.0
    %3235 = vmatpush2.xpose.msra.mxu0 0.0
    %3236 = vmatprep.subr.mxu0 0.0
    %3237 = vmatpush2.xpose.msra.mxu0 0.0
    %3238 = vmatprep.subr.mxu0 0.0
    %3239 = vmatpush2.xpose.msra.mxu0 0.0
    %3240 = vmatprep.subr.mxu0 0.0
    %3241 = vmatpush2.xpose.msra.mxu0 0.0
    %3242 = vmatprep.subr.mxu0 0.0
    %3243 = vmatpush2.xpose.msra.mxu0 0.0
    %3244 = vmatprep.subr.mxu0 0.0
    %3245 = vmatpush2.xpose.msra.mxu0 0.0
    %3246 = vmatprep.subr.mxu0 0.0
    %3247 = vmatpush2.xpose.msra.mxu0 0.0
    %3248 = vmatprep.subr.mxu0 0.0
    %3249 = vmatpush2.xpose.msra.mxu0 0.0
    %3250 = vmatprep.subr.mxu0 0.0
    %3251 = vmatpush2.xpose.msra.mxu0 0.0
    %3252 = vmatprep.subr.mxu0 0.0
    %3253 = vmatpush2.xpose.msra.mxu0 0.0
    %3254 = vmatprep.subr.mxu0 0.0
    %3255 = vmatpush2.xpose.msra.mxu0 0.0
    %3256 = vmatprep.subr.mxu0 0.0
    %3257 = vmatpush2.xpose.msra.mxu0 0.0
    %3258 = vmatprep.subr.mxu0 0.0
    %3259 = vmatpush2.xpose.msra.mxu0 0.0
    %3260 = vmatprep.subr.mxu0 0.0
    %3261 = vmatpush2.xpose.msra.mxu0 0.0
    %3262 = vmatprep.subr.mxu0 0.0
    %3263 = vmatpush2.xpose.msra.mxu0 0.0
    %3264 = vmatprep.mubr.f32.mxu0 0.0
    %3265 = vmatmul.mubr.f32.gmra.mxu0 %v3192
    %v3266 = vpop.f32.mrf.mxu0
    %v3267 = vadd.f32 %v2789, %v3266
    %v3268 = vpop.f32.mrf.mxu0
    %3269 = vmatprep.mubr.f32.mxu0 0.0
    %3270 = vmatmul.mubr.f32.gmra.mxu0 %v3194
    %v3271 = vpop.f32.mrf.mxu0
    %v3272 = vadd.f32 %v2791, %v3271
    %v3273 = vpop.f32.mrf.mxu0
    %3274 = vdwg.mxu0
    %v3275 = vsel %vm292, %v3267, -inf
    %3276 = vmax.xlane.f32.xlu0 %v3275
    %v3277 = vpop.xlane.xlu0 %3276
    %v3278 = vsel %vm292, %v3272, -inf
    %3279 = vmax.xlane.f32.xlu0 %v3278
    %v3280 = vpop.xlane.xlu0 %3279
    %v3281 = vsub.f32 %v3267, %v3277
    %v3282 = vsub.f32 %v3272, %v3280
    %v3283 = vmul.f32 %v3281, 1.442695
    %v3284 = vpow.pop %v3283
    %v3285 = vmul.f32 %v3282, 1.442695
    %v3286 = vpow.pop %v3285
    %v3287 = vsel %vm292, %v3284, 0.0
    %3288 = vadd.xlane.f32.xlu0 %v3287
    %v3289 = vpop.xlane.xlu0 %3288
    %v3290 = vsel %vm292, %v3286, 0.0
    %3291 = vadd.xlane.f32.xlu0 %v3290
    %v3292 = vpop.xlane.xlu0 %3291
    %v3293 = vrcp.pop %v3289
    %v3294 = vrcp.pop %v3292
    %v3295 = vmul.f32 %v3284, %v3293
    %v3296 = vmul.f32 %v3286, %v3294
    %3297 = vrot.lane.b32.xlu0 %v2774, 64
    %v3298 = vpop.permute.xlu0 %3297
    %3299 = vrot.lane.b32.xlu0 %v2779, 64
    %v3300 = vpop.permute.xlu0 %3299
    %v3304 = vsel %vm292, %v3295, 0
    %v3307 = vsel %vm292, %v3296, 0
    %3309 = vmatprep.subr.mxu0 0.0
    %3310 = vmatpush1.msra.mxu0 0.0
    %3311 = vmatprep.subr.mxu0 0.0
    %3312 = vmatpush1.msra.mxu0 0.0
    %3313 = vmatprep.subr.mxu0 0.0
    %3314 = vmatpush1.msra.mxu0 0.0
    %3315 = vmatprep.subr.mxu0 0.0
    %3316 = vmatpush1.msra.mxu0 0.0
    %3317 = vmatprep.subr.mxu0 0.0
    %3318 = vmatpush1.msra.mxu0 0.0
    %3319 = vmatprep.subr.mxu0 0.0
    %3320 = vmatpush1.msra.mxu0 0.0
    %3321 = vmatprep.subr.mxu0 0.0
    %3322 = vmatpush1.msra.mxu0 0.0
    %3323 = vmatprep.subr.mxu0 0.0
    %3324 = vmatpush1.msra.mxu0 0.0
    %3325 = vmatprep.subr.mxu0 0.0
    %3326 = vmatpush1.msra.mxu0 0.0
    %3327 = vmatprep.subr.mxu0 0.0
    %3328 = vmatpush1.msra.mxu0 0.0
    %3329 = vmatprep.subr.mxu0 0.0
    %3330 = vmatpush1.msra.mxu0 0.0
    %3331 = vmatprep.subr.mxu0 0.0
    %3332 = vmatpush1.msra.mxu0 0.0
    %3333 = vmatprep.subr.mxu0 0.0
    %3334 = vmatpush1.msra.mxu0 0.0
    %3335 = vmatprep.subr.mxu0 0.0
    %3336 = vmatpush1.msra.mxu0 0.0
    %3337 = vmatprep.subr.mxu0 0.0
    %3338 = vmatpush1.msra.mxu0 %v3300
    %3339 = vmatprep.subr.mxu0 0.0
    %3340 = vmatpush1.msra.mxu0 %v3298
    %3341 = vmatprep.subr.mxu0 0.0
    %3342 = vmatpush2.msra.mxu0 0.0
    %3343 = vmatprep.subr.mxu0 0.0
    %3344 = vmatpush2.msra.mxu0 0.0
    %3345 = vmatprep.subr.mxu0 0.0
    %3346 = vmatpush2.msra.mxu0 0.0
    %3347 = vmatprep.subr.mxu0 0.0
    %3348 = vmatpush2.msra.mxu0 0.0
    %3349 = vmatprep.subr.mxu0 0.0
    %3350 = vmatpush2.msra.mxu0 0.0
    %3351 = vmatprep.subr.mxu0 0.0
    %3352 = vmatpush2.msra.mxu0 0.0
    %3353 = vmatprep.subr.mxu0 0.0
    %3354 = vmatpush2.msra.mxu0 0.0
    %3355 = vmatprep.subr.mxu0 0.0
    %3356 = vmatpush2.msra.mxu0 0.0
    %3357 = vmatprep.subr.mxu0 0.0
    %3358 = vmatpush2.msra.mxu0 0.0
    %3359 = vmatprep.subr.mxu0 0.0
    %3360 = vmatpush2.msra.mxu0 0.0
    %3361 = vmatprep.subr.mxu0 0.0
    %3362 = vmatpush2.msra.mxu0 0.0
    %3363 = vmatprep.subr.mxu0 0.0
    %3364 = vmatpush2.msra.mxu0 0.0
    %3365 = vmatprep.subr.mxu0 0.0
    %3366 = vmatpush2.msra.mxu0 0.0
    %3367 = vmatprep.subr.mxu0 0.0
    %3368 = vmatpush2.msra.mxu0 0.0
    %3369 = vmatprep.subr.mxu0 0.0
    %3370 = vmatpush2.msra.mxu0 0.0
    %3371 = vmatprep.subr.mxu0 0.0
    %3372 = vmatpush2.msra.mxu0 0.0
    %3373 = vmatprep.mubr.f32.mxu0 0.0
    %3374 = vmatmul.mubr.f32.gmra.mxu0 %v3304
    %v3375 = vpop.f32.mrf.mxu0
    %v3376 = vadd.f32 0.0, %v3375
    %v3377 = vpop.f32.mrf.mxu0
    %3378 = vmatprep.mubr.f32.mxu0 0.0
    %3379 = vmatmul.mubr.f32.gmra.mxu0 %v3307
    %v3380 = vpop.f32.mrf.mxu0
    %v3381 = vadd.f32 0.0, %v3380
    %v3382 = vpop.f32.mrf.mxu0
    %3383 = vdwg.mxu0
    %v3384 = vadd.f32 %v3176, %v3376
    %v3385 = vadd.f32 %v3181, %v3381
    %3386 = vrot.lane.b32.xlu0 %v2613, 104
    %v3387 = vpop.permute.xlu0 %3386
    %3388 = vrot.lane.b32.xlu0 %v2618, 104
    %v3389 = vpop.permute.xlu0 %3388
    %3390 = vrot.lane.b32.xlu0 %v2694, 72
    %v3391 = vpop.permute.xlu0 %3390
    %3392 = vrot.lane.b32.xlu0 %v2699, 72
    %v3393 = vpop.permute.xlu0 %3392
    %v3394 = vsel %vm208, %v3387, 0
    %v3396 = vsel %vm208, %v3389, 0
    %v3398 = vsel %vm208, %v3391, 0
    %v3400 = vsel %vm208, %v3393, 0
    %3402 = vmatprep.subr.mxu0 0.0
    %3403 = vmatpush1.xpose.msra.mxu0 0.0
    %3404 = vmatprep.subr.mxu0 0.0
    %3405 = vmatpush1.xpose.msra.mxu0 0.0
    %3406 = vmatprep.subr.mxu0 0.0
    %3407 = vmatpush1.xpose.msra.mxu0 0.0
    %3408 = vmatprep.subr.mxu0 0.0
    %3409 = vmatpush1.xpose.msra.mxu0 0.0
    %3410 = vmatprep.subr.mxu0 0.0
    %3411 = vmatpush1.xpose.msra.mxu0 0.0
    %3412 = vmatprep.subr.mxu0 0.0
    %3413 = vmatpush1.xpose.msra.mxu0 0.0
    %3414 = vmatprep.subr.mxu0 0.0
    %3415 = vmatpush1.xpose.msra.mxu0 0.0
    %3416 = vmatprep.subr.mxu0 0.0
    %3417 = vmatpush1.xpose.msra.mxu0 0.0
    %3418 = vmatprep.subr.mxu0 0.0
    %3419 = vmatpush1.xpose.msra.mxu0 0.0
    %3420 = vmatprep.subr.mxu0 0.0
    %3421 = vmatpush1.xpose.msra.mxu0 0.0
    %3422 = vmatprep.subr.mxu0 0.0
    %3423 = vmatpush1.xpose.msra.mxu0 0.0
    %3424 = vmatprep.subr.mxu0 0.0
    %3425 = vmatpush1.xpose.msra.mxu0 0.0
    %3426 = vmatprep.subr.mxu0 0.0
    %3427 = vmatpush1.xpose.msra.mxu0 0.0
    %3428 = vmatprep.subr.mxu0 0.0
    %3429 = vmatpush1.xpose.msra.mxu0 0.0
    %3430 = vmatprep.subr.mxu0 0.0
    %3431 = vmatpush1.xpose.msra.mxu0 %v3400
    %3432 = vmatprep.subr.mxu0 0.0
    %3433 = vmatpush1.xpose.msra.mxu0 %v3398
    %3434 = vmatprep.subr.mxu0 0.0
    %3435 = vmatpush2.xpose.msra.mxu0 0.0
    %3436 = vmatprep.subr.mxu0 0.0
    %3437 = vmatpush2.xpose.msra.mxu0 0.0
    %3438 = vmatprep.subr.mxu0 0.0
    %3439 = vmatpush2.xpose.msra.mxu0 0.0
    %3440 = vmatprep.subr.mxu0 0.0
    %3441 = vmatpush2.xpose.msra.mxu0 0.0
    %3442 = vmatprep.subr.mxu0 0.0
    %3443 = vmatpush2.xpose.msra.mxu0 0.0
    %3444 = vmatprep.subr.mxu0 0.0
    %3445 = vmatpush2.xpose.msra.mxu0 0.0
    %3446 = vmatprep.subr.mxu0 0.0
    %3447 = vmatpush2.xpose.msra.mxu0 0.0
    %3448 = vmatprep.subr.mxu0 0.0
    %3449 = vmatpush2.xpose.msra.mxu0 0.0
    %3450 = vmatprep.subr.mxu0 0.0
    %3451 = vmatpush2.xpose.msra.mxu0 0.0
    %3452 = vmatprep.subr.mxu0 0.0
    %3453 = vmatpush2.xpose.msra.mxu0 0.0
    %3454 = vmatprep.subr.mxu0 0.0
    %3455 = vmatpush2.xpose.msra.mxu0 0.0
    %3456 = vmatprep.subr.mxu0 0.0
    %3457 = vmatpush2.xpose.msra.mxu0 0.0
    %3458 = vmatprep.subr.mxu0 0.0
    %3459 = vmatpush2.xpose.msra.mxu0 0.0
    %3460 = vmatprep.subr.mxu0 0.0
    %3461 = vmatpush2.xpose.msra.mxu0 0.0
    %3462 = vmatprep.subr.mxu0 0.0
    %3463 = vmatpush2.xpose.msra.mxu0 0.0
    %3464 = vmatprep.subr.mxu0 0.0
    %3465 = vmatpush2.xpose.msra.mxu0 0.0
    %3466 = vmatprep.mubr.f32.mxu0 0.0
    %3467 = vmatmul.mubr.f32.gmra.mxu0 %v3394
    %v3468 = vpop.f32.mrf.mxu0
    %v3469 = vadd.f32 %v2789, %v3468
    %v3470 = vpop.f32.mrf.mxu0
    %3471 = vmatprep.mubr.f32.mxu0 0.0
    %3472 = vmatmul.mubr.f32.gmra.mxu0 %v3396
    %v3473 = vpop.f32.mrf.mxu0
    %v3474 = vadd.f32 %v2791, %v3473
    %v3475 = vpop.f32.mrf.mxu0
    %3476 = vdwg.mxu0
    %v3477 = vsel %vm292, %v3469, -inf
    %3478 = vmax.xlane.f32.xlu0 %v3477
    %v3479 = vpop.xlane.xlu0 %3478
    %v3480 = vsel %vm292, %v3474, -inf
    %3481 = vmax.xlane.f32.xlu0 %v3480
    %v3482 = vpop.xlane.xlu0 %3481
    %v3483 = vsub.f32 %v3469, %v3479
    %v3484 = vsub.f32 %v3474, %v3482
    %v3485 = vmul.f32 %v3483, 1.442695
    %v3486 = vpow.pop %v3485
    %v3487 = vmul.f32 %v3484, 1.442695
    %v3488 = vpow.pop %v3487
    %v3489 = vsel %vm292, %v3486, 0.0
    %3490 = vadd.xlane.f32.xlu0 %v3489
    %v3491 = vpop.xlane.xlu0 %3490
    %v3492 = vsel %vm292, %v3488, 0.0
    %3493 = vadd.xlane.f32.xlu0 %v3492
    %v3494 = vpop.xlane.xlu0 %3493
    %v3495 = vrcp.pop %v3491
    %v3496 = vrcp.pop %v3494
    %v3497 = vmul.f32 %v3486, %v3495
    %v3498 = vmul.f32 %v3488, %v3496
    %3499 = vrot.lane.b32.xlu0 %v2774, 32
    %v3500 = vpop.permute.xlu0 %3499
    %3501 = vrot.lane.b32.xlu0 %v2779, 32
    %v3502 = vpop.permute.xlu0 %3501
    %v3506 = vsel %vm292, %v3497, 0
    %v3509 = vsel %vm292, %v3498, 0
    %3511 = vmatprep.subr.mxu0 0.0
    %3512 = vmatpush1.msra.mxu0 0.0
    %3513 = vmatprep.subr.mxu0 0.0
    %3514 = vmatpush1.msra.mxu0 0.0
    %3515 = vmatprep.subr.mxu0 0.0
    %3516 = vmatpush1.msra.mxu0 0.0
    %3517 = vmatprep.subr.mxu0 0.0
    %3518 = vmatpush1.msra.mxu0 0.0
    %3519 = vmatprep.subr.mxu0 0.0
    %3520 = vmatpush1.msra.mxu0 0.0
    %3521 = vmatprep.subr.mxu0 0.0
    %3522 = vmatpush1.msra.mxu0 0.0
    %3523 = vmatprep.subr.mxu0 0.0
    %3524 = vmatpush1.msra.mxu0 0.0
    %3525 = vmatprep.subr.mxu0 0.0
    %3526 = vmatpush1.msra.mxu0 0.0
    %3527 = vmatprep.subr.mxu0 0.0
    %3528 = vmatpush1.msra.mxu0 0.0
    %3529 = vmatprep.subr.mxu0 0.0
    %3530 = vmatpush1.msra.mxu0 0.0
    %3531 = vmatprep.subr.mxu0 0.0
    %3532 = vmatpush1.msra.mxu0 0.0
    %3533 = vmatprep.subr.mxu0 0.0
    %3534 = vmatpush1.msra.mxu0 0.0
    %3535 = vmatprep.subr.mxu0 0.0
    %3536 = vmatpush1.msra.mxu0 0.0
    %3537 = vmatprep.subr.mxu0 0.0
    %3538 = vmatpush1.msra.mxu0 0.0
    %3539 = vmatprep.subr.mxu0 0.0
    %3540 = vmatpush1.msra.mxu0 %v3502
    %3541 = vmatprep.subr.mxu0 0.0
    %3542 = vmatpush1.msra.mxu0 %v3500
    %3543 = vmatprep.subr.mxu0 0.0
    %3544 = vmatpush2.msra.mxu0 0.0
    %3545 = vmatprep.subr.mxu0 0.0
    %3546 = vmatpush2.msra.mxu0 0.0
    %3547 = vmatprep.subr.mxu0 0.0
    %3548 = vmatpush2.msra.mxu0 0.0
    %3549 = vmatprep.subr.mxu0 0.0
    %3550 = vmatpush2.msra.mxu0 0.0
    %3551 = vmatprep.subr.mxu0 0.0
    %3552 = vmatpush2.msra.mxu0 0.0
    %3553 = vmatprep.subr.mxu0 0.0
    %3554 = vmatpush2.msra.mxu0 0.0
    %3555 = vmatprep.subr.mxu0 0.0
    %3556 = vmatpush2.msra.mxu0 0.0
    %3557 = vmatprep.subr.mxu0 0.0
    %3558 = vmatpush2.msra.mxu0 0.0
    %3559 = vmatprep.subr.mxu0 0.0
    %3560 = vmatpush2.msra.mxu0 0.0
    %3561 = vmatprep.subr.mxu0 0.0
    %3562 = vmatpush2.msra.mxu0 0.0
    %3563 = vmatprep.subr.mxu0 0.0
    %3564 = vmatpush2.msra.mxu0 0.0
    %3565 = vmatprep.subr.mxu0 0.0
    %3566 = vmatpush2.msra.mxu0 0.0
    %3567 = vmatprep.subr.mxu0 0.0
    %3568 = vmatpush2.msra.mxu0 0.0
    %3569 = vmatprep.subr.mxu0 0.0
    %3570 = vmatpush2.msra.mxu0 0.0
    %3571 = vmatprep.subr.mxu0 0.0
    %3572 = vmatpush2.msra.mxu0 0.0
    %3573 = vmatprep.subr.mxu0 0.0
    %3574 = vmatpush2.msra.mxu0 0.0
    %3575 = vmatprep.mubr.f32.mxu0 0.0
    %3576 = vmatmul.mubr.f32.gmra.mxu0 %v3506
    %v3577 = vpop.f32.mrf.mxu0
    %v3578 = vadd.f32 0.0, %v3577
    %v3579 = vpop.f32.mrf.mxu0
    %3580 = vmatprep.mubr.f32.mxu0 0.0
    %3581 = vmatmul.mubr.f32.gmra.mxu0 %v3509
    %v3582 = vpop.f32.mrf.mxu0
    %v3583 = vadd.f32 0.0, %v3582
    %v3584 = vpop.f32.mrf.mxu0
    %3585 = vdwg.mxu0
    %v3586 = vadd.f32 %v3384, %v3578
    %v3587 = vadd.f32 %v3385, %v3583
    %v3588 = vld [vmem:[%s4 + $0x11] sm:$0x1]
    %v3589 = vlaneseq
    %v3590 = vshrl.u32 %v3589, 7
    %v3591 = vsub.s32 0, %v3590
    %v3592 = vrot.slane %v3588, %v3591
    %v3593 = vadd.f32 %v3586, %v3592
    %v3594 = vadd.f32 %v3587, %v3592
    %3596 = vrot.lane.b32.xlu0 %v25, 80
    %v3597 = vpop.permute.xlu0 %3596
    %v3598 = vsel %vm292, %v3597, 0
    %3600 = vmatprep.subr.mxu0 0.0
    %3601 = vmatpush1.msra.mxu0 0.0
    %3602 = vmatprep.subr.mxu0 0.0
    %3603 = vmatpush1.msra.mxu0 0.0
    %3604 = vmatprep.subr.mxu0 0.0
    %3605 = vmatpush1.msra.mxu0 0.0
    %3606 = vmatprep.subr.mxu0 0.0
    %3607 = vmatpush1.msra.mxu0 0.0
    %3608 = vmatprep.subr.mxu0 0.0
    %3609 = vmatpush1.msra.mxu0 0.0
    %3610 = vmatprep.subr.mxu0 0.0
    %3611 = vmatpush1.msra.mxu0 0.0
    %3612 = vmatprep.subr.mxu0 0.0
    %3613 = vmatpush1.msra.mxu0 0.0
    %3614 = vmatprep.subr.mxu0 0.0
    %3615 = vmatpush1.msra.mxu0 0.0
    %3616 = vmatprep.subr.mxu0 0.0
    %3617 = vmatpush1.msra.mxu0 0.0
    %3618 = vmatprep.subr.mxu0 0.0
    %3619 = vmatpush1.msra.mxu0 0.0
    %3620 = vmatprep.subr.mxu0 0.0
    %3621 = vmatpush1.msra.mxu0 0.0
    %3622 = vmatprep.subr.mxu0 0.0
    %3623 = vmatpush1.msra.mxu0 0.0
    %3624 = vmatprep.subr.mxu0 0.0
    %3625 = vmatpush1.msra.mxu0 0.0
    %3626 = vmatprep.subr.mxu0 0.0
    %3627 = vmatpush1.msra.mxu0 0.0
    %3628 = vmatprep.subr.mxu0 0.0
    %3629 = vmatpush1.msra.mxu0 %v3594
    %3630 = vmatprep.subr.mxu0 0.0
    %3631 = vmatpush1.msra.mxu0 %v3593
    %3632 = vmatprep.subr.mxu0 0.0
    %3633 = vmatpush2.msra.mxu0 0.0
    %3634 = vmatprep.subr.mxu0 0.0
    %3635 = vmatpush2.msra.mxu0 0.0
    %3636 = vmatprep.subr.mxu0 0.0
    %3637 = vmatpush2.msra.mxu0 0.0
    %3638 = vmatprep.subr.mxu0 0.0
    %3639 = vmatpush2.msra.mxu0 0.0
    %3640 = vmatprep.subr.mxu0 0.0
    %3641 = vmatpush2.msra.mxu0 0.0
    %3642 = vmatprep.subr.mxu0 0.0
    %3643 = vmatpush2.msra.mxu0 0.0
    %3644 = vmatprep.subr.mxu0 0.0
    %3645 = vmatpush2.msra.mxu0 0.0
    %3646 = vmatprep.subr.mxu0 0.0
    %3647 = vmatpush2.msra.mxu0 0.0
    %3648 = vmatprep.subr.mxu0 0.0
    %3649 = vmatpush2.msra.mxu0 0.0
    %3650 = vmatprep.subr.mxu0 0.0
    %3651 = vmatpush2.msra.mxu0 0.0
    %3652 = vmatprep.subr.mxu0 0.0
    %3653 = vmatpush2.msra.mxu0 0.0
    %3654 = vmatprep.subr.mxu0 0.0
    %3655 = vmatpush2.msra.mxu0 0.0
    %3656 = vmatprep.subr.mxu0 0.0
    %3657 = vmatpush2.msra.mxu0 0.0
    %3658 = vmatprep.subr.mxu0 0.0
    %3659 = vmatpush2.msra.mxu0 0.0
    %3660 = vmatprep.subr.mxu0 0.0
    %3661 = vmatpush2.msra.mxu0 0.0
    %3662 = vmatprep.subr.mxu0 0.0
    %3663 = vmatpush2.msra.mxu0 0.0
    %3664 = vmatprep.mubr.f32.mxu0 0.0
    %3665 = vmatmul.mubr.f32.gmra.mxu0 %v3598
    %v3666 = vpop.f32.mrf.mxu0
    %v3667 = vadd.f32 0.0, %v3666
    %v3668 = vpop.f32.mrf.mxu0
    %3669 = vdwg.mxu0
    %v3670 = vld [vmem:[%s4 + $0x18] sm:$0xff]
    %v3671 = vld [vmem:[%s4 + $0x20] sm:$0xff]
    %v3672 = vld [vmem:[%s4 + $0x28] sm:$0xff]
    %v3673 = vld [vmem:[%s4 + $0x30] sm:$0xff]
    %v3674 = vld [vmem:[%s4 + $0x12] sm:$0x1]
    %v3675 = vlaneseq
    %v3676 = vshrl.u32 %v3675, 7
    %v3677 = vsub.s32 0, %v3676
    %v3678 = vrot.slane %v3674, %v3677
    %v3680 = vsel %vm35, %v3667, 0
    %3682 = vmatprep.subr.mxu0 0.0
    %3683 = vmatpush1.msra.mxu0 0.0
    %3684 = vmatprep.subr.mxu0 0.0
    %3685 = vmatpush1.msra.mxu0 0.0
    %3686 = vmatprep.subr.mxu0 0.0
    %3687 = vmatpush1.msra.mxu0 0.0
    %3688 = vmatprep.subr.mxu0 0.0
    %3689 = vmatpush1.msra.mxu0 0.0
    %3690 = vmatprep.subr.mxu0 0.0
    %3691 = vmatpush1.msra.mxu0 0.0
    %3692 = vmatprep.subr.mxu0 0.0
    %3693 = vmatpush1.msra.mxu0 0.0
    %3694 = vmatprep.subr.mxu0 0.0
    %3695 = vmatpush1.msra.mxu0 0.0
    %3696 = vmatprep.subr.mxu0 0.0
    %3697 = vmatpush1.msra.mxu0 0.0
    %3698 = vmatprep.subr.mxu0 0.0
    %3699 = vmatpush1.msra.mxu0 0.0
    %3700 = vmatprep.subr.mxu0 0.0
    %3701 = vmatpush1.msra.mxu0 0.0
    %3702 = vmatprep.subr.mxu0 0.0
    %3703 = vmatpush1.msra.mxu0 0.0
    %3704 = vmatprep.subr.mxu0 0.0
    %3705 = vmatpush1.msra.mxu0 0.0
    %3706 = vmatprep.subr.mxu0 0.0
    %3707 = vmatpush1.msra.mxu0 %v3673
    %3708 = vmatprep.subr.mxu0 0.0
    %3709 = vmatpush1.msra.mxu0 %v3672
    %3710 = vmatprep.subr.mxu0 0.0
    %3711 = vmatpush1.msra.mxu0 %v3671
    %3712 = vmatprep.subr.mxu0 0.0
    %3713 = vmatpush1.msra.mxu0 %v3670
    %3714 = vmatprep.subr.mxu0 0.0
    %3715 = vmatpush2.msra.mxu0 0.0
    %3716 = vmatprep.subr.mxu0 0.0
    %3717 = vmatpush2.msra.mxu0 0.0
    %3718 = vmatprep.subr.mxu0 0.0
    %3719 = vmatpush2.msra.mxu0 0.0
    %3720 = vmatprep.subr.mxu0 0.0
    %3721 = vmatpush2.msra.mxu0 0.0
    %3722 = vmatprep.subr.mxu0 0.0
    %3723 = vmatpush2.msra.mxu0 0.0
    %3724 = vmatprep.subr.mxu0 0.0
    %3725 = vmatpush2.msra.mxu0 0.0
    %3726 = vmatprep.subr.mxu0 0.0
    %3727 = vmatpush2.msra.mxu0 0.0
    %3728 = vmatprep.subr.mxu0 0.0
    %3729 = vmatpush2.msra.mxu0 0.0
    %3730 = vmatprep.subr.mxu0 0.0
    %3731 = vmatpush2.msra.mxu0 0.0
    %3732 = vmatprep.subr.mxu0 0.0
    %3733 = vmatpush2.msra.mxu0 0.0
    %3734 = vmatprep.subr.mxu0 0.0
    %3735 = vmatpush2.msra.mxu0 0.0
    %3736 = vmatprep.subr.mxu0 0.0
    %3737 = vmatpush2.msra.mxu0 0.0
    %3738 = vmatprep.subr.mxu0 0.0
    %3739 = vmatpush2.msra.mxu0 0.0
    %3740 = vmatprep.subr.mxu0 0.0
    %3741 = vmatpush2.msra.mxu0 0.0
    %3742 = vmatprep.subr.mxu0 0.0
    %3743 = vmatpush2.msra.mxu0 0.0
    %3744 = vmatprep.subr.mxu0 0.0
    %3745 = vmatpush2.msra.mxu0 0.0
    %3746 = vmatprep.mubr.f32.mxu0 0.0
    %3747 = vmatmul.mubr.f32.gmra.mxu0 %v3680
    %v3748 = vpop.f32.mrf.mxu0
    %v3749 = vadd.f32 %v3678, %v3748
    %v3750 = vpop.f32.mrf.mxu0
    %3751 = vdwg.mxu0
    %vm3752 = vcmask 9216
    %3753 = vst.msk [vmem:[#allocation2] sm:$0x3] %vm3752, %v3749
    // Predicated region
    $region22: #{encoder_forward.1} parent=1 // pred_check
      _
    $region23: #{encoder_forward.1} parent=1 // pred_check_branch
      %3755 = sbr.rel (0) target = $region25
    $region24: #{encoder_forward.1} parent=1 // pred_region
      %s3757 = ssub.s32 32, 32
      %3758 = vsyncadd [#allocation3], %s3757
      %s3760 = sshll.u32 [#allocation2], 4
      %s3761 = int_to_ptr.vmem [resolvable:$true] %s3760
      %3763 = dma.vmem_to_hbm [thread:$0]  %s3761, 32, %s5, [#allocation3]
    $region25: #{encoder_forward.1} parent=1 // pred_fallthru
      _
    // Predicated region
    $region26: #{encoder_forward.1} parent=1 // pred_check
      _
    $region27: #{encoder_forward.1} parent=1 // pred_check_branch
      %3765 = sbr.rel (0) target = $region29
    $region28: #{encoder_forward.1} parent=1 // pred_region
      %3766 = dma.done [#allocation3], 32
    $region29: #{encoder_forward.1} parent=1 // pred_fallthru
      _
    %3767 = vsyncpa [#allocation3], 1

</llo_original>
